<compile_context>
chip_gen: v7x
topology: tpu7x:2x2x1
jax: 0.10.0
libtpu: 0.0.40
codegen_flags: <defaults>
</compile_context>

<pallas_src>
import math

import jax
import jax.numpy as jnp
from jax.experimental import pallas as pl
from jax.experimental.pallas import tpu as pltpu

EPS = 1e-5
LANE = 128


def _round_up(x, m):
    return (x + m - 1) // m * m


def _conv_stage_vmem_bytes(th, w, cp):
    tile = th * w * cp
    return int(
        2 * 2 * tile * 2                    # main in + out blocks, bf16, double-buffered
        + (th + 2) * (w + 2) * cp * 4       # f32 halo scratch
        + (th + 2) * w * 3 * cp * 2         # packed bf16 tap slab (K = 3*Cp)
        + 3 * tile * 4                      # f32 accumulator / activation temps
        + 2 * 3 * (3 * cp) * cp * 2)        # packed conv weights, double-buffered


def _choose_tile_h(h, w, cp, budget_bytes=8 << 20):
    # ~8 MiB/step keeps all generations (incl. v7x, 64 MiB physical VMEM)
    # comfortably inside the default scoped VMEM limit.
    for th in range(h, 0, -1):
        if h % th == 0 and _conv_stage_vmem_bytes(th, w, cp) <= budget_bytes:
            return th
    return 1


def _compiler_params(dimension_semantics, est_vmem_bytes):
    kwargs = dict(dimension_semantics=dimension_semantics)
    # Raise the scoped VMEM limit only when the tile working set needs it.
    if est_vmem_bytes > 12 * 1024 * 1024:
        kwargs["vmem_limit_bytes"] = int(
            min(max(2 * est_vmem_bytes, 32 << 20), 100 << 20))
    return pltpu.CompilerParams(**kwargs)


# ---------------------------------------------------------------------------
# Stage 1: conv1 (1x1 channel matmul) + per-step partial BN1 statistics
# ---------------------------------------------------------------------------
def _conv1x1_stats_kernel(x_ref, w_ref, y_ref, s_ref, ss_ref):
    _, th, w, cp = x_ref.shape
    x2d = x_ref[0].reshape(th * w, cp).astype(jnp.bfloat16)
    acc = jnp.dot(x2d, w_ref[...], preferred_element_type=jnp.float32)
    # stats from the f32 accumulator, before the bf16 storage cast
    s_ref[0, 0] = jnp.sum(acc, axis=0, keepdims=True)
    ss_ref[0, 0] = jnp.sum(acc * acc, axis=0, keepdims=True)
    y_ref[0] = acc.reshape(th, w, cp).astype(jnp.bfloat16)


def _conv1x1_stats(x_pad, w1_p, tile_h):
    n, h, w, cp = x_pad.shape
    nh = h // tile_h
    tile = tile_h * w * cp
    flops = 2 * n * h * w * cp * cp
    bytes_accessed = n * h * w * cp * (4 + 2) + cp * cp * 2 + 2 * n * nh * cp * 4
    est_vmem = tile * (4 * 2 + 2 * 2 + 4 * 2) + cp * cp * 2 * 2
    return pl.pallas_call(
        _conv1x1_stats_kernel,
        grid=(n, nh),
        in_specs=[
            pl.BlockSpec((1, tile_h, w, cp), lambda b, i: (b, i, 0, 0)),
            pl.BlockSpec((cp, cp), lambda b, i: (0, 0)),
        ],
        out_specs=(
            pl.BlockSpec((1, tile_h, w, cp), lambda b, i: (b, i, 0, 0)),
            pl.BlockSpec((1, 1, 1, cp), lambda b, i: (b, i, 0, 0)),
            pl.BlockSpec((1, 1, 1, cp), lambda b, i: (b, i, 0, 0)),
        ),
        out_shape=(
            jax.ShapeDtypeStruct((n, h, w, cp), jnp.bfloat16),
            jax.ShapeDtypeStruct((n, nh, 1, cp), jnp.float32),
            jax.ShapeDtypeStruct((n, nh, 1, cp), jnp.float32),
        ),
        compiler_params=_compiler_params(("parallel", "parallel"), est_vmem),
        cost_estimate=pl.CostEstimate(
            flops=flops, transcendentals=0, bytes_accessed=bytes_accessed),
    )(x_pad, w1_p)


# ---------------------------------------------------------------------------
# Stages 2 & 3: fused BN(scale/shift) + ReLU + 3x3 conv + partial BN stats
# ---------------------------------------------------------------------------
def _bn_relu_conv3x3_kernel(y_ref, top_ref, bot_ref, sc_ref, sh_ref, w_ref,
                            out_ref, s_ref, ss_ref, pad_ref):
    i = pl.program_id(1)
    last = pl.num_programs(1) - 1
    _, th, w, cp = y_ref.shape

    scale = sc_ref[...]            # (1, cp) f32, BN folded into scale/shift
    shift = sh_ref[...]

    def act(v):                    # BN affine + ReLU in f32
        return jnp.maximum(v.astype(jnp.float32) * scale + shift, 0.0)

    # Zero the two W-halo columns unconditionally every step (cheap and safe
    # under 'parallel' grid semantics); everything else is overwritten below.
    zcol = jnp.zeros((th + 2, 1, cp), jnp.float32)
    pad_ref[:, 0:1, :] = zcol
    pad_ref[:, w + 1:w + 2, :] = zcol

    # Interior rows: BN + ReLU of this row tile.
    pad_ref[1:th + 1, 1:w + 1, :] = act(y_ref[0])

    # Row halos from the neighbouring row tiles; masked to zero at the image
    # border (SAME padding).
    top_mask = (i > 0).astype(jnp.float32)
    bot_mask = (i < last).astype(jnp.float32)
    pad_ref[0:1, 1:w + 1, :] = act(top_ref[0]) * top_mask
    pad_ref[th + 1:th + 2, 1:w + 1, :] = act(bot_ref[0]) * bot_mask

    # Hoisted dx shifts: 3 sublane-shifted tap slabs (not 9), each cast to
    # bf16 once, lane-packed along K -> K = 3*cp fills the 256-deep MXU.
    taps = jnp.concatenate(
        [pad_ref[:, dx:dx + w, :].astype(jnp.bfloat16) for dx in range(3)],
        axis=-1)                                            # (th+2, w, 3*cp)

    # One K=3*cp matmul per dy; accumulator initialised from the first dot.
    acc = jnp.dot(taps[0:th].reshape(th * w, 3 * cp), w_ref[0],
                  preferred_element_type=jnp.float32)
    acc = acc + jnp.dot(taps[1:th + 1].reshape(th * w, 3 * cp), w_ref[1],
                        preferred_element_type=jnp.float32)
    acc = acc + jnp.dot(taps[2:th + 2].reshape(th * w, 3 * cp), w_ref[2],
                        preferred_element_type=jnp.float32)

    # Per-step partial BN statistics (reduced in XLA between stages) so the
    # grid stays fully 'parallel' (v7x megacore).
    s_ref[0, 0] = jnp.sum(acc, axis=0, keepdims=True)
    ss_ref[0, 0] = jnp.sum(acc * acc, axis=0, keepdims=True)

    out_ref[0] = acc.reshape(th, w, cp).astype(jnp.bfloat16)


def _bn_relu_conv3x3(y, scale, shift, w_p, tile_h):
    n, h, w, cp = y.shape
    nh = h // tile_h
    flops = 2 * 9 * n * h * w * cp * cp
    bytes_accessed = (n * h * w * cp * 2 * 2 + 2 * n * h * cp * 2
                      + w_p.size * 2 + 2 * n * nh * cp * 4)
    est_vmem = _conv_stage_vmem_bytes(tile_h, w, cp)

    def main_map(b, i):
        return (b, i, 0, 0)

    def top_map(b, i):                 # row just above this tile (clamped)
        return (b, jnp.maximum(i * tile_h - 1, 0), 0, 0)

    def bot_map(b, i):                 # row just below this tile (clamped)
        return (b, jnp.minimum((i + 1) * tile_h, h - 1), 0, 0)

    return pl.pallas_call(
        _bn_relu_conv3x3_kernel,
        grid=(n, nh),
        in_specs=[
            pl.BlockSpec((1, tile_h, w, cp), main_map),
            pl.BlockSpec((1, 1, w, cp), top_map),
            pl.BlockSpec((1, 1, w, cp), bot_map),
            pl.BlockSpec((1, cp), lambda b, i: (0, 0)),
            pl.BlockSpec((1, cp), lambda b, i: (0, 0)),
            pl.BlockSpec((3, 3 * cp, cp), lambda b, i: (0, 0, 0)),
        ],
        out_specs=(
            pl.BlockSpec((1, tile_h, w, cp), main_map),
            pl.BlockSpec((1, 1, 1, cp), lambda b, i: (b, i, 0, 0)),
            pl.BlockSpec((1, 1, 1, cp), lambda b, i: (b, i, 0, 0)),
        ),
        out_shape=(
            jax.ShapeDtypeStruct((n, h, w, cp), jnp.bfloat16),
            jax.ShapeDtypeStruct((n, nh, 1, cp), jnp.float32),
            jax.ShapeDtypeStruct((n, nh, 1, cp), jnp.float32),
        ),
        scratch_shapes=[pltpu.VMEM((tile_h + 2, w + 2, cp), jnp.float32)],
        compiler_params=_compiler_params(("parallel", "parallel"), est_vmem),
        cost_estimate=pl.CostEstimate(
            flops=flops, transcendentals=0, bytes_accessed=bytes_accessed),
    )(y, y, y, scale, shift, w_p)


# ---------------------------------------------------------------------------
# Stage 4: BN3 (scale/shift) + identity residual add + ReLU  (elementwise)
# ---------------------------------------------------------------------------
def _bn_add_relu_kernel(y_ref, sc_ref, sh_ref, x_ref, out_ref):
    out_ref[0] = jnp.maximum(
        y_ref[0].astype(jnp.float32) * sc_ref[...] + sh_ref[...] + x_ref[0], 0.0)


def _bn_add_relu(y, scale, shift, x_pad, tile_h):
    n, h, w, cp = y.shape
    nh = h // tile_h
    tile = tile_h * w * cp
    est_vmem = tile * (2 * 2 + 4 * 2 + 4 * 2 + 4)
    return pl.pallas_call(
        _bn_add_relu_kernel,
        grid=(n, nh),
        in_specs=[
            pl.BlockSpec((1, tile_h, w, cp), lambda b, i: (b, i, 0, 0)),
            pl.BlockSpec((1, cp), lambda b, i: (0, 0)),
            pl.BlockSpec((1, cp), lambda b, i: (0, 0)),
            pl.BlockSpec((1, tile_h, w, cp), lambda b, i: (b, i, 0, 0)),
        ],
        out_specs=pl.BlockSpec((1, tile_h, w, cp), lambda b, i: (b, i, 0, 0)),
        out_shape=jax.ShapeDtypeStruct((n, h, w, cp), jnp.float32),
        compiler_params=_compiler_params(("parallel", "parallel"), est_vmem),
        cost_estimate=pl.CostEstimate(
            flops=4 * n * h * w * cp, transcendentals=0,
            bytes_accessed=n * h * w * cp * (2 + 4 + 4)),
    )(y, scale, shift, x_pad)


# ---------------------------------------------------------------------------
# Host-side glue: reduce partial BN stats, fold gamma/beta into scale/shift
# ---------------------------------------------------------------------------
def _bn_scale_shift(s, ss, m, gamma, beta, cp, eps=EPS):
    tot = jnp.sum(s, axis=(0, 1, 2))                       # (cp,)
    tot2 = jnp.sum(ss, axis=(0, 1, 2))
    mean = tot / m
    var = jnp.maximum(tot2 / m - mean * mean, 0.0)         # biased variance
    g = jnp.pad(gamma.astype(jnp.float32), (0, cp - gamma.shape[0]),
                constant_values=1.0)
    b = jnp.pad(beta.astype(jnp.float32), (0, cp - beta.shape[0]))
    scale = g * jax.lax.rsqrt(var + eps)
    shift = b - mean * scale
    return scale.reshape(1, cp), shift.reshape(1, cp)


def trans_bottleneck(x_nchw, w1, w2, w3, gamma, beta, tile_h=None):
    """x_nchw: (N, Cin, H, W).  w1: (Cin, P).  w2, w3: (3, 3, P, P) HWIO.
    gamma, beta: (3, P).  Returns NCHW output matching the PyTorch module
    (stride=1, upsample=None, training-mode BatchNorm)."""
    n, cin, h, w = x_nchw.shape
    planes = w1.shape[1]
    assert w1.shape[0] == cin
    assert cin == planes, "identity residual requires inplanes == planes"

    cp = _round_up(max(cin, planes), LANE)
    if tile_h is None:
        tile_h = _choose_tile_h(h, w, cp)
    assert 1 <= tile_h <= h and h % tile_h == 0
    m = n * h * w

    # NCHW -> NHWC (lane-dense channels) + zero-pad channels to 128 lanes.
    x_nhwc = jnp.transpose(x_nchw, (0, 2, 3, 1)).astype(jnp.float32)
    x_pad = jnp.pad(x_nhwc, ((0, 0), (0, 0), (0, 0), (0, cp - cin)))

    w1_p = jnp.pad(w1, ((0, cp - cin), (0, cp - planes))).astype(jnp.bfloat16)
    # HWIO (3,3,cp,cp) -> K-packed (3, 3*cp, cp): K index = kx*cp + cin.
    w2_p = jnp.pad(w2, ((0, 0), (0, 0), (0, cp - planes),
                        (0, cp - planes))).astype(jnp.bfloat16).reshape(3, 3 * cp, cp)
    w3_p = jnp.pad(w3, ((0, 0), (0, 0), (0, cp - planes),
                        (0, cp - planes))).astype(jnp.bfloat16).reshape(3, 3 * cp, cp)

    # conv1 -> (bn1, relu, conv2) -> (bn2, relu, conv3) -> (bn3, +x, relu)
    y1, s1, ss1 = _conv1x1_stats(x_pad, w1_p, tile_h)
    sc1, sh1 = _bn_scale_shift(s1, ss1, m, gamma[0], beta[0], cp)

    y2, s2, ss2 = _bn_relu_conv3x3(y1, sc1, sh1, w2_p, tile_h)
    sc2, sh2 = _bn_scale_shift(s2, ss2, m, gamma[1], beta[1], cp)

    y3, s3, ss3 = _bn_relu_conv3x3(y2, sc2, sh2, w3_p, tile_h)
    sc3, sh3 = _bn_scale_shift(s3, ss3, m, gamma[2], beta[2], cp)

    out_pad = _bn_add_relu(y3, sc3, sh3, x_pad, tile_h)

    out = out_pad[..., :planes]
    return jnp.transpose(out, (0, 3, 1, 2))


# ---------------------------------------------------------------------------
# Parameter construction (mirrors the PyTorch module's init shapes)
# ---------------------------------------------------------------------------
def _xavier_uniform(key, cout, cin, kh, kw):
    fan_in = cin * kh * kw
    fan_out = cout * kh * kw
    bound = math.sqrt(6.0 / (fan_in + fan_out))
    return jax.random.uniform(key, (cout, cin, kh, kw), jnp.float32, -bound, bound)


def make_params(key, inplanes, planes):
    k1, k2, k3 = jax.random.split(key, 3)
    w1_t = _xavier_uniform(k1, planes, inplanes, 1, 1)   # torch (Cout,Cin,1,1)
    w2_t = _xavier_uniform(k2, planes, planes, 3, 3)     # torch (Cout,Cin,3,3)
    w3_t = _xavier_uniform(k3, planes, planes, 3, 3)
    w1 = jnp.transpose(w1_t[:, :, 0, 0], (1, 0))         # (Cin, P)
    w2 = jnp.transpose(w2_t, (2, 3, 1, 0))               # HWIO (3,3,Cin,Cout)
    w3 = jnp.transpose(w3_t, (2, 3, 1, 0))
    return w1, w2, w3


# ---------------------------------------------------------------------------
# Pure-JAX reference with the same mixed-precision realization as the
# kernels: bf16 matmul operands + bf16 stored intermediates, f32 accumulation,
# f32 BN statistics taken before the storage cast.
# ---------------------------------------------------------------------------
def ref_forward_nchw(x_nchw, w1, w2, w3, gamma, beta, eps=EPS):
    f32 = jnp.float32
    x = jnp.transpose(x_nchw, (0, 2, 3, 1)).astype(f32)

    def bn(y_f32, g, b):
        mean = y_f32.mean(axis=(0, 1, 2))
        var = ((y_f32 - mean) ** 2).mean(axis=(0, 1, 2))
        scale = g * jax.lax.rsqrt(var + eps)
        shift = b - mean * scale
        y = y_f32.astype(jnp.bfloat16).astype(f32)   # bf16 HBM storage
        return y * scale + shift

    def conv3(a_f32, wk):
        return jax.lax.conv_general_dilated(
            a_f32.astype(jnp.bfloat16), wk.astype(jnp.bfloat16), (1, 1), "SAME",
            dimension_numbers=("NHWC", "HWIO", "NHWC"),
            preferred_element_type=f32)

    y1 = jnp.einsum("nhwc,cp->nhwp", x.astype(jnp.bfloat16),
                    w1.astype(jnp.bfloat16), preferred_element_type=f32)
    a1 = jax.nn.relu(bn(y1, gamma[0], beta[0]))
    y2 = conv3(a1, w2)
    a2 = jax.nn.relu(bn(y2, gamma[1], beta[1]))
    y3 = conv3(a2, w3)
    out = jax.nn.relu(bn(y3, gamma[2], beta[2]) + x)
    return jnp.transpose(out, (0, 3, 1, 2))


if __name__ == "__main__":
    key = jax.random.PRNGKey(0)
    kx, kp, kg, kb = jax.random.split(key, 4)

    # small shapes consistent with the module: batch=2, inplanes=planes=8,
    # spatial 16x16 (NCHW input); tile_h=8 exercises the row-tiling/halo path.
    N, C, H, W = 2, 8, 16, 16
    x = jax.random.normal(kx, (N, C, H, W), jnp.float32)
    w1, w2, w3 = make_params(kp, inplanes=C, planes=C)
    # non-trivial gamma/beta to exercise the affine path
    gamma = 1.0 + 0.1 * jax.random.normal(kg, (3, C), jnp.float32)
    beta = 0.1 * jax.random.normal(kb, (3, C), jnp.float32)

    fwd = jax.jit(trans_bottleneck, static_argnames=("tile_h",))
    out = jax.block_until_ready(fwd(x, w1, w2, w3, gamma, beta, tile_h=8))

    ref = ref_forward_nchw(x, w1, w2, w3, gamma, beta)
    assert out.shape == (N, C, H, W)
    err = float(jnp.max(jnp.abs(out - ref)))
    assert err < 1e-2, f"mismatch vs reference: max abs err {err}"

    print("KERNEL_OK")
</pallas_src>

<mosaic_0001>
module attributes {stable_mosaic.version = 11 : i64} {
  func.func @_bn_add_relu_kernel(%arg0: i32, %arg1: i32, %arg2: memref<1x8x16x128xbf16, #tpu.memory_space<vmem>>, %arg3: memref<1x128xf32, #tpu.memory_space<vmem>>, %arg4: memref<1x128xf32, #tpu.memory_space<vmem>>, %arg5: memref<1x8x16x128xf32, #tpu.memory_space<vmem>>, %arg6: memref<1x8x16x128xf32, #tpu.memory_space<vmem>>) attributes {dimension_semantics = [#tpu.dimension_semantics<parallel>, #tpu.dimension_semantics<parallel>], iteration_bounds = array<i64: 2, 2>, scalar_prefetch = 0 : i64, scratch_operands = 0 : i64, tpu.core_type = #tpu.core_type<tc>, window_params = [{transform_indices = @transform_0, window_bounds = array<i64: 1, 8, 16, 128>}, {pipeline_mode = #tpu.pipeline_mode<synchronous>, transform_indices = @transform_1, window_bounds = array<i64: 1, 128>}, {pipeline_mode = #tpu.pipeline_mode<synchronous>, transform_indices = @transform_2, window_bounds = array<i64: 1, 128>}, {transform_indices = @transform_3, window_bounds = array<i64: 1, 8, 16, 128>}, {transform_indices = @transform_4, window_bounds = array<i64: 1, 8, 16, 128>}]} {
    %c0 = arith.constant 0 : index
    %c0_0 = arith.constant 0 : index
    %c0_1 = arith.constant 0 : index
    %c0_2 = arith.constant 0 : index
    %0 = vector.load %arg2[%c0, %c0_0, %c0_1, %c0_2] : memref<1x8x16x128xbf16, #tpu.memory_space<vmem>>, vector<1x8x16x128xbf16>
    %1 = vector.shape_cast %0 : vector<1x8x16x128xbf16> to vector<8x16x128xbf16>
    %2 = arith.extf %1 : vector<8x16x128xbf16> to vector<8x16x128xf32>
    %c0_3 = arith.constant 0 : index
    %c0_4 = arith.constant 0 : index
    %3 = vector.load %arg3[%c0_3, %c0_4] : memref<1x128xf32, #tpu.memory_space<vmem>>, vector<1x128xf32>
    %4 = vector.shape_cast %3 : vector<1x128xf32> to vector<1x1x128xf32>
    %5 = vector.broadcast %4 : vector<1x1x128xf32> to vector<8x16x128xf32>
    %6 = arith.mulf %2, %5 : vector<8x16x128xf32>
    %c0_5 = arith.constant 0 : index
    %c0_6 = arith.constant 0 : index
    %7 = vector.load %arg4[%c0_5, %c0_6] : memref<1x128xf32, #tpu.memory_space<vmem>>, vector<1x128xf32>
    %8 = vector.shape_cast %7 : vector<1x128xf32> to vector<1x1x128xf32>
    %9 = vector.broadcast %8 : vector<1x1x128xf32> to vector<8x16x128xf32>
    %10 = arith.addf %6, %9 : vector<8x16x128xf32>
    %c0_7 = arith.constant 0 : index
    %c0_8 = arith.constant 0 : index
    %c0_9 = arith.constant 0 : index
    %c0_10 = arith.constant 0 : index
    %11 = vector.load %arg5[%c0_7, %c0_8, %c0_9, %c0_10] : memref<1x8x16x128xf32, #tpu.memory_space<vmem>>, vector<1x8x16x128xf32>
    %12 = vector.shape_cast %11 : vector<1x8x16x128xf32> to vector<8x16x128xf32>
    %13 = arith.addf %10, %12 : vector<8x16x128xf32>
    %cst = arith.constant 0.000000e+00 : f32
    %14 = vector.broadcast %cst : f32 to vector<8x16x128xf32>
    %15 = arith.maximumf %13, %14 : vector<8x16x128xf32>
    %c0_11 = arith.constant 0 : index
    %c0_12 = arith.constant 0 : index
    %c0_13 = arith.constant 0 : index
    %c0_14 = arith.constant 0 : index
    %16 = vector.load %arg6[%c0_11, %c0_12, %c0_13, %c0_14] : memref<1x8x16x128xf32, #tpu.memory_space<vmem>>, vector<1x8x16x128xf32>
    %17 = vector.shape_cast %16 : vector<1x8x16x128xf32> to vector<8x16x128xf32>
    %18 = vector.shape_cast %15 : vector<8x16x128xf32> to vector<1x8x16x128xf32>
    tpu.vector_store %arg6[%c0_11, %c0_12, %c0_13, %c0_14], %18 {strides = array<i32>} : memref<1x8x16x128xf32, #tpu.memory_space<vmem>>, vector<1x8x16x128xf32>,
    return
  }
  func.func @transform_0(%arg0: i32, %arg1: i32) -> (i32, i32, i32, i32) {
    %c0_i32 = arith.constant 0 : i32
    %c0_i32_0 = arith.constant 0 : i32
    %c0_i32_1 = arith.constant 0 : i32
    return %arg0, %arg1, %c0_i32, %c0_i32_0 : i32, i32, i32, i32
  }
  func.func @transform_1(%arg0: i32, %arg1: i32) -> (i32, i32) {
    %c0_i32 = arith.constant 0 : i32
    %c0_i32_0 = arith.constant 0 : i32
    %c0_i32_1 = arith.constant 0 : i32
    return %c0_i32, %c0_i32_0 : i32, i32
  }
  func.func @transform_2(%arg0: i32, %arg1: i32) -> (i32, i32) {
    %c0_i32 = arith.constant 0 : i32
    %c0_i32_0 = arith.constant 0 : i32
    %c0_i32_1 = arith.constant 0 : i32
    return %c0_i32, %c0_i32_0 : i32, i32
  }
  func.func @transform_3(%arg0: i32, %arg1: i32) -> (i32, i32, i32, i32) {
    %c0_i32 = arith.constant 0 : i32
    %c0_i32_0 = arith.constant 0 : i32
    %c0_i32_1 = arith.constant 0 : i32
    return %arg0, %arg1, %c0_i32, %c0_i32_0 : i32, i32, i32, i32
  }
  func.func @transform_4(%arg0: i32, %arg1: i32) -> (i32, i32, i32, i32) {
    %c0_i32 = arith.constant 0 : i32
    %c0_i32_0 = arith.constant 0 : i32
    %c0_i32_1 = arith.constant 0 : i32
    return %arg0, %arg1, %c0_i32, %c0_i32_0 : i32, i32, i32, i32
  }
}

module attributes {stable_mosaic.version = 11 : i64} {
  func.func @_conv1x1_stats_kernel(%arg0: i32, %arg1: i32, %arg2: memref<1x8x16x128xf32, #tpu.memory_space<vmem>>, %arg3: memref<128x128xbf16, #tpu.memory_space<vmem>>, %arg4: memref<1x8x16x128xbf16, #tpu.memory_space<vmem>>, %arg5: memref<1x1x1x128xf32, #tpu.memory_space<vmem>>, %arg6: memref<1x1x1x128xf32, #tpu.memory_space<vmem>>) attributes {dimension_semantics = [#tpu.dimension_semantics<parallel>, #tpu.dimension_semantics<parallel>], iteration_bounds = array<i64: 2, 2>, scalar_prefetch = 0 : i64, scratch_operands = 0 : i64, tpu.core_type = #tpu.core_type<tc>, window_params = [{transform_indices = @transform_0, window_bounds = array<i64: 1, 8, 16, 128>}, {pipeline_mode = #tpu.pipeline_mode<synchronous>, transform_indices = @transform_1, window_bounds = array<i64: 128, 128>}, {transform_indices = @transform_2, window_bounds = array<i64: 1, 8, 16, 128>}, {transform_indices = @transform_3, window_bounds = array<i64: 1, 1, 1, 128>}, {transform_indices = @transform_4, window_bounds = array<i64: 1, 1, 1, 128>}]} {
    %c0 = arith.constant 0 : index
    %c0_0 = arith.constant 0 : index
    %c0_1 = arith.constant 0 : index
    %c0_2 = arith.constant 0 : index
    %0 = vector.load %arg2[%c0, %c0_0, %c0_1, %c0_2] : memref<1x8x16x128xf32, #tpu.memory_space<vmem>>, vector<1x8x16x128xf32>
    %1 = vector.shape_cast %0 : vector<1x8x16x128xf32> to vector<8x16x128xf32>
    %2 = vector.shape_cast %1 : vector<8x16x128xf32> to vector<128x128xf32>
    %3 = arith.truncf %2 : vector<128x128xf32> to vector<128x128xbf16>
    %c0_3 = arith.constant 0 : index
    %c0_4 = arith.constant 0 : index
    %4 = vector.load %arg3[%c0_3, %c0_4] : memref<128x128xbf16, #tpu.memory_space<vmem>>, vector<128x128xbf16>
    %cst = arith.constant dense<0.000000e+00> : vector<128x128xf32>
    %5 = tpu.matmul %3, %4, %cst {dimension_numbers = #tpu.dot_dimension_numbers<[1], [0], [0], [1], [0, 0, 1, 1], [], []>} : vector<128x128xbf16>, vector<128x128xbf16>, vector<128x128xf32> -> vector<128x128xf32>
    %cst_5 = arith.constant dense<0.000000e+00> : vector<128xf32>
    %6 = vector.multi_reduction <add>, %5, %cst_5 [0] : vector<128x128xf32> to vector<128xf32>
    %7 = vector.shape_cast %6 : vector<128xf32> to vector<1x128xf32>
    %c0_6 = arith.constant 0 : index
    %c0_7 = arith.constant 0 : index
    %c0_8 = arith.constant 0 : index
    %c0_9 = arith.constant 0 : index
    %8 = vector.load %arg5[%c0_6, %c0_7, %c0_8, %c0_9] : memref<1x1x1x128xf32, #tpu.memory_space<vmem>>, vector<1x1x1x128xf32>
    %9 = vector.shape_cast %8 : vector<1x1x1x128xf32> to vector<1x128xf32>
    %10 = vector.shape_cast %7 : vector<1x128xf32> to vector<1x1x1x128xf32>
    tpu.vector_store %arg5[%c0_6, %c0_7, %c0_8, %c0_9], %10 {strides = array<i32>} : memref<1x1x1x128xf32, #tpu.memory_space<vmem>>, vector<1x1x1x128xf32>,
    %11 = arith.mulf %5, %5 : vector<128x128xf32>
    %cst_10 = arith.constant dense<0.000000e+00> : vector<128xf32>
    %12 = vector.multi_reduction <add>, %11, %cst_10 [0] : vector<128x128xf32> to vector<128xf32>
    %13 = vector.shape_cast %12 : vector<128xf32> to vector<1x128xf32>
    %c0_11 = arith.constant 0 : index
    %c0_12 = arith.constant 0 : index
    %c0_13 = arith.constant 0 : index
    %c0_14 = arith.constant 0 : index
    %14 = vector.load %arg6[%c0_11, %c0_12, %c0_13, %c0_14] : memref<1x1x1x128xf32, #tpu.memory_space<vmem>>, vector<1x1x1x128xf32>
    %15 = vector.shape_cast %14 : vector<1x1x1x128xf32> to vector<1x128xf32>
    %16 = vector.shape_cast %13 : vector<1x128xf32> to vector<1x1x1x128xf32>
    tpu.vector_store %arg6[%c0_11, %c0_12, %c0_13, %c0_14], %16 {strides = array<i32>} : memref<1x1x1x128xf32, #tpu.memory_space<vmem>>, vector<1x1x1x128xf32>,
    %17 = vector.shape_cast %5 : vector<128x128xf32> to vector<8x16x128xf32>
    %18 = arith.truncf %17 : vector<8x16x128xf32> to vector<8x16x128xbf16>
    %c0_15 = arith.constant 0 : index
    %c0_16 = arith.constant 0 : index
    %c0_17 = arith.constant 0 : index
    %c0_18 = arith.constant 0 : index
    %19 = vector.load %arg4[%c0_15, %c0_16, %c0_17, %c0_18] : memref<1x8x16x128xbf16, #tpu.memory_space<vmem>>, vector<1x8x16x128xbf16>
    %20 = vector.shape_cast %19 : vector<1x8x16x128xbf16> to vector<8x16x128xbf16>
    %21 = vector.shape_cast %18 : vector<8x16x128xbf16> to vector<1x8x16x128xbf16>
    tpu.vector_store %arg4[%c0_15, %c0_16, %c0_17, %c0_18], %21 {strides = array<i32>} : memref<1x8x16x128xbf16, #tpu.memory_space<vmem>>, vector<1x8x16x128xbf16>,
    return
  }
  func.func @transform_0(%arg0: i32, %arg1: i32) -> (i32, i32, i32, i32) {
    %c0_i32 = arith.constant 0 : i32
    %c0_i32_0 = arith.constant 0 : i32
    %c0_i32_1 = arith.constant 0 : i32
    return %arg0, %arg1, %c0_i32, %c0_i32_0 : i32, i32, i32, i32
  }
  func.func @transform_1(%arg0: i32, %arg1: i32) -> (i32, i32) {
    %c0_i32 = arith.constant 0 : i32
    %c0_i32_0 = arith.constant 0 : i32
    %c0_i32_1 = arith.constant 0 : i32
    return %c0_i32, %c0_i32_0 : i32, i32
  }
  func.func @transform_2(%arg0: i32, %arg1: i32) -> (i32, i32, i32, i32) {
    %c0_i32 = arith.constant 0 : i32
    %c0_i32_0 = arith.constant 0 : i32
    %c0_i32_1 = arith.constant 0 : i32
    return %arg0, %arg1, %c0_i32, %c0_i32_0 : i32, i32, i32, i32
  }
  func.func @transform_3(%arg0: i32, %arg1: i32) -> (i32, i32, i32, i32) {
    %c0_i32 = arith.constant 0 : i32
    %c0_i32_0 = arith.constant 0 : i32
    %c0_i32_1 = arith.constant 0 : i32
    return %arg0, %arg1, %c0_i32, %c0_i32_0 : i32, i32, i32, i32
  }
  func.func @transform_4(%arg0: i32, %arg1: i32) -> (i32, i32, i32, i32) {
    %c0_i32 = arith.constant 0 : i32
    %c0_i32_0 = arith.constant 0 : i32
    %c0_i32_1 = arith.constant 0 : i32
    return %arg0, %arg1, %c0_i32, %c0_i32_0 : i32, i32, i32, i32
  }
}

module attributes {stable_mosaic.version = 11 : i64} {
  func.func @_bn_relu_conv3x3_kernel(%arg0: i32, %arg1: i32, %arg2: memref<1x8x16x128xbf16, #tpu.memory_space<vmem>>, %arg3: memref<1x1x16x128xbf16, #tpu.memory_space<vmem>>, %arg4: memref<1x1x16x128xbf16, #tpu.memory_space<vmem>>, %arg5: memref<1x128xf32, #tpu.memory_space<vmem>>, %arg6: memref<1x128xf32, #tpu.memory_space<vmem>>, %arg7: memref<3x384x128xbf16, #tpu.memory_space<vmem>>, %arg8: memref<1x8x16x128xbf16, #tpu.memory_space<vmem>>, %arg9: memref<1x1x1x128xf32, #tpu.memory_space<vmem>>, %arg10: memref<1x1x1x128xf32, #tpu.memory_space<vmem>>, %arg11: memref<10x18x128xf32, #tpu.memory_space<vmem>>) attributes {dimension_semantics = [#tpu.dimension_semantics<parallel>, #tpu.dimension_semantics<parallel>], iteration_bounds = array<i64: 2, 2>, scalar_prefetch = 0 : i64, scratch_operands = 1 : i64, tpu.core_type = #tpu.core_type<tc>, window_params = [{transform_indices = @transform_0, window_bounds = array<i64: 1, 8, 16, 128>}, {transform_indices = @transform_1, window_bounds = array<i64: 1, 1, 16, 128>}, {transform_indices = @transform_2, window_bounds = array<i64: 1, 1, 16, 128>}, {pipeline_mode = #tpu.pipeline_mode<synchronous>, transform_indices = @transform_3, window_bounds = array<i64: 1, 128>}, {pipeline_mode = #tpu.pipeline_mode<synchronous>, transform_indices = @transform_4, window_bounds = array<i64: 1, 128>}, {pipeline_mode = #tpu.pipeline_mode<synchronous>, transform_indices = @transform_5, window_bounds = array<i64: 3, 384, 128>}, {transform_indices = @transform_6, window_bounds = array<i64: 1, 8, 16, 128>}, {transform_indices = @transform_7, window_bounds = array<i64: 1, 1, 1, 128>}, {transform_indices = @transform_8, window_bounds = array<i64: 1, 1, 1, 128>}]} {
    %c0 = arith.constant 0 : index
    %c0_0 = arith.constant 0 : index
    %0 = vector.load %arg5[%c0, %c0_0] : memref<1x128xf32, #tpu.memory_space<vmem>>, vector<1x128xf32>
    %c0_1 = arith.constant 0 : index
    %c0_2 = arith.constant 0 : index
    %1 = vector.load %arg6[%c0_1, %c0_2] : memref<1x128xf32, #tpu.memory_space<vmem>>, vector<1x128xf32>
    %cst = arith.constant 0.000000e+00 : f32
    %2 = vector.broadcast %cst : f32 to vector<10x1x128xf32>
    %c0_3 = arith.constant 0 : index
    %c0_4 = arith.constant 0 : index
    %c0_5 = arith.constant 0 : index
    %3 = vector.load %arg11[%c0_3, %c0_4, %c0_5] : memref<10x18x128xf32, #tpu.memory_space<vmem>>, vector<10x1x128xf32>
    tpu.vector_store %arg11[%c0_3, %c0_4, %c0_5], %2 {strides = array<i32>} : memref<10x18x128xf32, #tpu.memory_space<vmem>>, vector<10x1x128xf32>,
    %c0_6 = arith.constant 0 : index
    %c17 = arith.constant 17 : index
    %c0_7 = arith.constant 0 : index
    %4 = vector.load %arg11[%c0_6, %c17, %c0_7] : memref<10x18x128xf32, #tpu.memory_space<vmem>>, vector<10x1x128xf32>
    tpu.vector_store %arg11[%c0_6, %c17, %c0_7], %2 {strides = array<i32>} : memref<10x18x128xf32, #tpu.memory_space<vmem>>, vector<10x1x128xf32>,
    %c0_8 = arith.constant 0 : index
    %c0_9 = arith.constant 0 : index
    %c0_10 = arith.constant 0 : index
    %c0_11 = arith.constant 0 : index
    %5 = vector.load %arg2[%c0_8, %c0_9, %c0_10, %c0_11] : memref<1x8x16x128xbf16, #tpu.memory_space<vmem>>, vector<1x8x16x128xbf16>
    %6 = vector.shape_cast %5 : vector<1x8x16x128xbf16> to vector<8x16x128xbf16>
    %7 = arith.extf %6 : vector<8x16x128xbf16> to vector<8x16x128xf32>
    %8 = vector.shape_cast %0 : vector<1x128xf32> to vector<1x1x128xf32>
    %9 = vector.broadcast %8 : vector<1x1x128xf32> to vector<8x16x128xf32>
    %10 = arith.mulf %7, %9 : vector<8x16x128xf32>
    %11 = vector.shape_cast %1 : vector<1x128xf32> to vector<1x1x128xf32>
    %12 = vector.broadcast %11 : vector<1x1x128xf32> to vector<8x16x128xf32>
    %13 = arith.addf %10, %12 : vector<8x16x128xf32>
    %cst_12 = arith.constant 0.000000e+00 : f32
    %14 = vector.broadcast %cst_12 : f32 to vector<8x16x128xf32>
    %15 = arith.maximumf %13, %14 : vector<8x16x128xf32>
    %c1 = arith.constant 1 : index
    %c1_13 = arith.constant 1 : index
    %c0_14 = arith.constant 0 : index
    %16 = vector.load %arg11[%c1, %c1_13, %c0_14] : memref<10x18x128xf32, #tpu.memory_space<vmem>>, vector<8x16x128xf32>
    tpu.vector_store %arg11[%c1, %c1_13, %c0_14], %15 {strides = array<i32>} : memref<10x18x128xf32, #tpu.memory_space<vmem>>, vector<8x16x128xf32>,
    %c0_i32 = arith.constant 0 : i32
    %17 = arith.cmpi sgt, %arg1, %c0_i32 : i32
    %18 = arith.extui %17 : i1 to i32
    %19 = arith.sitofp %18 : i32 to f32
    %c1_i32 = arith.constant 1 : i32
    %20 = arith.cmpi slt, %arg1, %c1_i32 : i32
    %21 = arith.extui %20 : i1 to i32
    %22 = arith.sitofp %21 : i32 to f32
    %c0_15 = arith.constant 0 : index
    %c0_16 = arith.constant 0 : index
    %c0_17 = arith.constant 0 : index
    %c0_18 = arith.constant 0 : index
    %23 = vector.load %arg3[%c0_15, %c0_16, %c0_17, %c0_18] : memref<1x1x16x128xbf16, #tpu.memory_space<vmem>>, vector<1x1x16x128xbf16>
    %24 = vector.shape_cast %23 : vector<1x1x16x128xbf16> to vector<1x16x128xbf16>
    %25 = arith.extf %24 : vector<1x16x128xbf16> to vector<1x16x128xf32>
    %26 = vector.shape_cast %0 : vector<1x128xf32> to vector<1x1x128xf32>
    %27 = vector.broadcast %26 : vector<1x1x128xf32> to vector<1x16x128xf32>
    %28 = arith.mulf %25, %27 : vector<1x16x128xf32>
    %29 = vector.shape_cast %1 : vector<1x128xf32> to vector<1x1x128xf32>
    %30 = vector.broadcast %29 : vector<1x1x128xf32> to vector<1x16x128xf32>
    %31 = arith.addf %28, %30 : vector<1x16x128xf32>
    %cst_19 = arith.constant 0.000000e+00 : f32
    %32 = vector.broadcast %cst_19 : f32 to vector<1x16x128xf32>
    %33 = arith.maximumf %31, %32 : vector<1x16x128xf32>
    %34 = vector.broadcast %19 : f32 to vector<1x16x128xf32>
    %35 = arith.mulf %33, %34 : vector<1x16x128xf32>
    %c0_20 = arith.constant 0 : index
    %c1_21 = arith.constant 1 : index
    %c0_22 = arith.constant 0 : index
    %36 = vector.load %arg11[%c0_20, %c1_21, %c0_22] : memref<10x18x128xf32, #tpu.memory_space<vmem>>, vector<1x16x128xf32>
    tpu.vector_store %arg11[%c0_20, %c1_21, %c0_22], %35 {strides = array<i32>} : memref<10x18x128xf32, #tpu.memory_space<vmem>>, vector<1x16x128xf32>,
    %c0_23 = arith.constant 0 : index
    %c0_24 = arith.constant 0 : index
    %c0_25 = arith.constant 0 : index
    %c0_26 = arith.constant 0 : index
    %37 = vector.load %arg4[%c0_23, %c0_24, %c0_25, %c0_26] : memref<1x1x16x128xbf16, #tpu.memory_space<vmem>>, vector<1x1x16x128xbf16>
    %38 = vector.shape_cast %37 : vector<1x1x16x128xbf16> to vector<1x16x128xbf16>
    %39 = arith.extf %38 : vector<1x16x128xbf16> to vector<1x16x128xf32>
    %40 = vector.shape_cast %0 : vector<1x128xf32> to vector<1x1x128xf32>
    %41 = vector.broadcast %40 : vector<1x1x128xf32> to vector<1x16x128xf32>
    %42 = arith.mulf %39, %41 : vector<1x16x128xf32>
    %43 = vector.shape_cast %1 : vector<1x128xf32> to vector<1x1x128xf32>
    %44 = vector.broadcast %43 : vector<1x1x128xf32> to vector<1x16x128xf32>
    %45 = arith.addf %42, %44 : vector<1x16x128xf32>
    %cst_27 = arith.constant 0.000000e+00 : f32
    %46 = vector.broadcast %cst_27 : f32 to vector<1x16x128xf32>
    %47 = arith.maximumf %45, %46 : vector<1x16x128xf32>
    %48 = vector.broadcast %22 : f32 to vector<1x16x128xf32>
    %49 = arith.mulf %47, %48 : vector<1x16x128xf32>
    %c9 = arith.constant 9 : index
    %c1_28 = arith.constant 1 : index
    %c0_29 = arith.constant 0 : index
    %50 = vector.load %arg11[%c9, %c1_28, %c0_29] : memref<10x18x128xf32, #tpu.memory_space<vmem>>, vector<1x16x128xf32>
    tpu.vector_store %arg11[%c9, %c1_28, %c0_29], %49 {strides = array<i32>} : memref<10x18x128xf32, #tpu.memory_space<vmem>>, vector<1x16x128xf32>,
    %c0_30 = arith.constant 0 : index
    %c0_31 = arith.constant 0 : index
    %c0_32 = arith.constant 0 : index
    %51 = vector.load %arg11[%c0_30, %c0_31, %c0_32] : memref<10x18x128xf32, #tpu.memory_space<vmem>>, vector<10x16x128xf32>
    %52 = arith.truncf %51 : vector<10x16x128xf32> to vector<10x16x128xbf16>
    %c0_33 = arith.constant 0 : index
    %c1_34 = arith.constant 1 : index
    %c0_35 = arith.constant 0 : index
    %53 = vector.load %arg11[%c0_33, %c1_34, %c0_35] : memref<10x18x128xf32, #tpu.memory_space<vmem>>, vector<10x16x128xf32>
    %54 = arith.truncf %53 : vector<10x16x128xf32> to vector<10x16x128xbf16>
    %c0_36 = arith.constant 0 : index
    %c2 = arith.constant 2 : index
    %c0_37 = arith.constant 0 : index
    %55 = vector.load %arg11[%c0_36, %c2, %c0_37] : memref<10x18x128xf32, #tpu.memory_space<vmem>>, vector<10x16x128xf32>
    %56 = arith.truncf %55 : vector<10x16x128xf32> to vector<10x16x128xbf16>
    %57 = tpu.concatenate %52, %54, %56 in 2 : vector<10x16x128xbf16>, vector<10x16x128xbf16>, vector<10x16x128xbf16> -> vector<10x16x384xbf16>
    %58 = vector.extract_strided_slice %57 {offsets = [0, 0, 0], sizes = [8, 16, 384], strides = [1, 1, 1]} : vector<10x16x384xbf16> to vector<8x16x384xbf16>
    %59 = vector.shape_cast %58 : vector<8x16x384xbf16> to vector<128x384xbf16>
    %c0_38 = arith.constant 0 : index
    %c0_39 = arith.constant 0 : index
    %c0_40 = arith.constant 0 : index
    %60 = vector.load %arg7[%c0_38, %c0_39, %c0_40] : memref<3x384x128xbf16, #tpu.memory_space<vmem>>, vector<1x384x128xbf16>
    %61 = vector.shape_cast %60 : vector<1x384x128xbf16> to vector<384x128xbf16>
    %cst_41 = arith.constant dense<0.000000e+00> : vector<128x128xf32>
    %62 = tpu.matmul %59, %61, %cst_41 {dimension_numbers = #tpu.dot_dimension_numbers<[1], [0], [0], [1], [0, 0, 1, 1], [], []>} : vector<128x384xbf16>, vector<384x128xbf16>, vector<128x128xf32> -> vector<128x128xf32>
    %63 = vector.extract_strided_slice %57 {offsets = [1, 0, 0], sizes = [8, 16, 384], strides = [1, 1, 1]} : vector<10x16x384xbf16> to vector<8x16x384xbf16>
    %64 = vector.shape_cast %63 : vector<8x16x384xbf16> to vector<128x384xbf16>
    %c1_42 = arith.constant 1 : index
    %c0_43 = arith.constant 0 : index
    %c0_44 = arith.constant 0 : index
    %65 = vector.load %arg7[%c1_42, %c0_43, %c0_44] : memref<3x384x128xbf16, #tpu.memory_space<vmem>>, vector<1x384x128xbf16>
    %66 = vector.shape_cast %65 : vector<1x384x128xbf16> to vector<384x128xbf16>
    %cst_45 = arith.constant dense<0.000000e+00> : vector<128x128xf32>
    %67 = tpu.matmul %64, %66, %cst_45 {dimension_numbers = #tpu.dot_dimension_numbers<[1], [0], [0], [1], [0, 0, 1, 1], [], []>} : vector<128x384xbf16>, vector<384x128xbf16>, vector<128x128xf32> -> vector<128x128xf32>
    %68 = arith.addf %62, %67 : vector<128x128xf32>
    %69 = vector.extract_strided_slice %57 {offsets = [2, 0, 0], sizes = [8, 16, 384], strides = [1, 1, 1]} : vector<10x16x384xbf16> to vector<8x16x384xbf16>
    %70 = vector.shape_cast %69 : vector<8x16x384xbf16> to vector<128x384xbf16>
    %c2_46 = arith.constant 2 : index
    %c0_47 = arith.constant 0 : index
    %c0_48 = arith.constant 0 : index
    %71 = vector.load %arg7[%c2_46, %c0_47, %c0_48] : memref<3x384x128xbf16, #tpu.memory_space<vmem>>, vector<1x384x128xbf16>
    %72 = vector.shape_cast %71 : vector<1x384x128xbf16> to vector<384x128xbf16>
    %cst_49 = arith.constant dense<0.000000e+00> : vector<128x128xf32>
    %73 = tpu.matmul %70, %72, %cst_49 {dimension_numbers = #tpu.dot_dimension_numbers<[1], [0], [0], [1], [0, 0, 1, 1], [], []>} : vector<128x384xbf16>, vector<384x128xbf16>, vector<128x128xf32> -> vector<128x128xf32>
    %74 = arith.addf %68, %73 : vector<128x128xf32>
    %cst_50 = arith.constant dense<0.000000e+00> : vector<128xf32>
    %75 = vector.multi_reduction <add>, %74, %cst_50 [0] : vector<128x128xf32> to vector<128xf32>
    %76 = vector.shape_cast %75 : vector<128xf32> to vector<1x128xf32>
    %c0_51 = arith.constant 0 : index
    %c0_52 = arith.constant 0 : index
    %c0_53 = arith.constant 0 : index
    %c0_54 = arith.constant 0 : index
    %77 = vector.load %arg9[%c0_51, %c0_52, %c0_53, %c0_54] : memref<1x1x1x128xf32, #tpu.memory_space<vmem>>, vector<1x1x1x128xf32>
    %78 = vector.shape_cast %77 : vector<1x1x1x128xf32> to vector<1x128xf32>
    %79 = vector.shape_cast %76 : vector<1x128xf32> to vector<1x1x1x128xf32>
    tpu.vector_store %arg9[%c0_51, %c0_52, %c0_53, %c0_54], %79 {strides = array<i32>} : memref<1x1x1x128xf32, #tpu.memory_space<vmem>>, vector<1x1x1x128xf32>,
    %80 = arith.mulf %74, %74 : vector<128x128xf32>
    %cst_55 = arith.constant dense<0.000000e+00> : vector<128xf32>
    %81 = vector.multi_reduction <add>, %80, %cst_55 [0] : vector<128x128xf32> to vector<128xf32>
    %82 = vector.shape_cast %81 : vector<128xf32> to vector<1x128xf32>
    %c0_56 = arith.constant 0 : index
    %c0_57 = arith.constant 0 : index
    %c0_58 = arith.constant 0 : index
    %c0_59 = arith.constant 0 : index
    %83 = vector.load %arg10[%c0_56, %c0_57, %c0_58, %c0_59] : memref<1x1x1x128xf32, #tpu.memory_space<vmem>>, vector<1x1x1x128xf32>
    %84 = vector.shape_cast %83 : vector<1x1x1x128xf32> to vector<1x128xf32>
    %85 = vector.shape_cast %82 : vector<1x128xf32> to vector<1x1x1x128xf32>
    tpu.vector_store %arg10[%c0_56, %c0_57, %c0_58, %c0_59], %85 {strides = array<i32>} : memref<1x1x1x128xf32, #tpu.memory_space<vmem>>, vector<1x1x1x128xf32>,
    %86 = vector.shape_cast %74 : vector<128x128xf32> to vector<8x16x128xf32>
    %87 = arith.truncf %86 : vector<8x16x128xf32> to vector<8x16x128xbf16>
    %c0_60 = arith.constant 0 : index
    %c0_61 = arith.constant 0 : index
    %c0_62 = arith.constant 0 : index
    %c0_63 = arith.constant 0 : index
    %88 = vector.load %arg8[%c0_60, %c0_61, %c0_62, %c0_63] : memref<1x8x16x128xbf16, #tpu.memory_space<vmem>>, vector<1x8x16x128xbf16>
    %89 = vector.shape_cast %88 : vector<1x8x16x128xbf16> to vector<8x16x128xbf16>
    %90 = vector.shape_cast %87 : vector<8x16x128xbf16> to vector<1x8x16x128xbf16>
    tpu.vector_store %arg8[%c0_60, %c0_61, %c0_62, %c0_63], %90 {strides = array<i32>} : memref<1x8x16x128xbf16, #tpu.memory_space<vmem>>, vector<1x8x16x128xbf16>,
    return
  }
  func.func @transform_0(%arg0: i32, %arg1: i32) -> (i32, i32, i32, i32) {
    %c0_i32 = arith.constant 0 : i32
    %c0_i32_0 = arith.constant 0 : i32
    %c0_i32_1 = arith.constant 0 : i32
    return %arg0, %arg1, %c0_i32, %c0_i32_0 : i32, i32, i32, i32
  }
  func.func @transform_1(%arg0: i32, %arg1: i32) -> (i32, i32, i32, i32) {
    %c8_i32 = arith.constant 8 : i32
    %0 = arith.muli %arg1, %c8_i32 : i32
    %c1_i32 = arith.constant 1 : i32
    %1 = arith.subi %0, %c1_i32 : i32
    %c0_i32 = arith.constant 0 : i32
    %2 = arith.maxsi %1, %c0_i32 : i32
    %c0_i32_0 = arith.constant 0 : i32
    %c0_i32_1 = arith.constant 0 : i32
    %c0_i32_2 = arith.constant 0 : i32
    return %arg0, %2, %c0_i32_0, %c0_i32_1 : i32, i32, i32, i32
  }
  func.func @transform_2(%arg0: i32, %arg1: i32) -> (i32, i32, i32, i32) {
    %c1_i32 = arith.constant 1 : i32
    %0 = arith.addi %arg1, %c1_i32 : i32
    %c8_i32 = arith.constant 8 : i32
    %1 = arith.muli %0, %c8_i32 : i32
    %c15_i32 = arith.constant 15 : i32
    %2 = arith.minsi %1, %c15_i32 : i32
    %c0_i32 = arith.constant 0 : i32
    %c0_i32_0 = arith.constant 0 : i32
    %c0_i32_1 = arith.constant 0 : i32
    return %arg0, %2, %c0_i32, %c0_i32_0 : i32, i32, i32, i32
  }
  func.func @transform_3(%arg0: i32, %arg1: i32) -> (i32, i32) {
    %c0_i32 = arith.constant 0 : i32
    %c0_i32_0 = arith.constant 0 : i32
    %c0_i32_1 = arith.constant 0 : i32
    return %c0_i32, %c0_i32_0 : i32, i32
  }
  func.func @transform_4(%arg0: i32, %arg1: i32) -> (i32, i32) {
    %c0_i32 = arith.constant 0 : i32
    %c0_i32_0 = arith.constant 0 : i32
    %c0_i32_1 = arith.constant 0 : i32
    return %c0_i32, %c0_i32_0 : i32, i32
  }
  func.func @transform_5(%arg0: i32, %arg1: i32) -> (i32, i32, i32) {
    %c0_i32 = arith.constant 0 : i32
    %c0_i32_0 = arith.constant 0 : i32
    %c0_i32_1 = arith.constant 0 : i32
    %c0_i32_2 = arith.constant 0 : i32
    return %c0_i32, %c0_i32_0, %c0_i32_1 : i32, i32, i32
  }
  func.func @transform_6(%arg0: i32, %arg1: i32) -> (i32, i32, i32, i32) {
    %c0_i32 = arith.constant 0 : i32
    %c0_i32_0 = arith.constant 0 : i32
    %c0_i32_1 = arith.constant 0 : i32
    return %arg0, %arg1, %c0_i32, %c0_i32_0 : i32, i32, i32, i32
  }
  func.func @transform_7(%arg0: i32, %arg1: i32) -> (i32, i32, i32, i32) {
    %c0_i32 = arith.constant 0 : i32
    %c0_i32_0 = arith.constant 0 : i32
    %c0_i32_1 = arith.constant 0 : i32
    return %arg0, %arg1, %c0_i32, %c0_i32_0 : i32, i32, i32, i32
  }
  func.func @transform_8(%arg0: i32, %arg1: i32) -> (i32, i32, i32, i32) {
    %c0_i32 = arith.constant 0 : i32
    %c0_i32_0 = arith.constant 0 : i32
    %c0_i32_1 = arith.constant 0 : i32
    return %arg0, %arg1, %c0_i32, %c0_i32_0 : i32, i32, i32, i32
  }
}

</mosaic_0001>

<llo_original>
// kernel: trans_bottleneck.7
$region0: #{trans_bottleneck.7}
  #allocation0 [shape = 'u32[]', space=smem, size = 0x4, offset = 0x4, fixed_abs, tag = 'smem constant byte address 0x4 - core index']
  #allocation1 [shape = 'u32[144,128]{1,0:T(1,128)}', space=vmem, size = 0x12000, scoped, tag = 'internal scratch']
  %s0 = inlined_call_operand.vmem [shape: bf16[2,16,16,128], index: 0, kind: input, shape index: {}]
  %s1 = inlined_call_operand.vmem [shape: f32[1,128], index: 1, kind: input, shape index: {}]
  %s2 = inlined_call_operand.vmem [shape: f32[1,128], index: 2, kind: input, shape index: {}]
  %s3 = inlined_call_operand.vmem [shape: f32[2,16,16,128], index: 3, kind: input, shape index: {}]
  %s4 = inlined_call_operand.vmem [shape: f32[2,16,16,128], index: 4, kind: output, shape index: {}]
  %s5 = sld [smem:[#allocation0]]
  $region49: #{trans_bottleneck.7} parent=0
    _
  %s7 = ssub.s32 1, %s5
  %s8 = scalar_select 0, %s7, %s5
  loop: start=0, step=1, limit=6
  $region2: #{trans_bottleneck.7} parent=0 // loop_pre_header
    _
  $region3: #{trans_bottleneck.7} parent=0 // loop_header
    %s10 = sphi 0, %s14
    %p11 = scmp.ge.s32.totalorder %s10, 6
    %s17 = sphi 0, %s29
    %s18 = sphi 0, %s25
    %s19 = sphi 0, %s17
    %s20 = sphi 0, %s18
    %s21 = sphi 0, %s19
    %s22 = sphi 0, %s20
    %s34 = sphi 0, %s36
    %s37 = sphi 0, %s34
    %s38 = sphi 0, %s37
    %s54 = sphi 0, %s38
    %s58 = sphi 0, %s58
    %s60 = sphi 0, %s58
    %s61 = sphi 0, %s60
    %s75 = sphi 0, %s61
    %s79 = sphi 0, %s79
    %s81 = sphi 0, %s79
    %s82 = sphi 0, %s81
    %s96 = sphi 0, %s82
    %s104 = sphi 0, %s106
    %s107 = sphi 0, %s104
    %s108 = sphi 0, %s107
    %s124 = sphi 0, %s108
    %s132 = sphi 0, %s134
    %s135 = sphi 0, %s132
    %s136 = sphi 0, %s135
    %s152 = sphi 0, %s136
  $region4: #{trans_bottleneck.7} parent=0 // loop_header_branch
    %13 = sbr.rel (%p11) target = $region8
  $region5: #{trans_bottleneck.7} parent=0 // loop_body
    %s15 = ssub.s32 %s10, 1
    %s16 = ssub.s32 %s10, 2
    %s23 = sadd.s32 1, %s18
    %p24 = scmp.ge.s32.totalorder %s23, 2
    %s25 = scalar_select %p24, 0, %s23
    %s26 = sadd.s32 1, %s17
    %s27 = scalar_select %p24, %s26, %s17
    %p28 = scmp.ge.s32.totalorder %s27, 2
    %s29 = scalar_select %p28, 0, %s27
    %s30 = ssub.s32 %s17, %s29
    %s31 = ssub.s32 %s18, %s25
    %s32 = sor.u32 %s30, %s31
    %p33 = scmp.eq.s32.totalorder %s32, 0
    %s35 = sadd.s32 %s34, 1
    %s36 = scalar_select %p33, %s34, %s35
    %p39 = pneg %p33
    %p40 = scmp.eq.s32.totalorder %s10, 3
    %p41 = por %p39, %p40
    %p42 = scmp.ne.s32.totalorder %s34, %s37
    %p43 = scmp.eq.s32.totalorder %s10, 0
    %p44 = por %p42, %p43
    %p45 = scmp.ne.s32.totalorder %s34, %s37
    %p46 = scmp.eq.s32.totalorder %s15, 3
    %p47 = por %p45, %p46
    %p48 = scmp.ne.s32.totalorder %s37, %s38
    %p49 = scmp.eq.s32.totalorder %s15, 0
    %p50 = por %p48, %p49
    %p51 = scmp.ne.s32.totalorder %s37, %s38
    %p52 = scmp.eq.s32.totalorder %s16, 3
    %p53 = por %p51, %p52
    %p55 = scmp.ne.s32.totalorder %s38, %s54
    %p56 = scmp.eq.s32.totalorder %s16, 0
    %p57 = por %p55, %p56
    %s59 = sadd.s32 %s58, 1
    %p62 = scmp.eq.s32.totalorder %s10, 3
    %p63 = scmp.ne.s32.totalorder %s58, %s60
    %p64 = scmp.eq.s32.totalorder %s10, 0
    %p65 = por %p63, %p64
    %p66 = scmp.ne.s32.totalorder %s58, %s60
    %p67 = scmp.eq.s32.totalorder %s15, 3
    %p68 = por %p66, %p67
    %p69 = scmp.ne.s32.totalorder %s60, %s61
    %p70 = scmp.eq.s32.totalorder %s15, 0
    %p71 = por %p69, %p70
    %p72 = scmp.ne.s32.totalorder %s60, %s61
    %p73 = scmp.eq.s32.totalorder %s16, 3
    %p74 = por %p72, %p73
    %p76 = scmp.ne.s32.totalorder %s61, %s75
    %p77 = scmp.eq.s32.totalorder %s16, 0
    %p78 = por %p76, %p77
    %s80 = sadd.s32 %s79, 1
    %p83 = scmp.eq.s32.totalorder %s10, 3
    %p84 = scmp.ne.s32.totalorder %s79, %s81
    %p85 = scmp.eq.s32.totalorder %s10, 0
    %p86 = por %p84, %p85
    %p87 = scmp.ne.s32.totalorder %s79, %s81
    %p88 = scmp.eq.s32.totalorder %s15, 3
    %p89 = por %p87, %p88
    %p90 = scmp.ne.s32.totalorder %s81, %s82
    %p91 = scmp.eq.s32.totalorder %s15, 0
    %p92 = por %p90, %p91
    %p93 = scmp.ne.s32.totalorder %s81, %s82
    %p94 = scmp.eq.s32.totalorder %s16, 3
    %p95 = por %p93, %p94
    %p97 = scmp.ne.s32.totalorder %s82, %s96
    %p98 = scmp.eq.s32.totalorder %s16, 0
    %p99 = por %p97, %p98
    %s100 = ssub.s32 %s17, %s29
    %s101 = ssub.s32 %s18, %s25
    %s102 = sor.u32 %s100, %s101
    %p103 = scmp.eq.s32.totalorder %s102, 0
    %s105 = sadd.s32 %s104, 1
    %s106 = scalar_select %p103, %s104, %s105
    %p109 = pneg %p103
    %p110 = scmp.eq.s32.totalorder %s10, 3
    %p111 = por %p109, %p110
    %p112 = scmp.ne.s32.totalorder %s104, %s107
    %p113 = scmp.eq.s32.totalorder %s10, 0
    %p114 = por %p112, %p113
    %p115 = scmp.ne.s32.totalorder %s104, %s107
    %p116 = scmp.eq.s32.totalorder %s15, 3
    %p117 = por %p115, %p116
    %p118 = scmp.ne.s32.totalorder %s107, %s108
    %p119 = scmp.eq.s32.totalorder %s15, 0
    %p120 = por %p118, %p119
    %p121 = scmp.ne.s32.totalorder %s107, %s108
    %p122 = scmp.eq.s32.totalorder %s16, 3
    %p123 = por %p121, %p122
    %p125 = scmp.ne.s32.totalorder %s108, %s124
    %p126 = scmp.eq.s32.totalorder %s16, 0
    %p127 = por %p125, %p126
    %s128 = ssub.s32 %s17, %s29
    %s129 = ssub.s32 %s18, %s25
    %s130 = sor.u32 %s128, %s129
    %p131 = scmp.eq.s32.totalorder %s130, 0
    %s133 = sadd.s32 %s132, 1
    %s134 = scalar_select %p131, %s132, %s133
    %p137 = pneg %p131
    %p138 = scmp.eq.s32.totalorder %s10, 3
    %p139 = por %p137, %p138
    %p140 = scmp.ne.s32.totalorder %s132, %s135
    %p141 = scmp.eq.s32.totalorder %s10, 0
    %p142 = por %p140, %p141
    %p143 = scmp.ne.s32.totalorder %s132, %s135
    %p144 = scmp.eq.s32.totalorder %s15, 3
    %p145 = por %p143, %p144
    %p146 = scmp.ne.s32.totalorder %s135, %s136
    %p147 = scmp.eq.s32.totalorder %s15, 0
    %p148 = por %p146, %p147
    %p149 = scmp.ne.s32.totalorder %s135, %s136
    %p150 = scmp.eq.s32.totalorder %s16, 3
    %p151 = por %p149, %p150
    %p153 = scmp.ne.s32.totalorder %s136, %s152
    %p154 = scmp.eq.s32.totalorder %s16, 0
    %p155 = por %p153, %p154
    %p156 = scmp.le.s32.totalorder 1, %s10
    %p157 = scmp.lt.s32.totalorder %s10, 5
    %p158 = pnand %p156, %p157
    %p159 = pneg %p158
    // Predicated region
    $region9: #{trans_bottleneck.7} parent=5 // pred_check
      _
    $region10: #{trans_bottleneck.7} parent=5 // pred_check_branch
      %161 = sbr.rel (%p158) target = $region12
    $region11: #{trans_bottleneck.7} parent=5 // pred_region
      %s162 = ssub.s32 %s10, 1
      // Predicated region
      $region13: #{trans_bottleneck.7} parent=11 // pred_check
        %p163 = pneg %p71
      $region14: #{trans_bottleneck.7} parent=11 // pred_check_branch
        %165 = sbr.rel (%p163) target = $region16
      $region15: #{trans_bottleneck.7} parent=11 // pred_region
        _
      $region16: #{trans_bottleneck.7} parent=11 // pred_fallthru
        _
      // Predicated region
      $region17: #{trans_bottleneck.7} parent=11 // pred_check
        %p166 = pneg %p92
      $region18: #{trans_bottleneck.7} parent=11 // pred_check_branch
        %168 = sbr.rel (%p166) target = $region20
      $region19: #{trans_bottleneck.7} parent=11 // pred_region
        _
      $region20: #{trans_bottleneck.7} parent=11 // pred_fallthru
        _
    $region12: #{trans_bottleneck.7} parent=5 // pred_fallthru
      _
    %p169 = scmp.lt.s32.totalorder %s10, 4
    // Predicated region
    $region21: #{trans_bottleneck.7} parent=5 // pred_check
      %p170 = pneg %p169
    $region22: #{trans_bottleneck.7} parent=5 // pred_check_branch
      %172 = sbr.rel (%p170) target = $region24
    $region23: #{trans_bottleneck.7} parent=5 // pred_region
      // Predicated region
      $region25: #{trans_bottleneck.7} parent=23 // pred_check
        %p173 = pneg %p44
      $region26: #{trans_bottleneck.7} parent=23 // pred_check_branch
        %175 = sbr.rel (%p173) target = $region28
      $region27: #{trans_bottleneck.7} parent=23 // pred_region
        %s176 = smul.u32 8, %s18
        %p177 = scmp.lt.s32.totalorder %s17, 1
        %s178 = scalar_select %p177, %s17, 1
        %p179 = scmp.lt.s32.totalorder %s176, 15
        %s180 = scalar_select %p179, %s176, 15
        %s181 = smul.addr %s180, 2
        %s182 = smul.addr %s178, 32
        %s183 = sadd.s32 %s181, %s182
        %s184 = smul.addr %s183, 4
        %s185 = scalar_lea.vmem %s0, %s184
        %s186 = smul.u32 8, %s18
      $region28: #{trans_bottleneck.7} parent=23 // pred_fallthru
        _
      // Predicated region
      $region29: #{trans_bottleneck.7} parent=23 // pred_check
        %p187 = pneg %p114
      $region30: #{trans_bottleneck.7} parent=23 // pred_check_branch
        %189 = sbr.rel (%p187) target = $region32
      $region31: #{trans_bottleneck.7} parent=23 // pred_region
        %s190 = smul.u32 8, %s18
        %p191 = scmp.lt.s32.totalorder %s17, 1
        %s192 = scalar_select %p191, %s17, 1
        %p193 = scmp.lt.s32.totalorder %s190, 15
        %s194 = scalar_select %p193, %s190, 15
        %s195 = smul.addr %s194, 2
        %s196 = smul.addr %s192, 32
        %s197 = sadd.s32 %s195, %s196
        %s198 = smul.addr %s197, 8
        %s199 = scalar_lea.vmem %s3, %s198
        %s200 = smul.u32 8, %s18
      $region32: #{trans_bottleneck.7} parent=23 // pred_fallthru
        _
    $region24: #{trans_bottleneck.7} parent=5 // pred_fallthru
      _
    %p201 = scmp.le.s32.totalorder 1, %s10
    %p202 = scmp.lt.s32.totalorder %s10, 5
    %p203 = pnand %p201, %p202
    %p204 = pneg %p203
    // Predicated region
    $region33: #{trans_bottleneck.7} parent=5 // pred_check
      _
    $region34: #{trans_bottleneck.7} parent=5 // pred_check_branch
      %206 = sbr.rel (%p203) target = $region36
    $region35: #{trans_bottleneck.7} parent=5 // pred_region
      %s207 = ssub.s32 %s10, 1
      %s208 = smul.u32 8, %s20
      %p209 = scmp.lt.s32.totalorder %s19, 1
      %s210 = scalar_select %p209, %s19, 1
      %p211 = scmp.lt.s32.totalorder %s208, 15
      %s212 = scalar_select %p211, %s208, 15
      %s213 = smul.addr %s212, 2
      %s214 = smul.addr %s210, 32
      %s215 = sadd.s32 %s213, %s214
      %s216 = smul.addr %s215, 4
      %s217 = scalar_lea.vmem %s0, %s216
      %p218 = pneg %p50
      %p219 = pneg %p47
      %p220 = pneg %p71
      %p221 = pneg %p68
      %p222 = pneg %p92
      %p223 = pneg %p89
      %s224 = smul.u32 8, %s20
      %p225 = scmp.lt.s32.totalorder %s19, 1
      %s226 = scalar_select %p225, %s19, 1
      %p227 = scmp.lt.s32.totalorder %s224, 15
      %s228 = scalar_select %p227, %s224, 15
      %s229 = smul.addr %s228, 2
      %s230 = smul.addr %s226, 32
      %s231 = sadd.s32 %s229, %s230
      %s232 = smul.addr %s231, 8
      %s233 = scalar_lea.vmem %s3, %s232
      %p234 = pneg %p120
      %p235 = pneg %p117
      %p236 = pneg %p148
      %p237 = pneg %p145
      %s238 = smul.u32 8, %s20
      %p239 = scmp.lt.s32.totalorder %s19, 1
      %s240 = scalar_select %p239, %s19, 1
      %p241 = scmp.lt.s32.totalorder %s238, 15
      %s242 = scalar_select %p241, %s238, 15
      %s243 = smul.addr %s242, 2
      %s244 = smul.addr %s240, 32
      %s245 = sadd.s32 %s243, %s244
      %s246 = smul.addr %s245, 8
      %s247 = scalar_lea.vmem %s4, %s246
      %s248 = smul.u32 8, %s20
      %p249 = scmp.lt.s32.totalorder %s19, 1
      %s250 = scalar_select %p249, %s19, 1
      %p251 = scmp.lt.s32.totalorder %s248, 15
      %s252 = scalar_select %p251, %s248, 15
      %s253 = smul.addr %s252, 2
      %s254 = smul.addr %s250, 32
      %s255 = sadd.s32 %s253, %s254
      %s256 = smul.addr %s255, 4
      %s257 = scalar_lea.vmem %s0, %s256
      %s258 = smul.u32 8, %s20
      %s259 = smul.u32 8, %s20
      %p260 = scmp.lt.s32.totalorder %s19, 1
      %s261 = scalar_select %p260, %s19, 1
      %p262 = scmp.lt.s32.totalorder %s259, 15
      %s263 = scalar_select %p262, %s259, 15
      %s264 = smul.addr %s263, 2
      %s265 = smul.addr %s261, 32
      %s266 = sadd.s32 %s264, %s265
      %s267 = smul.addr %s266, 8
      %s268 = scalar_lea.vmem %s3, %s267
      %s269 = smul.u32 8, %s20
      %s270 = smul.u32 8, %s20
      %p271 = scmp.lt.s32.totalorder %s19, 1
      %s272 = scalar_select %p271, %s19, 1
      %p273 = scmp.lt.s32.totalorder %s270, 15
      %s274 = scalar_select %p273, %s270, 15
      %s275 = smul.addr %s274, 2
      %s276 = smul.addr %s272, 32
      %s277 = sadd.s32 %s275, %s276
      %s278 = smul.addr %s277, 8
      %s279 = scalar_lea.vmem %s4, %s278
      %s280 = smul.u32 8, %s20
      %v281 = vld [vmem:[%s257] sm:$0xf]
      %v282 = vld [vmem:[%s257 + $0x4] sm:$0xf]
      %v283 = vld [vmem:[%s257 + $0x8] sm:$0xf]
      %v284 = vld [vmem:[%s257 + $0xc] sm:$0xf]
      %v285 = vld [vmem:[%s257 + $0x10] sm:$0xf]
      %v286 = vld [vmem:[%s257 + $0x14] sm:$0xf]
      %v287 = vld [vmem:[%s257 + $0x18] sm:$0xf]
      %v288 = vld [vmem:[%s257 + $0x1c] sm:$0xf]
      %v289 = vld [vmem:[%s257 + $0x20] sm:$0xf]
      %v290 = vld [vmem:[%s257 + $0x24] sm:$0xf]
      %v291 = vld [vmem:[%s257 + $0x28] sm:$0xf]
      %v292 = vld [vmem:[%s257 + $0x2c] sm:$0xf]
      %v293 = vld [vmem:[%s257 + $0x30] sm:$0xf]
      %v294 = vld [vmem:[%s257 + $0x34] sm:$0xf]
      %v295 = vld [vmem:[%s257 + $0x38] sm:$0xf]
      %v296 = vld [vmem:[%s257 + $0x3c] sm:$0xf]
      %v297 = vunpack.c.l.bf16 %v281
      %v298 = vunpack.c.l.bf16 %v282
      %v299 = vunpack.c.l.bf16 %v283
      %v300 = vunpack.c.l.bf16 %v284
      %v301 = vunpack.c.l.bf16 %v285
      %v302 = vunpack.c.l.bf16 %v286
      %v303 = vunpack.c.l.bf16 %v287
      %v304 = vunpack.c.l.bf16 %v288
      %v305 = vunpack.c.l.bf16 %v289
      %v306 = vunpack.c.l.bf16 %v290
      %v307 = vunpack.c.l.bf16 %v291
      %v308 = vunpack.c.l.bf16 %v292
      %v309 = vunpack.c.l.bf16 %v293
      %v310 = vunpack.c.l.bf16 %v294
      %v311 = vunpack.c.l.bf16 %v295
      %v312 = vunpack.c.l.bf16 %v296
      %v313 = vld [vmem:[%s1] sm:$0x1]
      %v315 = vlaneseq
      %v316 = vshrl.u32 %v315, 7
      %v317 = vsub.s32 0, %v316
      %v318 = vrot.slane %v313, %v317
      %v320 = vmul.f32 %v297, %v318
      %v321 = vmul.f32 %v298, %v318
      %v322 = vmul.f32 %v299, %v318
      %v323 = vmul.f32 %v300, %v318
      %v324 = vmul.f32 %v301, %v318
      %v325 = vmul.f32 %v302, %v318
      %v326 = vmul.f32 %v303, %v318
      %v327 = vmul.f32 %v304, %v318
      %v328 = vmul.f32 %v305, %v318
      %v329 = vmul.f32 %v306, %v318
      %v330 = vmul.f32 %v307, %v318
      %v331 = vmul.f32 %v308, %v318
      %v332 = vmul.f32 %v309, %v318
      %v333 = vmul.f32 %v310, %v318
      %v334 = vmul.f32 %v311, %v318
      %v335 = vmul.f32 %v312, %v318
      %v336 = vld [vmem:[%s2] sm:$0x1]
      %v338 = vlaneseq
      %v339 = vshrl.u32 %v338, 7
      %v340 = vsub.s32 0, %v339
      %v341 = vrot.slane %v336, %v340
      %v343 = vadd.f32 %v320, %v341
      %v344 = vadd.f32 %v321, %v341
      %v345 = vadd.f32 %v322, %v341
      %v346 = vadd.f32 %v323, %v341
      %v347 = vadd.f32 %v324, %v341
      %v348 = vadd.f32 %v325, %v341
      %v349 = vadd.f32 %v326, %v341
      %v350 = vadd.f32 %v327, %v341
      %v351 = vadd.f32 %v328, %v341
      %v352 = vadd.f32 %v329, %v341
      %v353 = vadd.f32 %v330, %v341
      %v354 = vadd.f32 %v331, %v341
      %v355 = vadd.f32 %v332, %v341
      %v356 = vadd.f32 %v333, %v341
      %v357 = vadd.f32 %v334, %v341
      %v358 = vadd.f32 %v335, %v341
      %v359 = vld [vmem:[%s268] sm:$0xff]
      %v360 = vld [vmem:[%s268 + $0x8] sm:$0xff]
      %v361 = vld [vmem:[%s268 + $0x10] sm:$0xff]
      %v362 = vld [vmem:[%s268 + $0x18] sm:$0xff]
      %v363 = vld [vmem:[%s268 + $0x20] sm:$0xff]
      %v364 = vld [vmem:[%s268 + $0x28] sm:$0xff]
      %v365 = vld [vmem:[%s268 + $0x30] sm:$0xff]
      %v366 = vld [vmem:[%s268 + $0x38] sm:$0xff]
      %v367 = vld [vmem:[%s268 + $0x40] sm:$0xff]
      %v368 = vld [vmem:[%s268 + $0x48] sm:$0xff]
      %v369 = vld [vmem:[%s268 + $0x50] sm:$0xff]
      %v370 = vld [vmem:[%s268 + $0x58] sm:$0xff]
      %v371 = vld [vmem:[%s268 + $0x60] sm:$0xff]
      %v372 = vld [vmem:[%s268 + $0x68] sm:$0xff]
      %v373 = vld [vmem:[%s268 + $0x70] sm:$0xff]
      %v374 = vld [vmem:[%s268 + $0x78] sm:$0xff]
      %v375 = vadd.f32 %v343, %v359
      %v376 = vadd.f32 %v344, %v360
      %v377 = vadd.f32 %v345, %v361
      %v378 = vadd.f32 %v346, %v362
      %v379 = vadd.f32 %v347, %v363
      %v380 = vadd.f32 %v348, %v364
      %v381 = vadd.f32 %v349, %v365
      %v382 = vadd.f32 %v350, %v366
      %v383 = vadd.f32 %v351, %v367
      %v384 = vadd.f32 %v352, %v368
      %v385 = vadd.f32 %v353, %v369
      %v386 = vadd.f32 %v354, %v370
      %v387 = vadd.f32 %v355, %v371
      %v388 = vadd.f32 %v356, %v372
      %v389 = vadd.f32 %v357, %v373
      %v390 = vadd.f32 %v358, %v374
      %v391 = vmax.f32 %v375, 0.0
      %v392 = vmax.f32 %v376, 0.0
      %v393 = vmax.f32 %v377, 0.0
      %v394 = vmax.f32 %v378, 0.0
      %v395 = vmax.f32 %v379, 0.0
      %v396 = vmax.f32 %v380, 0.0
      %v397 = vmax.f32 %v381, 0.0
      %v398 = vmax.f32 %v382, 0.0
      %v399 = vmax.f32 %v383, 0.0
      %v400 = vmax.f32 %v384, 0.0
      %v401 = vmax.f32 %v385, 0.0
      %v402 = vmax.f32 %v386, 0.0
      %v403 = vmax.f32 %v387, 0.0
      %v404 = vmax.f32 %v388, 0.0
      %v405 = vmax.f32 %v389, 0.0
      %v406 = vmax.f32 %v390, 0.0
      %407 = vst [vmem:[%s279] sm:$0xff] %v391
      %408 = vst [vmem:[%s279 + $0x8] sm:$0xff] %v392
      %409 = vst [vmem:[%s279 + $0x10] sm:$0xff] %v393
      %410 = vst [vmem:[%s279 + $0x18] sm:$0xff] %v394
      %411 = vst [vmem:[%s279 + $0x20] sm:$0xff] %v395
      %412 = vst [vmem:[%s279 + $0x28] sm:$0xff] %v396
      %413 = vst [vmem:[%s279 + $0x30] sm:$0xff] %v397
      %414 = vst [vmem:[%s279 + $0x38] sm:$0xff] %v398
      %415 = vst [vmem:[%s279 + $0x40] sm:$0xff] %v399
      %416 = vst [vmem:[%s279 + $0x48] sm:$0xff] %v400
      %417 = vst [vmem:[%s279 + $0x50] sm:$0xff] %v401
      %418 = vst [vmem:[%s279 + $0x58] sm:$0xff] %v402
      %419 = vst [vmem:[%s279 + $0x60] sm:$0xff] %v403
      %420 = vst [vmem:[%s279 + $0x68] sm:$0xff] %v404
      %421 = vst [vmem:[%s279 + $0x70] sm:$0xff] %v405
      %422 = vst [vmem:[%s279 + $0x78] sm:$0xff] %v406
      %s423 = smul.u32 8, %s20
      %p424 = scmp.lt.s32.totalorder %s19, 1
      %s425 = scalar_select %p424, %s19, 1
      %p426 = scmp.lt.s32.totalorder %s423, 15
      %s427 = scalar_select %p426, %s423, 15
      %s428 = smul.addr %s427, 2
      %s429 = smul.addr %s425, 32
      %s430 = sadd.s32 %s428, %s429
      %s431 = smul.addr %s430, 8
      %s432 = scalar_lea.vmem %s4, %s431
      // Predicated region
      $region37: #{trans_bottleneck.7} parent=35 // pred_check
        %p433 = pneg %p145
      $region38: #{trans_bottleneck.7} parent=35 // pred_check_branch
        %435 = sbr.rel (%p433) target = $region40
      $region39: #{trans_bottleneck.7} parent=35 // pred_region
        %s436 = smul.u32 8, %s20
      $region40: #{trans_bottleneck.7} parent=35 // pred_fallthru
        _
    $region36: #{trans_bottleneck.7} parent=5 // pred_fallthru
      _
    %p437 = scmp.le.s32.totalorder 2, %s10
    // Predicated region
    $region41: #{trans_bottleneck.7} parent=5 // pred_check
      %p438 = pneg %p437
    $region42: #{trans_bottleneck.7} parent=5 // pred_check_branch
      %440 = sbr.rel (%p438) target = $region44
    $region43: #{trans_bottleneck.7} parent=5 // pred_region
      %s441 = ssub.s32 %s10, 2
      // Predicated region
      $region45: #{trans_bottleneck.7} parent=43 // pred_check
        %p442 = pneg %p151
      $region46: #{trans_bottleneck.7} parent=43 // pred_check_branch
        %444 = sbr.rel (%p442) target = $region48
      $region47: #{trans_bottleneck.7} parent=43 // pred_region
        %s445 = smul.u32 8, %s22
        %p446 = scmp.lt.s32.totalorder %s21, 1
        %s447 = scalar_select %p446, %s21, 1
        %p448 = scmp.lt.s32.totalorder %s445, 15
        %s449 = scalar_select %p448, %s445, 15
        %s450 = smul.addr %s449, 2
        %s451 = smul.addr %s447, 32
        %s452 = sadd.s32 %s450, %s451
        %s453 = smul.addr %s452, 8
        %s454 = scalar_lea.vmem %s4, %s453
      $region48: #{trans_bottleneck.7} parent=43 // pred_fallthru
        _
    $region44: #{trans_bottleneck.7} parent=5 // pred_fallthru
      _
  $region6: #{trans_bottleneck.7} parent=0 // loop_footer
    %s14 = sadd.s32 1, %s10
  $region7: #{trans_bottleneck.7} parent=0 // loop_footer_branch
    %9 = sbr.rel target = $region3
  $region8: #{trans_bottleneck.7} parent=0 // loop_exit
    _

// kernel: trans_bottleneck.4
$region0: #{trans_bottleneck.4}
  #allocation0 [shape = 'u32[]', space=smem, size = 0x4, offset = 0x4, fixed_abs, tag = 'smem constant byte address 0x4 - core index']
  #allocation1 [shape = 'u32[144,128]{1,0:T(1,128)}', space=vmem, size = 0x12000, scoped, tag = 'internal scratch']
  %s0 = inlined_call_operand.vmem [shape: f32[2,16,16,128], index: 0, kind: input, shape index: {}]
  %s1 = inlined_call_operand.vmem [shape: bf16[128,128], index: 1, kind: input, shape index: {}]
  %s2 = inlined_call_operand.vmem [shape: bf16[2,16,16,128], index: 2, kind: output, shape index: {0}]
  %s3 = inlined_call_operand.vmem [shape: f32[2,2,1,128], index: 3, kind: output, shape index: {1}]
  %s4 = inlined_call_operand.vmem [shape: f32[2,2,1,128], index: 4, kind: output, shape index: {2}]
  %5 = xla_tuple %s2, %s3, %s4
  %s6 = sld [smem:[#allocation0]]
  $region57: #{trans_bottleneck.4} parent=0
    _
  %s8 = ssub.s32 1, %s6
  %s9 = scalar_select 0, %s8, %s6
  loop: start=0, step=1, limit=6
  $region2: #{trans_bottleneck.4} parent=0 // loop_pre_header
    _
  $region3: #{trans_bottleneck.4} parent=0 // loop_header
    %s11 = sphi 0, %s15
    %p12 = scmp.ge.s32.totalorder %s11, 6
    %s18 = sphi 0, %s30
    %s19 = sphi 0, %s26
    %s20 = sphi 0, %s18
    %s21 = sphi 0, %s19
    %s22 = sphi 0, %s20
    %s23 = sphi 0, %s21
    %s35 = sphi 0, %s37
    %s38 = sphi 0, %s35
    %s39 = sphi 0, %s38
    %s55 = sphi 0, %s39
    %s59 = sphi 0, %s59
    %s61 = sphi 0, %s59
    %s62 = sphi 0, %s61
    %s76 = sphi 0, %s62
    %s84 = sphi 0, %s86
    %s87 = sphi 0, %s84
    %s88 = sphi 0, %s87
    %s104 = sphi 0, %s88
    %s112 = sphi 0, %s114
    %s115 = sphi 0, %s112
    %s116 = sphi 0, %s115
    %s132 = sphi 0, %s116
    %s140 = sphi 0, %s142
    %s143 = sphi 0, %s140
    %s144 = sphi 0, %s143
    %s160 = sphi 0, %s144
  $region4: #{trans_bottleneck.4} parent=0 // loop_header_branch
    %14 = sbr.rel (%p12) target = $region8
  $region5: #{trans_bottleneck.4} parent=0 // loop_body
    %s16 = ssub.s32 %s11, 1
    %s17 = ssub.s32 %s11, 2
    %s24 = sadd.s32 1, %s19
    %p25 = scmp.ge.s32.totalorder %s24, 2
    %s26 = scalar_select %p25, 0, %s24
    %s27 = sadd.s32 1, %s18
    %s28 = scalar_select %p25, %s27, %s18
    %p29 = scmp.ge.s32.totalorder %s28, 2
    %s30 = scalar_select %p29, 0, %s28
    %s31 = ssub.s32 %s18, %s30
    %s32 = ssub.s32 %s19, %s26
    %s33 = sor.u32 %s31, %s32
    %p34 = scmp.eq.s32.totalorder %s33, 0
    %s36 = sadd.s32 %s35, 1
    %s37 = scalar_select %p34, %s35, %s36
    %p40 = pneg %p34
    %p41 = scmp.eq.s32.totalorder %s11, 3
    %p42 = por %p40, %p41
    %p43 = scmp.ne.s32.totalorder %s35, %s38
    %p44 = scmp.eq.s32.totalorder %s11, 0
    %p45 = por %p43, %p44
    %p46 = scmp.ne.s32.totalorder %s35, %s38
    %p47 = scmp.eq.s32.totalorder %s16, 3
    %p48 = por %p46, %p47
    %p49 = scmp.ne.s32.totalorder %s38, %s39
    %p50 = scmp.eq.s32.totalorder %s16, 0
    %p51 = por %p49, %p50
    %p52 = scmp.ne.s32.totalorder %s38, %s39
    %p53 = scmp.eq.s32.totalorder %s17, 3
    %p54 = por %p52, %p53
    %p56 = scmp.ne.s32.totalorder %s39, %s55
    %p57 = scmp.eq.s32.totalorder %s17, 0
    %p58 = por %p56, %p57
    %s60 = sadd.s32 %s59, 1
    %p63 = scmp.eq.s32.totalorder %s11, 3
    %p64 = scmp.ne.s32.totalorder %s59, %s61
    %p65 = scmp.eq.s32.totalorder %s11, 0
    %p66 = por %p64, %p65
    %p67 = scmp.ne.s32.totalorder %s59, %s61
    %p68 = scmp.eq.s32.totalorder %s16, 3
    %p69 = por %p67, %p68
    %p70 = scmp.ne.s32.totalorder %s61, %s62
    %p71 = scmp.eq.s32.totalorder %s16, 0
    %p72 = por %p70, %p71
    %p73 = scmp.ne.s32.totalorder %s61, %s62
    %p74 = scmp.eq.s32.totalorder %s17, 3
    %p75 = por %p73, %p74
    %p77 = scmp.ne.s32.totalorder %s62, %s76
    %p78 = scmp.eq.s32.totalorder %s17, 0
    %p79 = por %p77, %p78
    %s80 = ssub.s32 %s18, %s30
    %s81 = ssub.s32 %s19, %s26
    %s82 = sor.u32 %s80, %s81
    %p83 = scmp.eq.s32.totalorder %s82, 0
    %s85 = sadd.s32 %s84, 1
    %s86 = scalar_select %p83, %s84, %s85
    %p89 = pneg %p83
    %p90 = scmp.eq.s32.totalorder %s11, 3
    %p91 = por %p89, %p90
    %p92 = scmp.ne.s32.totalorder %s84, %s87
    %p93 = scmp.eq.s32.totalorder %s11, 0
    %p94 = por %p92, %p93
    %p95 = scmp.ne.s32.totalorder %s84, %s87
    %p96 = scmp.eq.s32.totalorder %s16, 3
    %p97 = por %p95, %p96
    %p98 = scmp.ne.s32.totalorder %s87, %s88
    %p99 = scmp.eq.s32.totalorder %s16, 0
    %p100 = por %p98, %p99
    %p101 = scmp.ne.s32.totalorder %s87, %s88
    %p102 = scmp.eq.s32.totalorder %s17, 3
    %p103 = por %p101, %p102
    %p105 = scmp.ne.s32.totalorder %s88, %s104
    %p106 = scmp.eq.s32.totalorder %s17, 0
    %p107 = por %p105, %p106
    %s108 = ssub.s32 %s18, %s30
    %s109 = ssub.s32 %s19, %s26
    %s110 = sor.u32 %s108, %s109
    %p111 = scmp.eq.s32.totalorder %s110, 0
    %s113 = sadd.s32 %s112, 1
    %s114 = scalar_select %p111, %s112, %s113
    %p117 = pneg %p111
    %p118 = scmp.eq.s32.totalorder %s11, 3
    %p119 = por %p117, %p118
    %p120 = scmp.ne.s32.totalorder %s112, %s115
    %p121 = scmp.eq.s32.totalorder %s11, 0
    %p122 = por %p120, %p121
    %p123 = scmp.ne.s32.totalorder %s112, %s115
    %p124 = scmp.eq.s32.totalorder %s16, 3
    %p125 = por %p123, %p124
    %p126 = scmp.ne.s32.totalorder %s115, %s116
    %p127 = scmp.eq.s32.totalorder %s16, 0
    %p128 = por %p126, %p127
    %p129 = scmp.ne.s32.totalorder %s115, %s116
    %p130 = scmp.eq.s32.totalorder %s17, 3
    %p131 = por %p129, %p130
    %p133 = scmp.ne.s32.totalorder %s116, %s132
    %p134 = scmp.eq.s32.totalorder %s17, 0
    %p135 = por %p133, %p134
    %s136 = ssub.s32 %s18, %s30
    %s137 = ssub.s32 %s19, %s26
    %s138 = sor.u32 %s136, %s137
    %p139 = scmp.eq.s32.totalorder %s138, 0
    %s141 = sadd.s32 %s140, 1
    %s142 = scalar_select %p139, %s140, %s141
    %p145 = pneg %p139
    %p146 = scmp.eq.s32.totalorder %s11, 3
    %p147 = por %p145, %p146
    %p148 = scmp.ne.s32.totalorder %s140, %s143
    %p149 = scmp.eq.s32.totalorder %s11, 0
    %p150 = por %p148, %p149
    %p151 = scmp.ne.s32.totalorder %s140, %s143
    %p152 = scmp.eq.s32.totalorder %s16, 3
    %p153 = por %p151, %p152
    %p154 = scmp.ne.s32.totalorder %s143, %s144
    %p155 = scmp.eq.s32.totalorder %s16, 0
    %p156 = por %p154, %p155
    %p157 = scmp.ne.s32.totalorder %s143, %s144
    %p158 = scmp.eq.s32.totalorder %s17, 3
    %p159 = por %p157, %p158
    %p161 = scmp.ne.s32.totalorder %s144, %s160
    %p162 = scmp.eq.s32.totalorder %s17, 0
    %p163 = por %p161, %p162
    %p164 = scmp.le.s32.totalorder 1, %s11
    %p165 = scmp.lt.s32.totalorder %s11, 5
    %p166 = pnand %p164, %p165
    %p167 = pneg %p166
    // Predicated region
    $region9: #{trans_bottleneck.4} parent=5 // pred_check
      _
    $region10: #{trans_bottleneck.4} parent=5 // pred_check_branch
      %169 = sbr.rel (%p166) target = $region12
    $region11: #{trans_bottleneck.4} parent=5 // pred_region
      %s170 = ssub.s32 %s11, 1
      // Predicated region
      $region13: #{trans_bottleneck.4} parent=11 // pred_check
        %p171 = pneg %p72
      $region14: #{trans_bottleneck.4} parent=11 // pred_check_branch
        %173 = sbr.rel (%p171) target = $region16
      $region15: #{trans_bottleneck.4} parent=11 // pred_region
        _
      $region16: #{trans_bottleneck.4} parent=11 // pred_fallthru
        _
    $region12: #{trans_bottleneck.4} parent=5 // pred_fallthru
      _
    %p174 = scmp.lt.s32.totalorder %s11, 4
    // Predicated region
    $region17: #{trans_bottleneck.4} parent=5 // pred_check
      %p175 = pneg %p174
    $region18: #{trans_bottleneck.4} parent=5 // pred_check_branch
      %177 = sbr.rel (%p175) target = $region20
    $region19: #{trans_bottleneck.4} parent=5 // pred_region
      // Predicated region
      $region21: #{trans_bottleneck.4} parent=19 // pred_check
        %p178 = pneg %p45
      $region22: #{trans_bottleneck.4} parent=19 // pred_check_branch
        %180 = sbr.rel (%p178) target = $region24
      $region23: #{trans_bottleneck.4} parent=19 // pred_region
        %s181 = smul.u32 8, %s19
        %p182 = scmp.lt.s32.totalorder %s18, 1
        %s183 = scalar_select %p182, %s18, 1
        %p184 = scmp.lt.s32.totalorder %s181, 15
        %s185 = scalar_select %p184, %s181, 15
        %s186 = smul.addr %s185, 2
        %s187 = smul.addr %s183, 32
        %s188 = sadd.s32 %s186, %s187
        %s189 = smul.addr %s188, 8
        %s190 = scalar_lea.vmem %s0, %s189
        %s191 = smul.u32 8, %s19
      $region24: #{trans_bottleneck.4} parent=19 // pred_fallthru
        _
    $region20: #{trans_bottleneck.4} parent=5 // pred_fallthru
      _
    %p192 = scmp.le.s32.totalorder 1, %s11
    %p193 = scmp.lt.s32.totalorder %s11, 5
    %p194 = pnand %p192, %p193
    %p195 = pneg %p194
    // Predicated region
    $region25: #{trans_bottleneck.4} parent=5 // pred_check
      _
    $region26: #{trans_bottleneck.4} parent=5 // pred_check_branch
      %197 = sbr.rel (%p194) target = $region28
    $region27: #{trans_bottleneck.4} parent=5 // pred_region
      %s198 = ssub.s32 %s11, 1
      %s199 = smul.u32 8, %s21
      %p200 = scmp.lt.s32.totalorder %s20, 1
      %s201 = scalar_select %p200, %s20, 1
      %p202 = scmp.lt.s32.totalorder %s199, 15
      %s203 = scalar_select %p202, %s199, 15
      %s204 = smul.addr %s203, 2
      %s205 = smul.addr %s201, 32
      %s206 = sadd.s32 %s204, %s205
      %s207 = smul.addr %s206, 8
      %s208 = scalar_lea.vmem %s0, %s207
      %p209 = pneg %p51
      %p210 = pneg %p48
      %p211 = pneg %p72
      %p212 = pneg %p69
      %p213 = pneg %p100
      %p214 = pneg %p97
      %s215 = smul.u32 8, %s21
      %p216 = scmp.lt.s32.totalorder %s20, 1
      %s217 = scalar_select %p216, %s20, 1
      %p218 = scmp.lt.s32.totalorder %s215, 15
      %s219 = scalar_select %p218, %s215, 15
      %s220 = smul.addr %s219, 2
      %s221 = smul.addr %s217, 32
      %s222 = sadd.s32 %s220, %s221
      %s223 = smul.addr %s222, 4
      %s224 = scalar_lea.vmem %s2, %s223
      %p225 = pneg %p128
      %p226 = pneg %p125
      %p227 = scmp.lt.s32.totalorder %s20, 1
      %s228 = scalar_select %p227, %s20, 1
      %p229 = scmp.lt.s32.totalorder %s21, 1
      %s230 = scalar_select %p229, %s21, 1
      %s231 = smul.addr %s228, 2
      %s232 = sadd.s32 %s230, %s231
      %s233 = scalar_lea.vmem %s3, %s232
      %p234 = pneg %p156
      %p235 = pneg %p153
      %p236 = scmp.lt.s32.totalorder %s20, 1
      %s237 = scalar_select %p236, %s20, 1
      %p238 = scmp.lt.s32.totalorder %s21, 1
      %s239 = scalar_select %p238, %s21, 1
      %s240 = smul.addr %s237, 2
      %s241 = sadd.s32 %s239, %s240
      %s242 = scalar_lea.vmem %s4, %s241
      %s243 = smul.u32 8, %s21
      %p244 = scmp.lt.s32.totalorder %s20, 1
      %s245 = scalar_select %p244, %s20, 1
      %p246 = scmp.lt.s32.totalorder %s243, 15
      %s247 = scalar_select %p246, %s243, 15
      %s248 = smul.addr %s247, 2
      %s249 = smul.addr %s245, 32
      %s250 = sadd.s32 %s248, %s249
      %s251 = smul.addr %s250, 8
      %s252 = scalar_lea.vmem %s0, %s251
      %s253 = smul.u32 8, %s21
      %s254 = smul.u32 8, %s21
      %p255 = scmp.lt.s32.totalorder %s20, 1
      %s256 = scalar_select %p255, %s20, 1
      %p257 = scmp.lt.s32.totalorder %s254, 15
      %s258 = scalar_select %p257, %s254, 15
      %s259 = smul.addr %s258, 2
      %s260 = smul.addr %s256, 32
      %s261 = sadd.s32 %s259, %s260
      %s262 = smul.addr %s261, 4
      %s263 = scalar_lea.vmem %s2, %s262
      %s264 = smul.u32 8, %s21
      %p265 = scmp.lt.s32.totalorder %s20, 1
      %s266 = scalar_select %p265, %s20, 1
      %p267 = scmp.lt.s32.totalorder %s21, 1
      %s268 = scalar_select %p267, %s21, 1
      %s269 = smul.addr %s266, 2
      %s270 = sadd.s32 %s268, %s269
      %s271 = scalar_lea.vmem %s3, %s270
      %p272 = scmp.lt.s32.totalorder %s20, 1
      %s273 = scalar_select %p272, %s20, 1
      %p274 = scmp.lt.s32.totalorder %s21, 1
      %s275 = scalar_select %p274, %s21, 1
      %s276 = smul.addr %s273, 2
      %s277 = sadd.s32 %s275, %s276
      %s278 = scalar_lea.vmem %s4, %s277
      %v280 = vld [vmem:[%s252] sm:$0xff]
      %v281 = vld [vmem:[%s252 + $0x8] sm:$0xff]
      %v282 = vld [vmem:[%s252 + $0x10] sm:$0xff]
      %v283 = vld [vmem:[%s252 + $0x18] sm:$0xff]
      %v284 = vld [vmem:[%s252 + $0x20] sm:$0xff]
      %v285 = vld [vmem:[%s252 + $0x28] sm:$0xff]
      %v286 = vld [vmem:[%s252 + $0x30] sm:$0xff]
      %v287 = vld [vmem:[%s252 + $0x38] sm:$0xff]
      %v288 = vld [vmem:[%s252 + $0x40] sm:$0xff]
      %v289 = vld [vmem:[%s252 + $0x48] sm:$0xff]
      %v290 = vld [vmem:[%s252 + $0x50] sm:$0xff]
      %v291 = vld [vmem:[%s252 + $0x58] sm:$0xff]
      %v292 = vld [vmem:[%s252 + $0x60] sm:$0xff]
      %v293 = vld [vmem:[%s252 + $0x68] sm:$0xff]
      %v294 = vld [vmem:[%s252 + $0x70] sm:$0xff]
      %v295 = vld [vmem:[%s252 + $0x78] sm:$0xff]
      %v296 = vpack.c.bf16 %v281, %v280
      %v297 = vpack.c.bf16 %v283, %v282
      %v298 = vpack.c.bf16 %v285, %v284
      %v299 = vpack.c.bf16 %v287, %v286
      %v300 = vpack.c.bf16 %v289, %v288
      %v301 = vpack.c.bf16 %v291, %v290
      %v302 = vpack.c.bf16 %v293, %v292
      %v303 = vpack.c.bf16 %v295, %v294
      %v304 = vld [vmem:[%s1] sm:$0xf]
      %v305 = vld [vmem:[%s1 + $0x4] sm:$0xf]
      %v306 = vld [vmem:[%s1 + $0x8] sm:$0xf]
      %v307 = vld [vmem:[%s1 + $0xc] sm:$0xf]
      %v308 = vld [vmem:[%s1 + $0x10] sm:$0xf]
      %v309 = vld [vmem:[%s1 + $0x14] sm:$0xf]
      %v310 = vld [vmem:[%s1 + $0x18] sm:$0xf]
      %v311 = vld [vmem:[%s1 + $0x1c] sm:$0xf]
      %v312 = vld [vmem:[%s1 + $0x20] sm:$0xf]
      %v313 = vld [vmem:[%s1 + $0x24] sm:$0xf]
      %v314 = vld [vmem:[%s1 + $0x28] sm:$0xf]
      %v315 = vld [vmem:[%s1 + $0x2c] sm:$0xf]
      %v316 = vld [vmem:[%s1 + $0x30] sm:$0xf]
      %v317 = vld [vmem:[%s1 + $0x34] sm:$0xf]
      %v318 = vld [vmem:[%s1 + $0x38] sm:$0xf]
      %v319 = vld [vmem:[%s1 + $0x3c] sm:$0xf]
      %v336 = vunpack.c.l.b16 %v304
      %v337 = vunpack.c.l.b16 %v305
      %v338 = vunpack.c.l.b16 %v306
      %v339 = vunpack.c.l.b16 %v307
      %v340 = vunpack.c.l.b16 %v308
      %v341 = vunpack.c.l.b16 %v309
      %v342 = vunpack.c.l.b16 %v310
      %v343 = vunpack.c.l.b16 %v311
      %v344 = vunpack.c.l.b16 %v312
      %v345 = vunpack.c.l.b16 %v313
      %v346 = vunpack.c.l.b16 %v314
      %v347 = vunpack.c.l.b16 %v315
      %v348 = vunpack.c.l.b16 %v316
      %v349 = vunpack.c.l.b16 %v317
      %v350 = vunpack.c.l.b16 %v318
      %v351 = vunpack.c.l.b16 %v319
      %v352 = vpack.c.b16 %v337, %v336
      %v353 = vpack.c.b16 %v339, %v338
      %v354 = vpack.c.b16 %v341, %v340
      %v355 = vpack.c.b16 %v343, %v342
      %v356 = vpack.c.b16 %v345, %v344
      %v357 = vpack.c.b16 %v347, %v346
      %v358 = vpack.c.b16 %v349, %v348
      %v359 = vpack.c.b16 %v351, %v350
      %368 = vmatprep.subr.bf16.mxu0 0
      %369 = vmatpush1.bf16.msra.mxu0 %v352
      %370 = vmatprep.subr.bf16.mxu0 0
      %371 = vmatpush1.bf16.msra.mxu0 %v353
      %372 = vmatprep.subr.bf16.mxu0 0
      %373 = vmatpush1.bf16.msra.mxu0 %v354
      %374 = vmatprep.subr.bf16.mxu0 0
      %375 = vmatpush1.bf16.msra.mxu0 %v355
      %376 = vmatprep.subr.bf16.mxu0 0
      %377 = vmatpush1.bf16.msra.mxu0 %v356
      %378 = vmatprep.subr.bf16.mxu0 0
      %379 = vmatpush1.bf16.msra.mxu0 %v357
      %380 = vmatprep.subr.bf16.mxu0 0
      %381 = vmatpush1.bf16.msra.mxu0 %v358
      %382 = vmatprep.subr.bf16.mxu0 0
      %383 = vmatpush1.bf16.msra.mxu0 %v359
      %384 = vmatprep.subr.bf16.mxu0 0
      %385 = vmatpush1.bf16.msra.mxu0 0
      %386 = vmatprep.subr.bf16.mxu0 0
      %387 = vmatpush1.bf16.msra.mxu0 0
      %388 = vmatprep.subr.bf16.mxu0 0
      %389 = vmatpush1.bf16.msra.mxu0 0
      %390 = vmatprep.subr.bf16.mxu0 0
      %391 = vmatpush1.bf16.msra.mxu0 0
      %392 = vmatprep.subr.bf16.mxu0 0
      %393 = vmatpush1.bf16.msra.mxu0 0
      %394 = vmatprep.subr.bf16.mxu0 0
      %395 = vmatpush1.bf16.msra.mxu0 0
      %396 = vmatprep.subr.bf16.mxu0 0
      %397 = vmatpush1.bf16.msra.mxu0 0
      %398 = vmatprep.subr.bf16.mxu0 0
      %399 = vmatpush1.bf16.msra.mxu0 0
      %400 = vmatprep.mubr.bf16.mxu0 0
      %401 = vmatmul.mubr.bf16.gmra.mrb[0].mxu0 %v296
      %v402 = vpop.f32.mrb[0].mxu0
      %v403 = vadd.f32 0.0, %v402
      %v404 = vpop.f32.mrb[0].mxu0
      %v405 = vpop.f32.mrb[0].mxu0
      %v406 = vadd.f32 0.0, %v405
      %v407 = vpop.f32.mrb[0].mxu0
      %408 = vmatprep.mubr.bf16.mxu0 0
      %409 = vmatmul.mubr.bf16.gmra.mrb[0].mxu0 %v297
      %v410 = vpop.f32.mrb[0].mxu0
      %v411 = vadd.f32 0.0, %v410
      %v412 = vpop.f32.mrb[0].mxu0
      %v413 = vpop.f32.mrb[0].mxu0
      %v414 = vadd.f32 0.0, %v413
      %v415 = vpop.f32.mrb[0].mxu0
      %416 = vmatprep.mubr.bf16.mxu0 0
      %417 = vmatmul.mubr.bf16.gmra.mrb[0].mxu0 %v298
      %v418 = vpop.f32.mrb[0].mxu0
      %v419 = vadd.f32 0.0, %v418
      %v420 = vpop.f32.mrb[0].mxu0
      %v421 = vpop.f32.mrb[0].mxu0
      %v422 = vadd.f32 0.0, %v421
      %v423 = vpop.f32.mrb[0].mxu0
      %424 = vmatprep.mubr.bf16.mxu0 0
      %425 = vmatmul.mubr.bf16.gmra.mrb[0].mxu0 %v299
      %v426 = vpop.f32.mrb[0].mxu0
      %v427 = vadd.f32 0.0, %v426
      %v428 = vpop.f32.mrb[0].mxu0
      %v429 = vpop.f32.mrb[0].mxu0
      %v430 = vadd.f32 0.0, %v429
      %v431 = vpop.f32.mrb[0].mxu0
      %432 = vmatprep.mubr.bf16.mxu0 0
      %433 = vmatmul.mubr.bf16.gmra.mrb[0].mxu0 %v300
      %v434 = vpop.f32.mrb[0].mxu0
      %v435 = vadd.f32 0.0, %v434
      %v436 = vpop.f32.mrb[0].mxu0
      %v437 = vpop.f32.mrb[0].mxu0
      %v438 = vadd.f32 0.0, %v437
      %v439 = vpop.f32.mrb[0].mxu0
      %440 = vmatprep.mubr.bf16.mxu0 0
      %441 = vmatmul.mubr.bf16.gmra.mrb[0].mxu0 %v301
      %v442 = vpop.f32.mrb[0].mxu0
      %v443 = vadd.f32 0.0, %v442
      %v444 = vpop.f32.mrb[0].mxu0
      %v445 = vpop.f32.mrb[0].mxu0
      %v446 = vadd.f32 0.0, %v445
      %v447 = vpop.f32.mrb[0].mxu0
      %448 = vmatprep.mubr.bf16.mxu0 0
      %449 = vmatmul.mubr.bf16.gmra.mrb[0].mxu0 %v302
      %v450 = vpop.f32.mrb[0].mxu0
      %v451 = vadd.f32 0.0, %v450
      %v452 = vpop.f32.mrb[0].mxu0
      %v453 = vpop.f32.mrb[0].mxu0
      %v454 = vadd.f32 0.0, %v453
      %v455 = vpop.f32.mrb[0].mxu0
      %456 = vmatprep.mubr.bf16.mxu0 0
      %457 = vmatmul.mubr.bf16.gmra.mrb[0].mxu0 %v303
      %v458 = vpop.f32.mrb[0].mxu0
      %v459 = vadd.f32 0.0, %v458
      %v460 = vpop.f32.mrb[0].mxu0
      %v461 = vpop.f32.mrb[0].mxu0
      %v462 = vadd.f32 0.0, %v461
      %v463 = vpop.f32.mrb[0].mxu0
      %464 = vdwg.mxu0
      %v465 = vadd.f32 %v403, %v406
      %v466 = vadd.f32 %v465, %v411
      %v467 = vadd.f32 %v466, %v414
      %v468 = vadd.f32 %v467, %v419
      %v469 = vadd.f32 %v468, %v422
      %v470 = vadd.f32 %v469, %v427
      %v471 = vadd.f32 %v470, %v430
      %v472 = vadd.f32 %v471, %v435
      %v473 = vadd.f32 %v472, %v438
      %v474 = vadd.f32 %v473, %v443
      %v475 = vadd.f32 %v474, %v446
      %v476 = vadd.f32 %v475, %v451
      %v477 = vadd.f32 %v476, %v454
      %v478 = vadd.f32 %v477, %v459
      %v479 = vadd.f32 %v478, %v462
      %v480 = vrot.slane %v479, 4
      %v481 = vadd.f32 %v479, %v480
      %v482 = vrot.slane %v481, 2
      %v483 = vadd.f32 %v481, %v482
      %v484 = vrot.slane %v483, 1
      %v485 = vadd.f32 %v483, %v484
      %486 = vst [vmem:[%s271] sm:$0x1] %v485
      %v487 = vmul.f32 %v403, %v403
      %v488 = vmul.f32 %v406, %v406
      %v489 = vmul.f32 %v411, %v411
      %v490 = vmul.f32 %v414, %v414
      %v491 = vmul.f32 %v419, %v419
      %v492 = vmul.f32 %v422, %v422
      %v493 = vmul.f32 %v427, %v427
      %v494 = vmul.f32 %v430, %v430
      %v495 = vmul.f32 %v435, %v435
      %v496 = vmul.f32 %v438, %v438
      %v497 = vmul.f32 %v443, %v443
      %v498 = vmul.f32 %v446, %v446
      %v499 = vmul.f32 %v451, %v451
      %v500 = vmul.f32 %v454, %v454
      %v501 = vmul.f32 %v459, %v459
      %v502 = vmul.f32 %v462, %v462
      %v503 = vadd.f32 %v487, %v488
      %v504 = vadd.f32 %v503, %v489
      %v505 = vadd.f32 %v504, %v490
      %v506 = vadd.f32 %v505, %v491
      %v507 = vadd.f32 %v506, %v492
      %v508 = vadd.f32 %v507, %v493
      %v509 = vadd.f32 %v508, %v494
      %v510 = vadd.f32 %v509, %v495
      %v511 = vadd.f32 %v510, %v496
      %v512 = vadd.f32 %v511, %v497
      %v513 = vadd.f32 %v512, %v498
      %v514 = vadd.f32 %v513, %v499
      %v515 = vadd.f32 %v514, %v500
      %v516 = vadd.f32 %v515, %v501
      %v517 = vadd.f32 %v516, %v502
      %v518 = vrot.slane %v517, 4
      %v519 = vadd.f32 %v517, %v518
      %v520 = vrot.slane %v519, 2
      %v521 = vadd.f32 %v519, %v520
      %v522 = vrot.slane %v521, 1
      %v523 = vadd.f32 %v521, %v522
      %524 = vst [vmem:[%s278] sm:$0x1] %v523
      %v525 = vpack.c.bf16 %v406, %v403
      %v526 = vpack.c.bf16 %v414, %v411
      %v527 = vpack.c.bf16 %v422, %v419
      %v528 = vpack.c.bf16 %v430, %v427
      %v529 = vpack.c.bf16 %v438, %v435
      %v530 = vpack.c.bf16 %v446, %v443
      %v531 = vpack.c.bf16 %v454, %v451
      %v532 = vpack.c.bf16 %v462, %v459
      %v541 = vunpack.c.l.b16 %v525
      %v542 = vunpack.c.h.b16 %v525
      %v543 = vunpack.c.l.b16 %v526
      %v544 = vunpack.c.h.b16 %v526
      %v545 = vunpack.c.l.b16 %v527
      %v546 = vunpack.c.h.b16 %v527
      %v547 = vunpack.c.l.b16 %v528
      %v548 = vunpack.c.h.b16 %v528
      %v549 = vunpack.c.l.b16 %v529
      %v550 = vunpack.c.h.b16 %v529
      %v551 = vunpack.c.l.b16 %v530
      %v552 = vunpack.c.h.b16 %v530
      %v553 = vunpack.c.l.b16 %v531
      %v554 = vunpack.c.h.b16 %v531
      %v555 = vunpack.c.l.b16 %v532
      %v556 = vunpack.c.h.b16 %v532
      %v557 = vpack.c.b16 %v541, %v541
      %v558 = vpack.c.b16 %v542, %v542
      %v559 = vpack.c.b16 %v543, %v543
      %v560 = vpack.c.b16 %v544, %v544
      %v561 = vpack.c.b16 %v545, %v545
      %v562 = vpack.c.b16 %v546, %v546
      %v563 = vpack.c.b16 %v547, %v547
      %v564 = vpack.c.b16 %v548, %v548
      %v565 = vpack.c.b16 %v549, %v549
      %v566 = vpack.c.b16 %v550, %v550
      %v567 = vpack.c.b16 %v551, %v551
      %v568 = vpack.c.b16 %v552, %v552
      %v569 = vpack.c.b16 %v553, %v553
      %v570 = vpack.c.b16 %v554, %v554
      %v571 = vpack.c.b16 %v555, %v555
      %v572 = vpack.c.b16 %v556, %v556
      %589 = vst [vmem:[%s263] sm:$0xf] %v557
      %590 = vst [vmem:[%s263 + $0x4] sm:$0xf] %v558
      %591 = vst [vmem:[%s263 + $0x8] sm:$0xf] %v559
      %592 = vst [vmem:[%s263 + $0xc] sm:$0xf] %v560
      %593 = vst [vmem:[%s263 + $0x10] sm:$0xf] %v561
      %594 = vst [vmem:[%s263 + $0x14] sm:$0xf] %v562
      %595 = vst [vmem:[%s263 + $0x18] sm:$0xf] %v563
      %596 = vst [vmem:[%s263 + $0x1c] sm:$0xf] %v564
      %597 = vst [vmem:[%s263 + $0x20] sm:$0xf] %v565
      %598 = vst [vmem:[%s263 + $0x24] sm:$0xf] %v566
      %599 = vst [vmem:[%s263 + $0x28] sm:$0xf] %v567
      %600 = vst [vmem:[%s263 + $0x2c] sm:$0xf] %v568
      %601 = vst [vmem:[%s263 + $0x30] sm:$0xf] %v569
      %602 = vst [vmem:[%s263 + $0x34] sm:$0xf] %v570
      %603 = vst [vmem:[%s263 + $0x38] sm:$0xf] %v571
      %604 = vst [vmem:[%s263 + $0x3c] sm:$0xf] %v572
      %s605 = smul.u32 8, %s21
      %p606 = scmp.lt.s32.totalorder %s20, 1
      %s607 = scalar_select %p606, %s20, 1
      %p608 = scmp.lt.s32.totalorder %s605, 15
      %s609 = scalar_select %p608, %s605, 15
      %s610 = smul.addr %s609, 2
      %s611 = smul.addr %s607, 32
      %s612 = sadd.s32 %s610, %s611
      %s613 = smul.addr %s612, 4
      %s614 = scalar_lea.vmem %s2, %s613
      %p615 = scmp.lt.s32.totalorder %s20, 1
      %s616 = scalar_select %p615, %s20, 1
      %p617 = scmp.lt.s32.totalorder %s21, 1
      %s618 = scalar_select %p617, %s21, 1
      %s619 = smul.addr %s616, 2
      %s620 = sadd.s32 %s618, %s619
      %s621 = scalar_lea.vmem %s3, %s620
      %p622 = scmp.lt.s32.totalorder %s20, 1
      %s623 = scalar_select %p622, %s20, 1
      %p624 = scmp.lt.s32.totalorder %s21, 1
      %s625 = scalar_select %p624, %s21, 1
      %s626 = smul.addr %s623, 2
      %s627 = sadd.s32 %s625, %s626
      %s628 = scalar_lea.vmem %s4, %s627
      // Predicated region
      $region29: #{trans_bottleneck.4} parent=27 // pred_check
        %p629 = pneg %p97
      $region30: #{trans_bottleneck.4} parent=27 // pred_check_branch
        %631 = sbr.rel (%p629) target = $region32
      $region31: #{trans_bottleneck.4} parent=27 // pred_region
        %s632 = smul.u32 8, %s21
      $region32: #{trans_bottleneck.4} parent=27 // pred_fallthru
        _
      // Predicated region
      $region33: #{trans_bottleneck.4} parent=27 // pred_check
        %p633 = pneg %p125
      $region34: #{trans_bottleneck.4} parent=27 // pred_check_branch
        %635 = sbr.rel (%p633) target = $region36
      $region35: #{trans_bottleneck.4} parent=27 // pred_region
        _
      $region36: #{trans_bottleneck.4} parent=27 // pred_fallthru
        _
      // Predicated region
      $region37: #{trans_bottleneck.4} parent=27 // pred_check
        %p636 = pneg %p153
      $region38: #{trans_bottleneck.4} parent=27 // pred_check_branch
        %638 = sbr.rel (%p636) target = $region40
      $region39: #{trans_bottleneck.4} parent=27 // pred_region
        _
      $region40: #{trans_bottleneck.4} parent=27 // pred_fallthru
        _
    $region28: #{trans_bottleneck.4} parent=5 // pred_fallthru
      _
    %p639 = scmp.le.s32.totalorder 2, %s11
    // Predicated region
    $region41: #{trans_bottleneck.4} parent=5 // pred_check
      %p640 = pneg %p639
    $region42: #{trans_bottleneck.4} parent=5 // pred_check_branch
      %642 = sbr.rel (%p640) target = $region44
    $region43: #{trans_bottleneck.4} parent=5 // pred_region
      %s643 = ssub.s32 %s11, 2
      // Predicated region
      $region45: #{trans_bottleneck.4} parent=43 // pred_check
        %p644 = pneg %p103
      $region46: #{trans_bottleneck.4} parent=43 // pred_check_branch
        %646 = sbr.rel (%p644) target = $region48
      $region47: #{trans_bottleneck.4} parent=43 // pred_region
        %s647 = smul.u32 8, %s23
        %p648 = scmp.lt.s32.totalorder %s22, 1
        %s649 = scalar_select %p648, %s22, 1
        %p650 = scmp.lt.s32.totalorder %s647, 15
        %s651 = scalar_select %p650, %s647, 15
        %s652 = smul.addr %s651, 2
        %s653 = smul.addr %s649, 32
        %s654 = sadd.s32 %s652, %s653
        %s655 = smul.addr %s654, 4
        %s656 = scalar_lea.vmem %s2, %s655
      $region48: #{trans_bottleneck.4} parent=43 // pred_fallthru
        _
      // Predicated region
      $region49: #{trans_bottleneck.4} parent=43 // pred_check
        %p657 = pneg %p131
      $region50: #{trans_bottleneck.4} parent=43 // pred_check_branch
        %659 = sbr.rel (%p657) target = $region52
      $region51: #{trans_bottleneck.4} parent=43 // pred_region
        %p660 = scmp.lt.s32.totalorder %s22, 1
        %s661 = scalar_select %p660, %s22, 1
        %p662 = scmp.lt.s32.totalorder %s23, 1
        %s663 = scalar_select %p662, %s23, 1
        %s664 = smul.addr %s661, 2
        %s665 = sadd.s32 %s663, %s664
        %s666 = scalar_lea.vmem %s3, %s665
      $region52: #{trans_bottleneck.4} parent=43 // pred_fallthru
        _
      // Predicated region
      $region53: #{trans_bottleneck.4} parent=43 // pred_check
        %p667 = pneg %p159
      $region54: #{trans_bottleneck.4} parent=43 // pred_check_branch
        %669 = sbr.rel (%p667) target = $region56
      $region55: #{trans_bottleneck.4} parent=43 // pred_region
        %p670 = scmp.lt.s32.totalorder %s22, 1
        %s671 = scalar_select %p670, %s22, 1
        %p672 = scmp.lt.s32.totalorder %s23, 1
        %s673 = scalar_select %p672, %s23, 1
        %s674 = smul.addr %s671, 2
        %s675 = sadd.s32 %s673, %s674
        %s676 = scalar_lea.vmem %s4, %s675
      $region56: #{trans_bottleneck.4} parent=43 // pred_fallthru
        _
    $region44: #{trans_bottleneck.4} parent=5 // pred_fallthru
      _
  $region6: #{trans_bottleneck.4} parent=0 // loop_footer
    %s15 = sadd.s32 1, %s11
  $region7: #{trans_bottleneck.4} parent=0 // loop_footer_branch
    %10 = sbr.rel target = $region3
  $region8: #{trans_bottleneck.4} parent=0 // loop_exit
    _

// kernel: trans_bottleneck.5
$region0: #{trans_bottleneck.5}
  #allocation0 [shape = 'u32[]', space=smem, size = 0x4, offset = 0x4, fixed_abs, tag = 'smem constant byte address 0x4 - core index']
  #allocation1 [shape = 'u32[144,128]{1,0:T(1,128)}', space=vmem, size = 0x12000, scoped, tag = 'internal scratch']
  #allocation2 [shape = 'f32[10,18,128]{2,1,0:T(8,128)}', space=vmem, size = 0x1e000, scoped, tag = 'scratch operand']
  %s0 = inlined_call_operand.vmem [shape: bf16[2,16,16,128], index: 0, kind: input, shape index: {}, may-alias: {0,1,2}]
  %s1 = inlined_call_operand.vmem [shape: bf16[2,16,16,128], index: 1, kind: input, shape index: {}, may-alias: {0,1,2}]
  %s2 = inlined_call_operand.vmem [shape: bf16[2,16,16,128], index: 2, kind: input, shape index: {}, may-alias: {0,1,2}]
  %s3 = inlined_call_operand.vmem [shape: f32[1,128], index: 3, kind: input, shape index: {}]
  %s4 = inlined_call_operand.vmem [shape: f32[1,128], index: 4, kind: input, shape index: {}]
  %s5 = inlined_call_operand.vmem [shape: bf16[3,384,128], index: 5, kind: input, shape index: {}]
  %s6 = inlined_call_operand.vmem [shape: bf16[2,16,16,128], index: 6, kind: output, shape index: {0}]
  %s7 = inlined_call_operand.vmem [shape: f32[2,2,1,128], index: 7, kind: output, shape index: {1}]
  %s8 = inlined_call_operand.vmem [shape: f32[2,2,1,128], index: 8, kind: output, shape index: {2}]
  %9 = xla_tuple %s6, %s7, %s8
  %s10 = sld [smem:[#allocation0]]
  $region73: #{trans_bottleneck.5} parent=0
    _
  %s12 = ssub.s32 1, %s10
  %s13 = scalar_select 0, %s12, %s10
  loop: start=0, step=1, limit=6
  $region2: #{trans_bottleneck.5} parent=0 // loop_pre_header
    _
  $region3: #{trans_bottleneck.5} parent=0 // loop_header
    %s15 = sphi 0, %s19
    %p16 = scmp.ge.s32.totalorder %s15, 6
    %s22 = sphi 0, %s34
    %s23 = sphi 0, %s30
    %s24 = sphi 0, %s22
    %s25 = sphi 0, %s23
    %s26 = sphi 0, %s24
    %s27 = sphi 0, %s25
    %s39 = sphi 0, %s41
    %s42 = sphi 0, %s39
    %s43 = sphi 0, %s42
    %s59 = sphi 0, %s43
    %s75 = sphi 0, %s77
    %s78 = sphi 0, %s75
    %s79 = sphi 0, %s78
    %s95 = sphi 0, %s79
    %s111 = sphi 0, %s113
    %s114 = sphi 0, %s111
    %s115 = sphi 0, %s114
    %s131 = sphi 0, %s115
    %s135 = sphi 0, %s135
    %s137 = sphi 0, %s135
    %s138 = sphi 0, %s137
    %s152 = sphi 0, %s138
    %s156 = sphi 0, %s156
    %s158 = sphi 0, %s156
    %s159 = sphi 0, %s158
    %s173 = sphi 0, %s159
    %s177 = sphi 0, %s177
    %s179 = sphi 0, %s177
    %s180 = sphi 0, %s179
    %s194 = sphi 0, %s180
    %s202 = sphi 0, %s204
    %s205 = sphi 0, %s202
    %s206 = sphi 0, %s205
    %s222 = sphi 0, %s206
    %s230 = sphi 0, %s232
    %s233 = sphi 0, %s230
    %s234 = sphi 0, %s233
    %s250 = sphi 0, %s234
    %s258 = sphi 0, %s260
    %s261 = sphi 0, %s258
    %s262 = sphi 0, %s261
    %s278 = sphi 0, %s262
  $region4: #{trans_bottleneck.5} parent=0 // loop_header_branch
    %18 = sbr.rel (%p16) target = $region8
  $region5: #{trans_bottleneck.5} parent=0 // loop_body
    %s20 = ssub.s32 %s15, 1
    %s21 = ssub.s32 %s15, 2
    %s28 = sadd.s32 1, %s23
    %p29 = scmp.ge.s32.totalorder %s28, 2
    %s30 = scalar_select %p29, 0, %s28
    %s31 = sadd.s32 1, %s22
    %s32 = scalar_select %p29, %s31, %s22
    %p33 = scmp.ge.s32.totalorder %s32, 2
    %s34 = scalar_select %p33, 0, %s32
    %s35 = ssub.s32 %s22, %s34
    %s36 = ssub.s32 %s23, %s30
    %s37 = sor.u32 %s35, %s36
    %p38 = scmp.eq.s32.totalorder %s37, 0
    %s40 = sadd.s32 %s39, 1
    %s41 = scalar_select %p38, %s39, %s40
    %p44 = pneg %p38
    %p45 = scmp.eq.s32.totalorder %s15, 3
    %p46 = por %p44, %p45
    %p47 = scmp.ne.s32.totalorder %s39, %s42
    %p48 = scmp.eq.s32.totalorder %s15, 0
    %p49 = por %p47, %p48
    %p50 = scmp.ne.s32.totalorder %s39, %s42
    %p51 = scmp.eq.s32.totalorder %s20, 3
    %p52 = por %p50, %p51
    %p53 = scmp.ne.s32.totalorder %s42, %s43
    %p54 = scmp.eq.s32.totalorder %s20, 0
    %p55 = por %p53, %p54
    %p56 = scmp.ne.s32.totalorder %s42, %s43
    %p57 = scmp.eq.s32.totalorder %s21, 3
    %p58 = por %p56, %p57
    %p60 = scmp.ne.s32.totalorder %s43, %s59
    %p61 = scmp.eq.s32.totalorder %s21, 0
    %p62 = por %p60, %p61
    %s63 = smul.u32 %s23, 8
    %s64 = ssub.s32 %s63, 1
    %p65 = scmp.gt.s32.totalorder %s64, 0
    %s66 = scalar_select %p65, %s64, 0
    %s67 = smul.u32 %s30, 8
    %s68 = ssub.s32 %s67, 1
    %p69 = scmp.gt.s32.totalorder %s68, 0
    %s70 = scalar_select %p69, %s68, 0
    %s71 = ssub.s32 %s22, %s34
    %s72 = ssub.s32 %s66, %s70
    %s73 = sor.u32 %s71, %s72
    %p74 = scmp.eq.s32.totalorder %s73, 0
    %s76 = sadd.s32 %s75, 1
    %s77 = scalar_select %p74, %s75, %s76
    %p80 = pneg %p74
    %p81 = scmp.eq.s32.totalorder %s15, 3
    %p82 = por %p80, %p81
    %p83 = scmp.ne.s32.totalorder %s75, %s78
    %p84 = scmp.eq.s32.totalorder %s15, 0
    %p85 = por %p83, %p84
    %p86 = scmp.ne.s32.totalorder %s75, %s78
    %p87 = scmp.eq.s32.totalorder %s20, 3
    %p88 = por %p86, %p87
    %p89 = scmp.ne.s32.totalorder %s78, %s79
    %p90 = scmp.eq.s32.totalorder %s20, 0
    %p91 = por %p89, %p90
    %p92 = scmp.ne.s32.totalorder %s78, %s79
    %p93 = scmp.eq.s32.totalorder %s21, 3
    %p94 = por %p92, %p93
    %p96 = scmp.ne.s32.totalorder %s79, %s95
    %p97 = scmp.eq.s32.totalorder %s21, 0
    %p98 = por %p96, %p97
    %s99 = sadd.s32 %s23, 1
    %s100 = smul.u32 %s99, 8
    %p101 = scmp.lt.s32.totalorder %s100, 15
    %s102 = scalar_select %p101, %s100, 15
    %s103 = sadd.s32 %s30, 1
    %s104 = smul.u32 %s103, 8
    %p105 = scmp.lt.s32.totalorder %s104, 15
    %s106 = scalar_select %p105, %s104, 15
    %s107 = ssub.s32 %s22, %s34
    %s108 = ssub.s32 %s102, %s106
    %s109 = sor.u32 %s107, %s108
    %p110 = scmp.eq.s32.totalorder %s109, 0
    %s112 = sadd.s32 %s111, 1
    %s113 = scalar_select %p110, %s111, %s112
    %p116 = pneg %p110
    %p117 = scmp.eq.s32.totalorder %s15, 3
    %p118 = por %p116, %p117
    %p119 = scmp.ne.s32.totalorder %s111, %s114
    %p120 = scmp.eq.s32.totalorder %s15, 0
    %p121 = por %p119, %p120
    %p122 = scmp.ne.s32.totalorder %s111, %s114
    %p123 = scmp.eq.s32.totalorder %s20, 3
    %p124 = por %p122, %p123
    %p125 = scmp.ne.s32.totalorder %s114, %s115
    %p126 = scmp.eq.s32.totalorder %s20, 0
    %p127 = por %p125, %p126
    %p128 = scmp.ne.s32.totalorder %s114, %s115
    %p129 = scmp.eq.s32.totalorder %s21, 3
    %p130 = por %p128, %p129
    %p132 = scmp.ne.s32.totalorder %s115, %s131
    %p133 = scmp.eq.s32.totalorder %s21, 0
    %p134 = por %p132, %p133
    %s136 = sadd.s32 %s135, 1
    %p139 = scmp.eq.s32.totalorder %s15, 3
    %p140 = scmp.ne.s32.totalorder %s135, %s137
    %p141 = scmp.eq.s32.totalorder %s15, 0
    %p142 = por %p140, %p141
    %p143 = scmp.ne.s32.totalorder %s135, %s137
    %p144 = scmp.eq.s32.totalorder %s20, 3
    %p145 = por %p143, %p144
    %p146 = scmp.ne.s32.totalorder %s137, %s138
    %p147 = scmp.eq.s32.totalorder %s20, 0
    %p148 = por %p146, %p147
    %p149 = scmp.ne.s32.totalorder %s137, %s138
    %p150 = scmp.eq.s32.totalorder %s21, 3
    %p151 = por %p149, %p150
    %p153 = scmp.ne.s32.totalorder %s138, %s152
    %p154 = scmp.eq.s32.totalorder %s21, 0
    %p155 = por %p153, %p154
    %s157 = sadd.s32 %s156, 1
    %p160 = scmp.eq.s32.totalorder %s15, 3
    %p161 = scmp.ne.s32.totalorder %s156, %s158
    %p162 = scmp.eq.s32.totalorder %s15, 0
    %p163 = por %p161, %p162
    %p164 = scmp.ne.s32.totalorder %s156, %s158
    %p165 = scmp.eq.s32.totalorder %s20, 3
    %p166 = por %p164, %p165
    %p167 = scmp.ne.s32.totalorder %s158, %s159
    %p168 = scmp.eq.s32.totalorder %s20, 0
    %p169 = por %p167, %p168
    %p170 = scmp.ne.s32.totalorder %s158, %s159
    %p171 = scmp.eq.s32.totalorder %s21, 3
    %p172 = por %p170, %p171
    %p174 = scmp.ne.s32.totalorder %s159, %s173
    %p175 = scmp.eq.s32.totalorder %s21, 0
    %p176 = por %p174, %p175
    %s178 = sadd.s32 %s177, 1
    %p181 = scmp.eq.s32.totalorder %s15, 3
    %p182 = scmp.ne.s32.totalorder %s177, %s179
    %p183 = scmp.eq.s32.totalorder %s15, 0
    %p184 = por %p182, %p183
    %p185 = scmp.ne.s32.totalorder %s177, %s179
    %p186 = scmp.eq.s32.totalorder %s20, 3
    %p187 = por %p185, %p186
    %p188 = scmp.ne.s32.totalorder %s179, %s180
    %p189 = scmp.eq.s32.totalorder %s20, 0
    %p190 = por %p188, %p189
    %p191 = scmp.ne.s32.totalorder %s179, %s180
    %p192 = scmp.eq.s32.totalorder %s21, 3
    %p193 = por %p191, %p192
    %p195 = scmp.ne.s32.totalorder %s180, %s194
    %p196 = scmp.eq.s32.totalorder %s21, 0
    %p197 = por %p195, %p196
    %s198 = ssub.s32 %s22, %s34
    %s199 = ssub.s32 %s23, %s30
    %s200 = sor.u32 %s198, %s199
    %p201 = scmp.eq.s32.totalorder %s200, 0
    %s203 = sadd.s32 %s202, 1
    %s204 = scalar_select %p201, %s202, %s203
    %p207 = pneg %p201
    %p208 = scmp.eq.s32.totalorder %s15, 3
    %p209 = por %p207, %p208
    %p210 = scmp.ne.s32.totalorder %s202, %s205
    %p211 = scmp.eq.s32.totalorder %s15, 0
    %p212 = por %p210, %p211
    %p213 = scmp.ne.s32.totalorder %s202, %s205
    %p214 = scmp.eq.s32.totalorder %s20, 3
    %p215 = por %p213, %p214
    %p216 = scmp.ne.s32.totalorder %s205, %s206
    %p217 = scmp.eq.s32.totalorder %s20, 0
    %p218 = por %p216, %p217
    %p219 = scmp.ne.s32.totalorder %s205, %s206
    %p220 = scmp.eq.s32.totalorder %s21, 3
    %p221 = por %p219, %p220
    %p223 = scmp.ne.s32.totalorder %s206, %s222
    %p224 = scmp.eq.s32.totalorder %s21, 0
    %p225 = por %p223, %p224
    %s226 = ssub.s32 %s22, %s34
    %s227 = ssub.s32 %s23, %s30
    %s228 = sor.u32 %s226, %s227
    %p229 = scmp.eq.s32.totalorder %s228, 0
    %s231 = sadd.s32 %s230, 1
    %s232 = scalar_select %p229, %s230, %s231
    %p235 = pneg %p229
    %p236 = scmp.eq.s32.totalorder %s15, 3
    %p237 = por %p235, %p236
    %p238 = scmp.ne.s32.totalorder %s230, %s233
    %p239 = scmp.eq.s32.totalorder %s15, 0
    %p240 = por %p238, %p239
    %p241 = scmp.ne.s32.totalorder %s230, %s233
    %p242 = scmp.eq.s32.totalorder %s20, 3
    %p243 = por %p241, %p242
    %p244 = scmp.ne.s32.totalorder %s233, %s234
    %p245 = scmp.eq.s32.totalorder %s20, 0
    %p246 = por %p244, %p245
    %p247 = scmp.ne.s32.totalorder %s233, %s234
    %p248 = scmp.eq.s32.totalorder %s21, 3
    %p249 = por %p247, %p248
    %p251 = scmp.ne.s32.totalorder %s234, %s250
    %p252 = scmp.eq.s32.totalorder %s21, 0
    %p253 = por %p251, %p252
    %s254 = ssub.s32 %s22, %s34
    %s255 = ssub.s32 %s23, %s30
    %s256 = sor.u32 %s254, %s255
    %p257 = scmp.eq.s32.totalorder %s256, 0
    %s259 = sadd.s32 %s258, 1
    %s260 = scalar_select %p257, %s258, %s259
    %p263 = pneg %p257
    %p264 = scmp.eq.s32.totalorder %s15, 3
    %p265 = por %p263, %p264
    %p266 = scmp.ne.s32.totalorder %s258, %s261
    %p267 = scmp.eq.s32.totalorder %s15, 0
    %p268 = por %p266, %p267
    %p269 = scmp.ne.s32.totalorder %s258, %s261
    %p270 = scmp.eq.s32.totalorder %s20, 3
    %p271 = por %p269, %p270
    %p272 = scmp.ne.s32.totalorder %s261, %s262
    %p273 = scmp.eq.s32.totalorder %s20, 0
    %p274 = por %p272, %p273
    %p275 = scmp.ne.s32.totalorder %s261, %s262
    %p276 = scmp.eq.s32.totalorder %s21, 3
    %p277 = por %p275, %p276
    %p279 = scmp.ne.s32.totalorder %s262, %s278
    %p280 = scmp.eq.s32.totalorder %s21, 0
    %p281 = por %p279, %p280
    %p282 = scmp.le.s32.totalorder 1, %s15
    %p283 = scmp.lt.s32.totalorder %s15, 5
    %p284 = pnand %p282, %p283
    %p285 = pneg %p284
    // Predicated region
    $region9: #{trans_bottleneck.5} parent=5 // pred_check
      _
    $region10: #{trans_bottleneck.5} parent=5 // pred_check_branch
      %287 = sbr.rel (%p284) target = $region12
    $region11: #{trans_bottleneck.5} parent=5 // pred_region
      %s288 = ssub.s32 %s15, 1
      // Predicated region
      $region13: #{trans_bottleneck.5} parent=11 // pred_check
        %p289 = pneg %p148
      $region14: #{trans_bottleneck.5} parent=11 // pred_check_branch
        %291 = sbr.rel (%p289) target = $region16
      $region15: #{trans_bottleneck.5} parent=11 // pred_region
        _
      $region16: #{trans_bottleneck.5} parent=11 // pred_fallthru
        _
      // Predicated region
      $region17: #{trans_bottleneck.5} parent=11 // pred_check
        %p292 = pneg %p169
      $region18: #{trans_bottleneck.5} parent=11 // pred_check_branch
        %294 = sbr.rel (%p292) target = $region20
      $region19: #{trans_bottleneck.5} parent=11 // pred_region
        _
      $region20: #{trans_bottleneck.5} parent=11 // pred_fallthru
        _
      // Predicated region
      $region21: #{trans_bottleneck.5} parent=11 // pred_check
        %p295 = pneg %p190
      $region22: #{trans_bottleneck.5} parent=11 // pred_check_branch
        %297 = sbr.rel (%p295) target = $region24
      $region23: #{trans_bottleneck.5} parent=11 // pred_region
        _
      $region24: #{trans_bottleneck.5} parent=11 // pred_fallthru
        _
    $region12: #{trans_bottleneck.5} parent=5 // pred_fallthru
      _
    %p298 = scmp.lt.s32.totalorder %s15, 4
    // Predicated region
    $region25: #{trans_bottleneck.5} parent=5 // pred_check
      %p299 = pneg %p298
    $region26: #{trans_bottleneck.5} parent=5 // pred_check_branch
      %301 = sbr.rel (%p299) target = $region28
    $region27: #{trans_bottleneck.5} parent=5 // pred_region
      // Predicated region
      $region29: #{trans_bottleneck.5} parent=27 // pred_check
        %p302 = pneg %p49
      $region30: #{trans_bottleneck.5} parent=27 // pred_check_branch
        %304 = sbr.rel (%p302) target = $region32
      $region31: #{trans_bottleneck.5} parent=27 // pred_region
        %s305 = smul.u32 8, %s23
        %p306 = scmp.lt.s32.totalorder %s22, 1
        %s307 = scalar_select %p306, %s22, 1
        %p308 = scmp.lt.s32.totalorder %s305, 15
        %s309 = scalar_select %p308, %s305, 15
        %s310 = smul.addr %s309, 2
        %s311 = smul.addr %s307, 32
        %s312 = sadd.s32 %s310, %s311
        %s313 = smul.addr %s312, 4
        %s314 = scalar_lea.vmem %s0, %s313
        %s315 = smul.u32 8, %s23
      $region32: #{trans_bottleneck.5} parent=27 // pred_fallthru
        _
      // Predicated region
      $region33: #{trans_bottleneck.5} parent=27 // pred_check
        %p316 = pneg %p85
      $region34: #{trans_bottleneck.5} parent=27 // pred_check_branch
        %318 = sbr.rel (%p316) target = $region36
      $region35: #{trans_bottleneck.5} parent=27 // pred_region
        %s319 = smul.u32 %s23, 8
        %s320 = ssub.s32 %s319, 1
        %p321 = scmp.gt.s32.totalorder %s320, 0
        %s322 = scalar_select %p321, %s320, 0
        %p323 = scmp.lt.s32.totalorder %s22, 1
        %s324 = scalar_select %p323, %s22, 1
        %p325 = scmp.lt.s32.totalorder %s322, 15
        %s326 = scalar_select %p325, %s322, 15
        %s327 = smul.addr %s326, 2
        %s328 = smul.addr %s324, 32
        %s329 = sadd.s32 %s327, %s328
        %s330 = smul.addr %s329, 4
        %s331 = scalar_lea.vmem %s1, %s330
        %s332 = smul.u32 %s23, 8
        %s333 = ssub.s32 %s332, 1
        %p334 = scmp.gt.s32.totalorder %s333, 0
        %s335 = scalar_select %p334, %s333, 0
      $region36: #{trans_bottleneck.5} parent=27 // pred_fallthru
        _
      // Predicated region
      $region37: #{trans_bottleneck.5} parent=27 // pred_check
        %p336 = pneg %p121
      $region38: #{trans_bottleneck.5} parent=27 // pred_check_branch
        %338 = sbr.rel (%p336) target = $region40
      $region39: #{trans_bottleneck.5} parent=27 // pred_region
        %s339 = sadd.s32 %s23, 1
        %s340 = smul.u32 %s339, 8
        %p341 = scmp.lt.s32.totalorder %s340, 15
        %s342 = scalar_select %p341, %s340, 15
        %p343 = scmp.lt.s32.totalorder %s22, 1
        %s344 = scalar_select %p343, %s22, 1
        %p345 = scmp.lt.s32.totalorder %s342, 15
        %s346 = scalar_select %p345, %s342, 15
        %s347 = smul.addr %s346, 2
        %s348 = smul.addr %s344, 32
        %s349 = sadd.s32 %s347, %s348
        %s350 = smul.addr %s349, 4
        %s351 = scalar_lea.vmem %s2, %s350
        %s352 = sadd.s32 %s23, 1
        %s353 = smul.u32 %s352, 8
        %p354 = scmp.lt.s32.totalorder %s353, 15
        %s355 = scalar_select %p354, %s353, 15
      $region40: #{trans_bottleneck.5} parent=27 // pred_fallthru
        _
    $region28: #{trans_bottleneck.5} parent=5 // pred_fallthru
      _
    %p356 = scmp.le.s32.totalorder 1, %s15
    %p357 = scmp.lt.s32.totalorder %s15, 5
    %p358 = pnand %p356, %p357
    %p359 = pneg %p358
    // Predicated region
    $region41: #{trans_bottleneck.5} parent=5 // pred_check
      _
    $region42: #{trans_bottleneck.5} parent=5 // pred_check_branch
      %361 = sbr.rel (%p358) target = $region44
    $region43: #{trans_bottleneck.5} parent=5 // pred_region
      %s362 = ssub.s32 %s15, 1
      %s363 = smul.u32 8, %s25
      %p364 = scmp.lt.s32.totalorder %s24, 1
      %s365 = scalar_select %p364, %s24, 1
      %p366 = scmp.lt.s32.totalorder %s363, 15
      %s367 = scalar_select %p366, %s363, 15
      %s368 = smul.addr %s367, 2
      %s369 = smul.addr %s365, 32
      %s370 = sadd.s32 %s368, %s369
      %s371 = smul.addr %s370, 4
      %s372 = scalar_lea.vmem %s0, %s371
      %p373 = pneg %p55
      %p374 = pneg %p52
      %s375 = smul.u32 %s25, 8
      %s376 = ssub.s32 %s375, 1
      %p377 = scmp.gt.s32.totalorder %s376, 0
      %s378 = scalar_select %p377, %s376, 0
      %p379 = scmp.lt.s32.totalorder %s24, 1
      %s380 = scalar_select %p379, %s24, 1
      %p381 = scmp.lt.s32.totalorder %s378, 15
      %s382 = scalar_select %p381, %s378, 15
      %s383 = smul.addr %s382, 2
      %s384 = smul.addr %s380, 32
      %s385 = sadd.s32 %s383, %s384
      %s386 = smul.addr %s385, 4
      %s387 = scalar_lea.vmem %s1, %s386
      %p388 = pneg %p91
      %p389 = pneg %p88
      %s390 = sadd.s32 %s25, 1
      %s391 = smul.u32 %s390, 8
      %p392 = scmp.lt.s32.totalorder %s391, 15
      %s393 = scalar_select %p392, %s391, 15
      %p394 = scmp.lt.s32.totalorder %s24, 1
      %s395 = scalar_select %p394, %s24, 1
      %p396 = scmp.lt.s32.totalorder %s393, 15
      %s397 = scalar_select %p396, %s393, 15
      %s398 = smul.addr %s397, 2
      %s399 = smul.addr %s395, 32
      %s400 = sadd.s32 %s398, %s399
      %s401 = smul.addr %s400, 4
      %s402 = scalar_lea.vmem %s2, %s401
      %p403 = pneg %p127
      %p404 = pneg %p124
      %p405 = pneg %p148
      %p406 = pneg %p145
      %p407 = pneg %p169
      %p408 = pneg %p166
      %p409 = pneg %p190
      %p410 = pneg %p187
      %p411 = pneg %p218
      %p412 = pneg %p215
      %s413 = smul.u32 8, %s25
      %p414 = scmp.lt.s32.totalorder %s24, 1
      %s415 = scalar_select %p414, %s24, 1
      %p416 = scmp.lt.s32.totalorder %s413, 15
      %s417 = scalar_select %p416, %s413, 15
      %s418 = smul.addr %s417, 2
      %s419 = smul.addr %s415, 32
      %s420 = sadd.s32 %s418, %s419
      %s421 = smul.addr %s420, 4
      %s422 = scalar_lea.vmem %s6, %s421
      %p423 = pneg %p246
      %p424 = pneg %p243
      %p425 = scmp.lt.s32.totalorder %s24, 1
      %s426 = scalar_select %p425, %s24, 1
      %p427 = scmp.lt.s32.totalorder %s25, 1
      %s428 = scalar_select %p427, %s25, 1
      %s429 = smul.addr %s426, 2
      %s430 = sadd.s32 %s428, %s429
      %s431 = scalar_lea.vmem %s7, %s430
      %p432 = pneg %p274
      %p433 = pneg %p271
      %p434 = scmp.lt.s32.totalorder %s24, 1
      %s435 = scalar_select %p434, %s24, 1
      %p436 = scmp.lt.s32.totalorder %s25, 1
      %s437 = scalar_select %p436, %s25, 1
      %s438 = smul.addr %s435, 2
      %s439 = sadd.s32 %s437, %s438
      %s440 = scalar_lea.vmem %s8, %s439
      %s441 = smul.u32 8, %s25
      %p442 = scmp.lt.s32.totalorder %s24, 1
      %s443 = scalar_select %p442, %s24, 1
      %p444 = scmp.lt.s32.totalorder %s441, 15
      %s445 = scalar_select %p444, %s441, 15
      %s446 = smul.addr %s445, 2
      %s447 = smul.addr %s443, 32
      %s448 = sadd.s32 %s446, %s447
      %s449 = smul.addr %s448, 4
      %s450 = scalar_lea.vmem %s0, %s449
      %s451 = smul.u32 8, %s25
      %s452 = smul.u32 %s25, 8
      %s453 = ssub.s32 %s452, 1
      %p454 = scmp.gt.s32.totalorder %s453, 0
      %s455 = scalar_select %p454, %s453, 0
      %p456 = scmp.lt.s32.totalorder %s24, 1
      %s457 = scalar_select %p456, %s24, 1
      %p458 = scmp.lt.s32.totalorder %s455, 15
      %s459 = scalar_select %p458, %s455, 15
      %s460 = smul.addr %s459, 2
      %s461 = smul.addr %s457, 32
      %s462 = sadd.s32 %s460, %s461
      %s463 = smul.addr %s462, 4
      %s464 = scalar_lea.vmem %s1, %s463
      %s465 = smul.u32 %s25, 8
      %s466 = ssub.s32 %s465, 1
      %p467 = scmp.gt.s32.totalorder %s466, 0
      %s468 = scalar_select %p467, %s466, 0
      %s469 = sadd.s32 %s25, 1
      %s470 = smul.u32 %s469, 8
      %p471 = scmp.lt.s32.totalorder %s470, 15
      %s472 = scalar_select %p471, %s470, 15
      %p473 = scmp.lt.s32.totalorder %s24, 1
      %s474 = scalar_select %p473, %s24, 1
      %p475 = scmp.lt.s32.totalorder %s472, 15
      %s476 = scalar_select %p475, %s472, 15
      %s477 = smul.addr %s476, 2
      %s478 = smul.addr %s474, 32
      %s479 = sadd.s32 %s477, %s478
      %s480 = smul.addr %s479, 4
      %s481 = scalar_lea.vmem %s2, %s480
      %s482 = sadd.s32 %s25, 1
      %s483 = smul.u32 %s482, 8
      %p484 = scmp.lt.s32.totalorder %s483, 15
      %s485 = scalar_select %p484, %s483, 15
      %s486 = smul.u32 8, %s25
      %p487 = scmp.lt.s32.totalorder %s24, 1
      %s488 = scalar_select %p487, %s24, 1
      %p489 = scmp.lt.s32.totalorder %s486, 15
      %s490 = scalar_select %p489, %s486, 15
      %s491 = smul.addr %s490, 2
      %s492 = smul.addr %s488, 32
      %s493 = sadd.s32 %s491, %s492
      %s494 = smul.addr %s493, 4
      %s495 = scalar_lea.vmem %s6, %s494
      %s496 = smul.u32 8, %s25
      %p497 = scmp.lt.s32.totalorder %s24, 1
      %s498 = scalar_select %p497, %s24, 1
      %p499 = scmp.lt.s32.totalorder %s25, 1
      %s500 = scalar_select %p499, %s25, 1
      %s501 = smul.addr %s498, 2
      %s502 = sadd.s32 %s500, %s501
      %s503 = scalar_lea.vmem %s7, %s502
      %p504 = scmp.lt.s32.totalorder %s24, 1
      %s505 = scalar_select %p504, %s24, 1
      %p506 = scmp.lt.s32.totalorder %s25, 1
      %s507 = scalar_select %p506, %s25, 1
      %s508 = smul.addr %s505, 2
      %s509 = sadd.s32 %s507, %s508
      %s510 = scalar_lea.vmem %s8, %s509
      %v512 = vld [vmem:[%s3] sm:$0x1]
      %v513 = vld [vmem:[%s4] sm:$0x1]
      %514 = vst [vmem:[#allocation2] sm:$0x1] 0.0
      %515 = vst [vmem:[#allocation2 + $0x18] sm:$0x1] 0.0
      %516 = vst [vmem:[#allocation2 + $0x30] sm:$0x1] 0.0
      %517 = vst [vmem:[#allocation2 + $0x48] sm:$0x1] 0.0
      %518 = vst [vmem:[#allocation2 + $0x60] sm:$0x1] 0.0
      %519 = vst [vmem:[#allocation2 + $0x78] sm:$0x1] 0.0
      %520 = vst [vmem:[#allocation2 + $0x90] sm:$0x1] 0.0
      %521 = vst [vmem:[#allocation2 + $0xa8] sm:$0x1] 0.0
      %522 = vst [vmem:[#allocation2 + $0xc0] sm:$0x1] 0.0
      %523 = vst [vmem:[#allocation2 + $0xd8] sm:$0x1] 0.0
      %524 = vst [vmem:[#allocation2 + $0x11] sm:$0x1] 0.0
      %525 = vst [vmem:[#allocation2 + $0x29] sm:$0x1] 0.0
      %526 = vst [vmem:[#allocation2 + $0x41] sm:$0x1] 0.0
      %527 = vst [vmem:[#allocation2 + $0x59] sm:$0x1] 0.0
      %528 = vst [vmem:[#allocation2 + $0x71] sm:$0x1] 0.0
      %529 = vst [vmem:[#allocation2 + $0x89] sm:$0x1] 0.0
      %530 = vst [vmem:[#allocation2 + $0xa1] sm:$0x1] 0.0
      %531 = vst [vmem:[#allocation2 + $0xb9] sm:$0x1] 0.0
      %532 = vst [vmem:[#allocation2 + $0xd1] sm:$0x1] 0.0
      %533 = vst [vmem:[#allocation2 + $0xe9] sm:$0x1] 0.0
      %v534 = vld [vmem:[%s450] sm:$0xf]
      %v535 = vld [vmem:[%s450 + $0x4] sm:$0xf]
      %v536 = vld [vmem:[%s450 + $0x8] sm:$0xf]
      %v537 = vld [vmem:[%s450 + $0xc] sm:$0xf]
      %v538 = vld [vmem:[%s450 + $0x10] sm:$0xf]
      %v539 = vld [vmem:[%s450 + $0x14] sm:$0xf]
      %v540 = vld [vmem:[%s450 + $0x18] sm:$0xf]
      %v541 = vld [vmem:[%s450 + $0x1c] sm:$0xf]
      %v542 = vld [vmem:[%s450 + $0x20] sm:$0xf]
      %v543 = vld [vmem:[%s450 + $0x24] sm:$0xf]
      %v544 = vld [vmem:[%s450 + $0x28] sm:$0xf]
      %v545 = vld [vmem:[%s450 + $0x2c] sm:$0xf]
      %v546 = vld [vmem:[%s450 + $0x30] sm:$0xf]
      %v547 = vld [vmem:[%s450 + $0x34] sm:$0xf]
      %v548 = vld [vmem:[%s450 + $0x38] sm:$0xf]
      %v549 = vld [vmem:[%s450 + $0x3c] sm:$0xf]
      %v550 = vunpack.c.l.bf16 %v534
      %v551 = vunpack.c.l.bf16 %v535
      %v552 = vunpack.c.l.bf16 %v536
      %v553 = vunpack.c.l.bf16 %v537
      %v554 = vunpack.c.l.bf16 %v538
      %v555 = vunpack.c.l.bf16 %v539
      %v556 = vunpack.c.l.bf16 %v540
      %v557 = vunpack.c.l.bf16 %v541
      %v558 = vunpack.c.l.bf16 %v542
      %v559 = vunpack.c.l.bf16 %v543
      %v560 = vunpack.c.l.bf16 %v544
      %v561 = vunpack.c.l.bf16 %v545
      %v562 = vunpack.c.l.bf16 %v546
      %v563 = vunpack.c.l.bf16 %v547
      %v564 = vunpack.c.l.bf16 %v548
      %v565 = vunpack.c.l.bf16 %v549
      %v567 = vlaneseq
      %v568 = vshrl.u32 %v567, 7
      %v569 = vsub.s32 0, %v568
      %v570 = vrot.slane %v512, %v569
      %v572 = vmul.f32 %v550, %v570
      %v573 = vmul.f32 %v551, %v570
      %v574 = vmul.f32 %v552, %v570
      %v575 = vmul.f32 %v553, %v570
      %v576 = vmul.f32 %v554, %v570
      %v577 = vmul.f32 %v555, %v570
      %v578 = vmul.f32 %v556, %v570
      %v579 = vmul.f32 %v557, %v570
      %v580 = vmul.f32 %v558, %v570
      %v581 = vmul.f32 %v559, %v570
      %v582 = vmul.f32 %v560, %v570
      %v583 = vmul.f32 %v561, %v570
      %v584 = vmul.f32 %v562, %v570
      %v585 = vmul.f32 %v563, %v570
      %v586 = vmul.f32 %v564, %v570
      %v587 = vmul.f32 %v565, %v570
      %v589 = vlaneseq
      %v590 = vshrl.u32 %v589, 7
      %v591 = vsub.s32 0, %v590
      %v592 = vrot.slane %v513, %v591
      %v594 = vadd.f32 %v572, %v592
      %v595 = vadd.f32 %v573, %v592
      %v596 = vadd.f32 %v574, %v592
      %v597 = vadd.f32 %v575, %v592
      %v598 = vadd.f32 %v576, %v592
      %v599 = vadd.f32 %v577, %v592
      %v600 = vadd.f32 %v578, %v592
      %v601 = vadd.f32 %v579, %v592
      %v602 = vadd.f32 %v580, %v592
      %v603 = vadd.f32 %v581, %v592
      %v604 = vadd.f32 %v582, %v592
      %v605 = vadd.f32 %v583, %v592
      %v606 = vadd.f32 %v584, %v592
      %v607 = vadd.f32 %v585, %v592
      %v608 = vadd.f32 %v586, %v592
      %v609 = vadd.f32 %v587, %v592
      %v610 = vmax.f32 %v594, 0.0
      %v611 = vmax.f32 %v595, 0.0
      %v612 = vmax.f32 %v596, 0.0
      %v613 = vmax.f32 %v597, 0.0
      %v614 = vmax.f32 %v598, 0.0
      %v615 = vmax.f32 %v599, 0.0
      %v616 = vmax.f32 %v600, 0.0
      %v617 = vmax.f32 %v601, 0.0
      %v618 = vmax.f32 %v602, 0.0
      %v619 = vmax.f32 %v603, 0.0
      %v620 = vmax.f32 %v604, 0.0
      %v621 = vmax.f32 %v605, 0.0
      %v622 = vmax.f32 %v606, 0.0
      %v623 = vmax.f32 %v607, 0.0
      %v624 = vmax.f32 %v608, 0.0
      %v625 = vmax.f32 %v609, 0.0
      %s626 = scalar_lea.vmem [#allocation2], 24
      %627 = vst [vmem:[%s626 + $0x1] sm:$0xff] %v610
      %628 = vst [vmem:[%s626 + $0x9] sm:$0xff] %v611
      %629 = vst [vmem:[%s626 + $0x19] sm:$0xff] %v612
      %630 = vst [vmem:[%s626 + $0x21] sm:$0xff] %v613
      %631 = vst [vmem:[%s626 + $0x31] sm:$0xff] %v614
      %632 = vst [vmem:[%s626 + $0x39] sm:$0xff] %v615
      %633 = vst [vmem:[%s626 + $0x49] sm:$0xff] %v616
      %634 = vst [vmem:[%s626 + $0x51] sm:$0xff] %v617
      %635 = vst [vmem:[%s626 + $0x61] sm:$0xff] %v618
      %636 = vst [vmem:[%s626 + $0x69] sm:$0xff] %v619
      %637 = vst [vmem:[%s626 + $0x79] sm:$0xff] %v620
      %638 = vst [vmem:[%s626 + $0x81] sm:$0xff] %v621
      %639 = vst [vmem:[%s626 + $0x91] sm:$0xff] %v622
      %640 = vst [vmem:[%s626 + $0x99] sm:$0xff] %v623
      %641 = vst [vmem:[%s626 + $0xa9] sm:$0xff] %v624
      %642 = vst [vmem:[%s626 + $0xb1] sm:$0xff] %v625
      %p643 = scmp.gt.s32.totalorder %s25, 0
      %s644 = scalar_select %p643, 1, 0
      %s645 = scvt.s32.f32 %s644
      %p646 = scmp.lt.s32.totalorder %s25, 1
      %s647 = scalar_select %p646, 1, 0
      %s648 = scvt.s32.f32 %s647
      %v649 = vld [vmem:[%s464] sm:$0xf]
      %v650 = vld [vmem:[%s464 + $0x4] sm:$0xf]
      %v651 = vunpack.c.l.bf16 %v649
      %v652 = vunpack.c.l.bf16 %v650
      %v653 = vmul.f32 %v651, %v570
      %v654 = vmul.f32 %v652, %v570
      %v655 = vadd.f32 %v653, %v592
      %v656 = vadd.f32 %v654, %v592
      %v657 = vmax.f32 %v655, 0.0
      %v658 = vmax.f32 %v656, 0.0
      %v659 = vstv %s645
      %v660 = vmul.f32 %v657, %v659
      %v661 = vmul.f32 %v658, %v659
      %662 = vst [vmem:[#allocation2 + $0x1] sm:$0xff] %v660
      %663 = vst [vmem:[#allocation2 + $0x9] sm:$0xff] %v661
      %v664 = vld [vmem:[%s481] sm:$0xf]
      %v665 = vld [vmem:[%s481 + $0x4] sm:$0xf]
      %v666 = vunpack.c.l.bf16 %v664
      %v667 = vunpack.c.l.bf16 %v665
      %v668 = vmul.f32 %v666, %v570
      %v669 = vmul.f32 %v667, %v570
      %v670 = vadd.f32 %v668, %v592
      %v671 = vadd.f32 %v669, %v592
      %v672 = vmax.f32 %v670, 0.0
      %v673 = vmax.f32 %v671, 0.0
      %v674 = vstv %s648
      %v675 = vmul.f32 %v672, %v674
      %v676 = vmul.f32 %v673, %v674
      %s677 = scalar_lea.vmem [#allocation2], 216
      %678 = vst [vmem:[%s677 + $0x1] sm:$0xff] %v675
      %679 = vst [vmem:[%s677 + $0x9] sm:$0xff] %v676
      %v680 = vld [vmem:[#allocation2] sm:$0xff]
      %v681 = vld [vmem:[#allocation2 + $0x8] sm:$0xff]
      %v682 = vld [vmem:[#allocation2 + $0x18] sm:$0xff]
      %v683 = vld [vmem:[#allocation2 + $0x20] sm:$0xff]
      %v684 = vld [vmem:[#allocation2 + $0x30] sm:$0xff]
      %v685 = vld [vmem:[#allocation2 + $0x38] sm:$0xff]
      %v686 = vld [vmem:[#allocation2 + $0x48] sm:$0xff]
      %v687 = vld [vmem:[#allocation2 + $0x50] sm:$0xff]
      %v688 = vld [vmem:[#allocation2 + $0x60] sm:$0xff]
      %v689 = vld [vmem:[#allocation2 + $0x68] sm:$0xff]
      %v690 = vld [vmem:[#allocation2 + $0x78] sm:$0xff]
      %v691 = vld [vmem:[#allocation2 + $0x80] sm:$0xff]
      %v692 = vld [vmem:[#allocation2 + $0x90] sm:$0xff]
      %v693 = vld [vmem:[#allocation2 + $0x98] sm:$0xff]
      %v694 = vld [vmem:[#allocation2 + $0xa8] sm:$0xff]
      %v695 = vld [vmem:[#allocation2 + $0xb0] sm:$0xff]
      %v696 = vld [vmem:[#allocation2 + $0xc0] sm:$0xff]
      %v697 = vld [vmem:[#allocation2 + $0xc8] sm:$0xff]
      %v698 = vld [vmem:[#allocation2 + $0xd8] sm:$0xff]
      %v699 = vld [vmem:[#allocation2 + $0xe0] sm:$0xff]
      %v700 = vpack.c.bf16 %v681, %v680
      %v701 = vpack.c.bf16 %v683, %v682
      %v702 = vpack.c.bf16 %v685, %v684
      %v703 = vpack.c.bf16 %v687, %v686
      %v704 = vpack.c.bf16 %v689, %v688
      %v705 = vpack.c.bf16 %v691, %v690
      %v706 = vpack.c.bf16 %v693, %v692
      %v707 = vpack.c.bf16 %v695, %v694
      %v708 = vpack.c.bf16 %v697, %v696
      %v709 = vpack.c.bf16 %v699, %v698
      %v710 = vld [vmem:[#allocation2 + $0x1] sm:$0xff]
      %v711 = vld [vmem:[#allocation2 + $0x9] sm:$0xff]
      %v712 = vld [vmem:[#allocation2 + $0x19] sm:$0xff]
      %v713 = vld [vmem:[#allocation2 + $0x21] sm:$0xff]
      %v714 = vld [vmem:[#allocation2 + $0x31] sm:$0xff]
      %v715 = vld [vmem:[#allocation2 + $0x39] sm:$0xff]
      %v716 = vld [vmem:[#allocation2 + $0x49] sm:$0xff]
      %v717 = vld [vmem:[#allocation2 + $0x51] sm:$0xff]
      %v718 = vld [vmem:[#allocation2 + $0x61] sm:$0xff]
      %v719 = vld [vmem:[#allocation2 + $0x69] sm:$0xff]
      %v720 = vld [vmem:[#allocation2 + $0x79] sm:$0xff]
      %v721 = vld [vmem:[#allocation2 + $0x81] sm:$0xff]
      %v722 = vld [vmem:[#allocation2 + $0x91] sm:$0xff]
      %v723 = vld [vmem:[#allocation2 + $0x99] sm:$0xff]
      %v724 = vld [vmem:[#allocation2 + $0xa9] sm:$0xff]
      %v725 = vld [vmem:[#allocation2 + $0xb1] sm:$0xff]
      %v726 = vld [vmem:[#allocation2 + $0xc1] sm:$0xff]
      %v727 = vld [vmem:[#allocation2 + $0xc9] sm:$0xff]
      %v728 = vld [vmem:[#allocation2 + $0xd9] sm:$0xff]
      %v729 = vld [vmem:[#allocation2 + $0xe1] sm:$0xff]
      %v730 = vpack.c.bf16 %v711, %v710
      %v731 = vpack.c.bf16 %v713, %v712
      %v732 = vpack.c.bf16 %v715, %v714
      %v733 = vpack.c.bf16 %v717, %v716
      %v734 = vpack.c.bf16 %v719, %v718
      %v735 = vpack.c.bf16 %v721, %v720
      %v736 = vpack.c.bf16 %v723, %v722
      %v737 = vpack.c.bf16 %v725, %v724
      %v738 = vpack.c.bf16 %v727, %v726
      %v739 = vpack.c.bf16 %v729, %v728
      %v740 = vld [vmem:[#allocation2 + $0x2] sm:$0xff]
      %v741 = vld [vmem:[#allocation2 + $0xa] sm:$0xff]
      %v742 = vld [vmem:[#allocation2 + $0x1a] sm:$0xff]
      %v743 = vld [vmem:[#allocation2 + $0x22] sm:$0xff]
      %v744 = vld [vmem:[#allocation2 + $0x32] sm:$0xff]
      %v745 = vld [vmem:[#allocation2 + $0x3a] sm:$0xff]
      %v746 = vld [vmem:[#allocation2 + $0x4a] sm:$0xff]
      %v747 = vld [vmem:[#allocation2 + $0x52] sm:$0xff]
      %v748 = vld [vmem:[#allocation2 + $0x62] sm:$0xff]
      %v749 = vld [vmem:[#allocation2 + $0x6a] sm:$0xff]
      %v750 = vld [vmem:[#allocation2 + $0x7a] sm:$0xff]
      %v751 = vld [vmem:[#allocation2 + $0x82] sm:$0xff]
      %v752 = vld [vmem:[#allocation2 + $0x92] sm:$0xff]
      %v753 = vld [vmem:[#allocation2 + $0x9a] sm:$0xff]
      %v754 = vld [vmem:[#allocation2 + $0xaa] sm:$0xff]
      %v755 = vld [vmem:[#allocation2 + $0xb2] sm:$0xff]
      %v756 = vld [vmem:[#allocation2 + $0xc2] sm:$0xff]
      %v757 = vld [vmem:[#allocation2 + $0xca] sm:$0xff]
      %v758 = vld [vmem:[#allocation2 + $0xda] sm:$0xff]
      %v759 = vld [vmem:[#allocation2 + $0xe2] sm:$0xff]
      %v760 = vpack.c.bf16 %v741, %v740
      %v761 = vpack.c.bf16 %v743, %v742
      %v762 = vpack.c.bf16 %v745, %v744
      %v763 = vpack.c.bf16 %v747, %v746
      %v764 = vpack.c.bf16 %v749, %v748
      %v765 = vpack.c.bf16 %v751, %v750
      %v766 = vpack.c.bf16 %v753, %v752
      %v767 = vpack.c.bf16 %v755, %v754
      %v768 = vpack.c.bf16 %v757, %v756
      %v769 = vpack.c.bf16 %v759, %v758
      %v770 = vld [vmem:[%s5] sm:$0xf]
      %v771 = vld [vmem:[%s5 + $0x4] sm:$0xf]
      %v772 = vld [vmem:[%s5 + $0x8] sm:$0xf]
      %v773 = vld [vmem:[%s5 + $0xc] sm:$0xf]
      %v774 = vld [vmem:[%s5 + $0x10] sm:$0xf]
      %v775 = vld [vmem:[%s5 + $0x14] sm:$0xf]
      %v776 = vld [vmem:[%s5 + $0x18] sm:$0xf]
      %v777 = vld [vmem:[%s5 + $0x1c] sm:$0xf]
      %v778 = vld [vmem:[%s5 + $0x20] sm:$0xf]
      %v779 = vld [vmem:[%s5 + $0x24] sm:$0xf]
      %v780 = vld [vmem:[%s5 + $0x28] sm:$0xf]
      %v781 = vld [vmem:[%s5 + $0x2c] sm:$0xf]
      %v782 = vld [vmem:[%s5 + $0x30] sm:$0xf]
      %v783 = vld [vmem:[%s5 + $0x34] sm:$0xf]
      %v784 = vld [vmem:[%s5 + $0x38] sm:$0xf]
      %v785 = vld [vmem:[%s5 + $0x3c] sm:$0xf]
      %v786 = vld [vmem:[%s5 + $0x40] sm:$0xf]
      %v787 = vld [vmem:[%s5 + $0x44] sm:$0xf]
      %v788 = vld [vmem:[%s5 + $0x48] sm:$0xf]
      %v789 = vld [vmem:[%s5 + $0x4c] sm:$0xf]
      %v790 = vld [vmem:[%s5 + $0x50] sm:$0xf]
      %v791 = vld [vmem:[%s5 + $0x54] sm:$0xf]
      %v792 = vld [vmem:[%s5 + $0x58] sm:$0xf]
      %v793 = vld [vmem:[%s5 + $0x5c] sm:$0xf]
      %v794 = vld [vmem:[%s5 + $0x60] sm:$0xf]
      %v795 = vld [vmem:[%s5 + $0x64] sm:$0xf]
      %v796 = vld [vmem:[%s5 + $0x68] sm:$0xf]
      %v797 = vld [vmem:[%s5 + $0x6c] sm:$0xf]
      %v798 = vld [vmem:[%s5 + $0x70] sm:$0xf]
      %v799 = vld [vmem:[%s5 + $0x74] sm:$0xf]
      %v800 = vld [vmem:[%s5 + $0x78] sm:$0xf]
      %v801 = vld [vmem:[%s5 + $0x7c] sm:$0xf]
      %v802 = vld [vmem:[%s5 + $0x80] sm:$0xf]
      %v803 = vld [vmem:[%s5 + $0x84] sm:$0xf]
      %v804 = vld [vmem:[%s5 + $0x88] sm:$0xf]
      %v805 = vld [vmem:[%s5 + $0x8c] sm:$0xf]
      %v806 = vld [vmem:[%s5 + $0x90] sm:$0xf]
      %v807 = vld [vmem:[%s5 + $0x94] sm:$0xf]
      %v808 = vld [vmem:[%s5 + $0x98] sm:$0xf]
      %v809 = vld [vmem:[%s5 + $0x9c] sm:$0xf]
      %v810 = vld [vmem:[%s5 + $0xa0] sm:$0xf]
      %v811 = vld [vmem:[%s5 + $0xa4] sm:$0xf]
      %v812 = vld [vmem:[%s5 + $0xa8] sm:$0xf]
      %v813 = vld [vmem:[%s5 + $0xac] sm:$0xf]
      %v814 = vld [vmem:[%s5 + $0xb0] sm:$0xf]
      %v815 = vld [vmem:[%s5 + $0xb4] sm:$0xf]
      %v816 = vld [vmem:[%s5 + $0xb8] sm:$0xf]
      %v817 = vld [vmem:[%s5 + $0xbc] sm:$0xf]
      %s818 = scalar_lea.vmem %s5, 192
      %v819 = vld [vmem:[%s818] sm:$0xf]
      %v820 = vld [vmem:[%s818 + $0x4] sm:$0xf]
      %v821 = vld [vmem:[%s818 + $0x8] sm:$0xf]
      %v822 = vld [vmem:[%s818 + $0xc] sm:$0xf]
      %v823 = vld [vmem:[%s818 + $0x10] sm:$0xf]
      %v824 = vld [vmem:[%s818 + $0x14] sm:$0xf]
      %v825 = vld [vmem:[%s818 + $0x18] sm:$0xf]
      %v826 = vld [vmem:[%s818 + $0x1c] sm:$0xf]
      %v827 = vld [vmem:[%s818 + $0x20] sm:$0xf]
      %v828 = vld [vmem:[%s818 + $0x24] sm:$0xf]
      %v829 = vld [vmem:[%s818 + $0x28] sm:$0xf]
      %v830 = vld [vmem:[%s818 + $0x2c] sm:$0xf]
      %v831 = vld [vmem:[%s818 + $0x30] sm:$0xf]
      %v832 = vld [vmem:[%s818 + $0x34] sm:$0xf]
      %v833 = vld [vmem:[%s818 + $0x38] sm:$0xf]
      %v834 = vld [vmem:[%s818 + $0x3c] sm:$0xf]
      %v835 = vld [vmem:[%s818 + $0x40] sm:$0xf]
      %v836 = vld [vmem:[%s818 + $0x44] sm:$0xf]
      %v837 = vld [vmem:[%s818 + $0x48] sm:$0xf]
      %v838 = vld [vmem:[%s818 + $0x4c] sm:$0xf]
      %v839 = vld [vmem:[%s818 + $0x50] sm:$0xf]
      %v840 = vld [vmem:[%s818 + $0x54] sm:$0xf]
      %v841 = vld [vmem:[%s818 + $0x58] sm:$0xf]
      %v842 = vld [vmem:[%s818 + $0x5c] sm:$0xf]
      %v843 = vld [vmem:[%s818 + $0x60] sm:$0xf]
      %v844 = vld [vmem:[%s818 + $0x64] sm:$0xf]
      %v845 = vld [vmem:[%s818 + $0x68] sm:$0xf]
      %v846 = vld [vmem:[%s818 + $0x6c] sm:$0xf]
      %v847 = vld [vmem:[%s818 + $0x70] sm:$0xf]
      %v848 = vld [vmem:[%s818 + $0x74] sm:$0xf]
      %v849 = vld [vmem:[%s818 + $0x78] sm:$0xf]
      %v850 = vld [vmem:[%s818 + $0x7c] sm:$0xf]
      %v851 = vld [vmem:[%s818 + $0x80] sm:$0xf]
      %v852 = vld [vmem:[%s818 + $0x84] sm:$0xf]
      %v853 = vld [vmem:[%s818 + $0x88] sm:$0xf]
      %v854 = vld [vmem:[%s818 + $0x8c] sm:$0xf]
      %v855 = vld [vmem:[%s818 + $0x90] sm:$0xf]
      %v856 = vld [vmem:[%s818 + $0x94] sm:$0xf]
      %v857 = vld [vmem:[%s818 + $0x98] sm:$0xf]
      %v858 = vld [vmem:[%s818 + $0x9c] sm:$0xf]
      %v859 = vld [vmem:[%s818 + $0xa0] sm:$0xf]
      %v860 = vld [vmem:[%s818 + $0xa4] sm:$0xf]
      %v861 = vld [vmem:[%s818 + $0xa8] sm:$0xf]
      %v862 = vld [vmem:[%s818 + $0xac] sm:$0xf]
      %v863 = vld [vmem:[%s818 + $0xb0] sm:$0xf]
      %v864 = vld [vmem:[%s818 + $0xb4] sm:$0xf]
      %v865 = vld [vmem:[%s818 + $0xb8] sm:$0xf]
      %v866 = vld [vmem:[%s818 + $0xbc] sm:$0xf]
      %v915 = vunpack.c.l.b16 %v819
      %v916 = vunpack.c.l.b16 %v820
      %v917 = vunpack.c.l.b16 %v821
      %v918 = vunpack.c.l.b16 %v822
      %v919 = vunpack.c.l.b16 %v823
      %v920 = vunpack.c.l.b16 %v824
      %v921 = vunpack.c.l.b16 %v825
      %v922 = vunpack.c.l.b16 %v826
      %v923 = vunpack.c.l.b16 %v827
      %v924 = vunpack.c.l.b16 %v828
      %v925 = vunpack.c.l.b16 %v829
      %v926 = vunpack.c.l.b16 %v830
      %v927 = vunpack.c.l.b16 %v831
      %v928 = vunpack.c.l.b16 %v832
      %v929 = vunpack.c.l.b16 %v833
      %v930 = vunpack.c.l.b16 %v834
      %v931 = vunpack.c.l.b16 %v835
      %v932 = vunpack.c.l.b16 %v836
      %v933 = vunpack.c.l.b16 %v837
      %v934 = vunpack.c.l.b16 %v838
      %v935 = vunpack.c.l.b16 %v839
      %v936 = vunpack.c.l.b16 %v840
      %v937 = vunpack.c.l.b16 %v841
      %v938 = vunpack.c.l.b16 %v842
      %v939 = vunpack.c.l.b16 %v843
      %v940 = vunpack.c.l.b16 %v844
      %v941 = vunpack.c.l.b16 %v845
      %v942 = vunpack.c.l.b16 %v846
      %v943 = vunpack.c.l.b16 %v847
      %v944 = vunpack.c.l.b16 %v848
      %v945 = vunpack.c.l.b16 %v849
      %v946 = vunpack.c.l.b16 %v850
      %v947 = vunpack.c.l.b16 %v851
      %v948 = vunpack.c.l.b16 %v852
      %v949 = vunpack.c.l.b16 %v853
      %v950 = vunpack.c.l.b16 %v854
      %v951 = vunpack.c.l.b16 %v855
      %v952 = vunpack.c.l.b16 %v856
      %v953 = vunpack.c.l.b16 %v857
      %v954 = vunpack.c.l.b16 %v858
      %v955 = vunpack.c.l.b16 %v859
      %v956 = vunpack.c.l.b16 %v860
      %v957 = vunpack.c.l.b16 %v861
      %v958 = vunpack.c.l.b16 %v862
      %v959 = vunpack.c.l.b16 %v863
      %v960 = vunpack.c.l.b16 %v864
      %v961 = vunpack.c.l.b16 %v865
      %v962 = vunpack.c.l.b16 %v866
      %v963 = vpack.c.b16 %v916, %v915
      %v964 = vpack.c.b16 %v918, %v917
      %v965 = vpack.c.b16 %v920, %v919
      %v966 = vpack.c.b16 %v922, %v921
      %v967 = vpack.c.b16 %v924, %v923
      %v968 = vpack.c.b16 %v926, %v925
      %v969 = vpack.c.b16 %v928, %v927
      %v970 = vpack.c.b16 %v930, %v929
      %v971 = vpack.c.b16 %v932, %v931
      %v972 = vpack.c.b16 %v934, %v933
      %v973 = vpack.c.b16 %v936, %v935
      %v974 = vpack.c.b16 %v938, %v937
      %v975 = vpack.c.b16 %v940, %v939
      %v976 = vpack.c.b16 %v942, %v941
      %v977 = vpack.c.b16 %v944, %v943
      %v978 = vpack.c.b16 %v946, %v945
      %v979 = vpack.c.b16 %v948, %v947
      %v980 = vpack.c.b16 %v950, %v949
      %v981 = vpack.c.b16 %v952, %v951
      %v982 = vpack.c.b16 %v954, %v953
      %v983 = vpack.c.b16 %v956, %v955
      %v984 = vpack.c.b16 %v958, %v957
      %v985 = vpack.c.b16 %v960, %v959
      %v986 = vpack.c.b16 %v962, %v961
      %1011 = vmatprep.subr.bf16.mxu0 0
      %1012 = vmatpush1.bf16.msra.mxu0 %v963
      %1013 = vmatprep.subr.bf16.mxu0 0
      %1014 = vmatpush1.bf16.msra.mxu0 %v964
      %1015 = vmatprep.subr.bf16.mxu0 0
      %1016 = vmatpush1.bf16.msra.mxu0 %v965
      %1017 = vmatprep.subr.bf16.mxu0 0
      %1018 = vmatpush1.bf16.msra.mxu0 %v966
      %1019 = vmatprep.subr.bf16.mxu0 0
      %1020 = vmatpush1.bf16.msra.mxu0 %v967
      %1021 = vmatprep.subr.bf16.mxu0 0
      %1022 = vmatpush1.bf16.msra.mxu0 %v968
      %1023 = vmatprep.subr.bf16.mxu0 0
      %1024 = vmatpush1.bf16.msra.mxu0 %v969
      %1025 = vmatprep.subr.bf16.mxu0 0
      %1026 = vmatpush1.bf16.msra.mxu0 %v970
      %1027 = vmatprep.subr.bf16.mxu0 0
      %1028 = vmatpush1.bf16.msra.mxu0 %v971
      %1029 = vmatprep.subr.bf16.mxu0 0
      %1030 = vmatpush1.bf16.msra.mxu0 %v972
      %1031 = vmatprep.subr.bf16.mxu0 0
      %1032 = vmatpush1.bf16.msra.mxu0 %v973
      %1033 = vmatprep.subr.bf16.mxu0 0
      %1034 = vmatpush1.bf16.msra.mxu0 %v974
      %1035 = vmatprep.subr.bf16.mxu0 0
      %1036 = vmatpush1.bf16.msra.mxu0 %v975
      %1037 = vmatprep.subr.bf16.mxu0 0
      %1038 = vmatpush1.bf16.msra.mxu0 %v976
      %1039 = vmatprep.subr.bf16.mxu0 0
      %1040 = vmatpush1.bf16.msra.mxu0 %v977
      %1041 = vmatprep.subr.bf16.mxu0 0
      %1042 = vmatpush1.bf16.msra.mxu0 %v978
      %1043 = vmatprep.mubr.bf16.mxu0 %v731
      %1044 = vmatmul.mubr.bf16.gmra.mrb[0].mxu0 %v701
      %v1045 = vpop.f32.mrb[0].mxu0
      %v1046 = vadd.f32 0.0, %v1045
      %v1047 = vpop.f32.mrb[0].mxu0
      %v1048 = vpop.f32.mrb[0].mxu0
      %v1049 = vadd.f32 0.0, %v1048
      %v1050 = vpop.f32.mrb[0].mxu0
      %1051 = vmatprep.mubr.bf16.mxu0 %v732
      %1052 = vmatmul.mubr.bf16.gmra.mrb[0].mxu0 %v702
      %v1053 = vpop.f32.mrb[0].mxu0
      %v1054 = vadd.f32 0.0, %v1053
      %v1055 = vpop.f32.mrb[0].mxu0
      %v1056 = vpop.f32.mrb[0].mxu0
      %v1057 = vadd.f32 0.0, %v1056
      %v1058 = vpop.f32.mrb[0].mxu0
      %1059 = vmatprep.mubr.bf16.mxu0 %v733
      %1060 = vmatmul.mubr.bf16.gmra.mrb[0].mxu0 %v703
      %v1061 = vpop.f32.mrb[0].mxu0
      %v1062 = vadd.f32 0.0, %v1061
      %v1063 = vpop.f32.mrb[0].mxu0
      %v1064 = vpop.f32.mrb[0].mxu0
      %v1065 = vadd.f32 0.0, %v1064
      %v1066 = vpop.f32.mrb[0].mxu0
      %1067 = vmatprep.mubr.bf16.mxu0 %v734
      %1068 = vmatmul.mubr.bf16.gmra.mrb[0].mxu0 %v704
      %v1069 = vpop.f32.mrb[0].mxu0
      %v1070 = vadd.f32 0.0, %v1069
      %v1071 = vpop.f32.mrb[0].mxu0
      %v1072 = vpop.f32.mrb[0].mxu0
      %v1073 = vadd.f32 0.0, %v1072
      %v1074 = vpop.f32.mrb[0].mxu0
      %1075 = vmatprep.mubr.bf16.mxu0 %v735
      %1076 = vmatmul.mubr.bf16.gmra.mrb[0].mxu0 %v705
      %v1077 = vpop.f32.mrb[0].mxu0
      %v1078 = vadd.f32 0.0, %v1077
      %v1079 = vpop.f32.mrb[0].mxu0
      %v1080 = vpop.f32.mrb[0].mxu0
      %v1081 = vadd.f32 0.0, %v1080
      %v1082 = vpop.f32.mrb[0].mxu0
      %1083 = vmatprep.mubr.bf16.mxu0 %v736
      %1084 = vmatmul.mubr.bf16.gmra.mrb[0].mxu0 %v706
      %v1085 = vpop.f32.mrb[0].mxu0
      %v1086 = vadd.f32 0.0, %v1085
      %v1087 = vpop.f32.mrb[0].mxu0
      %v1088 = vpop.f32.mrb[0].mxu0
      %v1089 = vadd.f32 0.0, %v1088
      %v1090 = vpop.f32.mrb[0].mxu0
      %1091 = vmatprep.mubr.bf16.mxu0 %v737
      %1092 = vmatmul.mubr.bf16.gmra.mrb[0].mxu0 %v707
      %v1093 = vpop.f32.mrb[0].mxu0
      %v1094 = vadd.f32 0.0, %v1093
      %v1095 = vpop.f32.mrb[0].mxu0
      %v1096 = vpop.f32.mrb[0].mxu0
      %v1097 = vadd.f32 0.0, %v1096
      %v1098 = vpop.f32.mrb[0].mxu0
      %1099 = vmatprep.mubr.bf16.mxu0 %v738
      %1100 = vmatmul.mubr.bf16.gmra.mrb[0].mxu0 %v708
      %v1101 = vpop.f32.mrb[0].mxu0
      %v1102 = vadd.f32 0.0, %v1101
      %v1103 = vpop.f32.mrb[0].mxu0
      %v1104 = vpop.f32.mrb[0].mxu0
      %v1105 = vadd.f32 0.0, %v1104
      %v1106 = vpop.f32.mrb[0].mxu0
      %1107 = vdwg.mxu0
      %1108 = vmatprep.subr.bf16.mxu0 0
      %1109 = vmatpush1.bf16.msra.mxu0 %v979
      %1110 = vmatprep.subr.bf16.mxu0 0
      %1111 = vmatpush1.bf16.msra.mxu0 %v980
      %1112 = vmatprep.subr.bf16.mxu0 0
      %1113 = vmatpush1.bf16.msra.mxu0 %v981
      %1114 = vmatprep.subr.bf16.mxu0 0
      %1115 = vmatpush1.bf16.msra.mxu0 %v982
      %1116 = vmatprep.subr.bf16.mxu0 0
      %1117 = vmatpush1.bf16.msra.mxu0 %v983
      %1118 = vmatprep.subr.bf16.mxu0 0
      %1119 = vmatpush1.bf16.msra.mxu0 %v984
      %1120 = vmatprep.subr.bf16.mxu0 0
      %1121 = vmatpush1.bf16.msra.mxu0 %v985
      %1122 = vmatprep.subr.bf16.mxu0 0
      %1123 = vmatpush1.bf16.msra.mxu0 %v986
      %1124 = vmatprep.subr.bf16.mxu0 0
      %1125 = vmatpush1.bf16.msra.mxu0 0
      %1126 = vmatprep.subr.bf16.mxu0 0
      %1127 = vmatpush1.bf16.msra.mxu0 0
      %1128 = vmatprep.subr.bf16.mxu0 0
      %1129 = vmatpush1.bf16.msra.mxu0 0
      %1130 = vmatprep.subr.bf16.mxu0 0
      %1131 = vmatpush1.bf16.msra.mxu0 0
      %1132 = vmatprep.subr.bf16.mxu0 0
      %1133 = vmatpush1.bf16.msra.mxu0 0
      %1134 = vmatprep.subr.bf16.mxu0 0
      %1135 = vmatpush1.bf16.msra.mxu0 0
      %1136 = vmatprep.subr.bf16.mxu0 0
      %1137 = vmatpush1.bf16.msra.mxu0 0
      %1138 = vmatprep.subr.bf16.mxu0 0
      %1139 = vmatpush1.bf16.msra.mxu0 0
      %1140 = vmatprep.mubr.bf16.mxu0 0
      %1141 = vmatmul.mubr.bf16.gmra.mrb[0].mxu0 %v761
      %v1142 = vpop.f32.mrb[0].mxu0
      %v1143 = vadd.f32 %v1046, %v1142
      %v1144 = vpop.f32.mrb[0].mxu0
      %v1145 = vpop.f32.mrb[0].mxu0
      %v1146 = vadd.f32 %v1049, %v1145
      %v1147 = vpop.f32.mrb[0].mxu0
      %1148 = vmatprep.mubr.bf16.mxu0 0
      %1149 = vmatmul.mubr.bf16.gmra.mrb[0].mxu0 %v762
      %v1150 = vpop.f32.mrb[0].mxu0
      %v1151 = vadd.f32 %v1054, %v1150
      %v1152 = vpop.f32.mrb[0].mxu0
      %v1153 = vpop.f32.mrb[0].mxu0
      %v1154 = vadd.f32 %v1057, %v1153
      %v1155 = vpop.f32.mrb[0].mxu0
      %1156 = vmatprep.mubr.bf16.mxu0 0
      %1157 = vmatmul.mubr.bf16.gmra.mrb[0].mxu0 %v763
      %v1158 = vpop.f32.mrb[0].mxu0
      %v1159 = vadd.f32 %v1062, %v1158
      %v1160 = vpop.f32.mrb[0].mxu0
      %v1161 = vpop.f32.mrb[0].mxu0
      %v1162 = vadd.f32 %v1065, %v1161
      %v1163 = vpop.f32.mrb[0].mxu0
      %1164 = vmatprep.mubr.bf16.mxu0 0
      %1165 = vmatmul.mubr.bf16.gmra.mrb[0].mxu0 %v764
      %v1166 = vpop.f32.mrb[0].mxu0
      %v1167 = vadd.f32 %v1070, %v1166
      %v1168 = vpop.f32.mrb[0].mxu0
      %v1169 = vpop.f32.mrb[0].mxu0
      %v1170 = vadd.f32 %v1073, %v1169
      %v1171 = vpop.f32.mrb[0].mxu0
      %1172 = vmatprep.mubr.bf16.mxu0 0
      %1173 = vmatmul.mubr.bf16.gmra.mrb[0].mxu0 %v765
      %v1174 = vpop.f32.mrb[0].mxu0
      %v1175 = vadd.f32 %v1078, %v1174
      %v1176 = vpop.f32.mrb[0].mxu0
      %v1177 = vpop.f32.mrb[0].mxu0
      %v1178 = vadd.f32 %v1081, %v1177
      %v1179 = vpop.f32.mrb[0].mxu0
      %1180 = vmatprep.mubr.bf16.mxu0 0
      %1181 = vmatmul.mubr.bf16.gmra.mrb[0].mxu0 %v766
      %v1182 = vpop.f32.mrb[0].mxu0
      %v1183 = vadd.f32 %v1086, %v1182
      %v1184 = vpop.f32.mrb[0].mxu0
      %v1185 = vpop.f32.mrb[0].mxu0
      %v1186 = vadd.f32 %v1089, %v1185
      %v1187 = vpop.f32.mrb[0].mxu0
      %1188 = vmatprep.mubr.bf16.mxu0 0
      %1189 = vmatmul.mubr.bf16.gmra.mrb[0].mxu0 %v767
      %v1190 = vpop.f32.mrb[0].mxu0
      %v1191 = vadd.f32 %v1094, %v1190
      %v1192 = vpop.f32.mrb[0].mxu0
      %v1193 = vpop.f32.mrb[0].mxu0
      %v1194 = vadd.f32 %v1097, %v1193
      %v1195 = vpop.f32.mrb[0].mxu0
      %1196 = vmatprep.mubr.bf16.mxu0 0
      %1197 = vmatmul.mubr.bf16.gmra.mrb[0].mxu0 %v768
      %v1198 = vpop.f32.mrb[0].mxu0
      %v1199 = vadd.f32 %v1102, %v1198
      %v1200 = vpop.f32.mrb[0].mxu0
      %v1201 = vpop.f32.mrb[0].mxu0
      %v1202 = vadd.f32 %v1105, %v1201
      %v1203 = vpop.f32.mrb[0].mxu0
      %1204 = vdwg.mxu0
      %v1253 = vunpack.c.l.b16 %v770
      %v1254 = vunpack.c.l.b16 %v771
      %v1255 = vunpack.c.l.b16 %v772
      %v1256 = vunpack.c.l.b16 %v773
      %v1257 = vunpack.c.l.b16 %v774
      %v1258 = vunpack.c.l.b16 %v775
      %v1259 = vunpack.c.l.b16 %v776
      %v1260 = vunpack.c.l.b16 %v777
      %v1261 = vunpack.c.l.b16 %v778
      %v1262 = vunpack.c.l.b16 %v779
      %v1263 = vunpack.c.l.b16 %v780
      %v1264 = vunpack.c.l.b16 %v781
      %v1265 = vunpack.c.l.b16 %v782
      %v1266 = vunpack.c.l.b16 %v783
      %v1267 = vunpack.c.l.b16 %v784
      %v1268 = vunpack.c.l.b16 %v785
      %v1269 = vunpack.c.l.b16 %v786
      %v1270 = vunpack.c.l.b16 %v787
      %v1271 = vunpack.c.l.b16 %v788
      %v1272 = vunpack.c.l.b16 %v789
      %v1273 = vunpack.c.l.b16 %v790
      %v1274 = vunpack.c.l.b16 %v791
      %v1275 = vunpack.c.l.b16 %v792
      %v1276 = vunpack.c.l.b16 %v793
      %v1277 = vunpack.c.l.b16 %v794
      %v1278 = vunpack.c.l.b16 %v795
      %v1279 = vunpack.c.l.b16 %v796
      %v1280 = vunpack.c.l.b16 %v797
      %v1281 = vunpack.c.l.b16 %v798
      %v1282 = vunpack.c.l.b16 %v799
      %v1283 = vunpack.c.l.b16 %v800
      %v1284 = vunpack.c.l.b16 %v801
      %v1285 = vunpack.c.l.b16 %v802
      %v1286 = vunpack.c.l.b16 %v803
      %v1287 = vunpack.c.l.b16 %v804
      %v1288 = vunpack.c.l.b16 %v805
      %v1289 = vunpack.c.l.b16 %v806
      %v1290 = vunpack.c.l.b16 %v807
      %v1291 = vunpack.c.l.b16 %v808
      %v1292 = vunpack.c.l.b16 %v809
      %v1293 = vunpack.c.l.b16 %v810
      %v1294 = vunpack.c.l.b16 %v811
      %v1295 = vunpack.c.l.b16 %v812
      %v1296 = vunpack.c.l.b16 %v813
      %v1297 = vunpack.c.l.b16 %v814
      %v1298 = vunpack.c.l.b16 %v815
      %v1299 = vunpack.c.l.b16 %v816
      %v1300 = vunpack.c.l.b16 %v817
      %v1301 = vpack.c.b16 %v1254, %v1253
      %v1302 = vpack.c.b16 %v1256, %v1255
      %v1303 = vpack.c.b16 %v1258, %v1257
      %v1304 = vpack.c.b16 %v1260, %v1259
      %v1305 = vpack.c.b16 %v1262, %v1261
      %v1306 = vpack.c.b16 %v1264, %v1263
      %v1307 = vpack.c.b16 %v1266, %v1265
      %v1308 = vpack.c.b16 %v1268, %v1267
      %v1309 = vpack.c.b16 %v1270, %v1269
      %v1310 = vpack.c.b16 %v1272, %v1271
      %v1311 = vpack.c.b16 %v1274, %v1273
      %v1312 = vpack.c.b16 %v1276, %v1275
      %v1313 = vpack.c.b16 %v1278, %v1277
      %v1314 = vpack.c.b16 %v1280, %v1279
      %v1315 = vpack.c.b16 %v1282, %v1281
      %v1316 = vpack.c.b16 %v1284, %v1283
      %v1317 = vpack.c.b16 %v1286, %v1285
      %v1318 = vpack.c.b16 %v1288, %v1287
      %v1319 = vpack.c.b16 %v1290, %v1289
      %v1320 = vpack.c.b16 %v1292, %v1291
      %v1321 = vpack.c.b16 %v1294, %v1293
      %v1322 = vpack.c.b16 %v1296, %v1295
      %v1323 = vpack.c.b16 %v1298, %v1297
      %v1324 = vpack.c.b16 %v1300, %v1299
      %1349 = vmatprep.subr.bf16.mxu0 0
      %1350 = vmatpush1.bf16.msra.mxu0 %v1301
      %1351 = vmatprep.subr.bf16.mxu0 0
      %1352 = vmatpush1.bf16.msra.mxu0 %v1302
      %1353 = vmatprep.subr.bf16.mxu0 0
      %1354 = vmatpush1.bf16.msra.mxu0 %v1303
      %1355 = vmatprep.subr.bf16.mxu0 0
      %1356 = vmatpush1.bf16.msra.mxu0 %v1304
      %1357 = vmatprep.subr.bf16.mxu0 0
      %1358 = vmatpush1.bf16.msra.mxu0 %v1305
      %1359 = vmatprep.subr.bf16.mxu0 0
      %1360 = vmatpush1.bf16.msra.mxu0 %v1306
      %1361 = vmatprep.subr.bf16.mxu0 0
      %1362 = vmatpush1.bf16.msra.mxu0 %v1307
      %1363 = vmatprep.subr.bf16.mxu0 0
      %1364 = vmatpush1.bf16.msra.mxu0 %v1308
      %1365 = vmatprep.subr.bf16.mxu0 0
      %1366 = vmatpush1.bf16.msra.mxu0 %v1309
      %1367 = vmatprep.subr.bf16.mxu0 0
      %1368 = vmatpush1.bf16.msra.mxu0 %v1310
      %1369 = vmatprep.subr.bf16.mxu0 0
      %1370 = vmatpush1.bf16.msra.mxu0 %v1311
      %1371 = vmatprep.subr.bf16.mxu0 0
      %1372 = vmatpush1.bf16.msra.mxu0 %v1312
      %1373 = vmatprep.subr.bf16.mxu0 0
      %1374 = vmatpush1.bf16.msra.mxu0 %v1313
      %1375 = vmatprep.subr.bf16.mxu0 0
      %1376 = vmatpush1.bf16.msra.mxu0 %v1314
      %1377 = vmatprep.subr.bf16.mxu0 0
      %1378 = vmatpush1.bf16.msra.mxu0 %v1315
      %1379 = vmatprep.subr.bf16.mxu0 0
      %1380 = vmatpush1.bf16.msra.mxu0 %v1316
      %1381 = vmatprep.mubr.bf16.mxu0 %v730
      %1382 = vmatmul.mubr.bf16.gmra.mrb[0].mxu0 %v700
      %v1383 = vpop.f32.mrb[0].mxu0
      %v1384 = vadd.f32 %v1143, %v1383
      %v1385 = vpop.f32.mrb[0].mxu0
      %v1386 = vpop.f32.mrb[0].mxu0
      %v1387 = vadd.f32 %v1146, %v1386
      %v1388 = vpop.f32.mrb[0].mxu0
      %1389 = vmatprep.mubr.bf16.mxu0 %v731
      %1390 = vmatmul.mubr.bf16.gmra.mrb[0].mxu0 %v701
      %v1391 = vpop.f32.mrb[0].mxu0
      %v1392 = vadd.f32 %v1151, %v1391
      %v1393 = vpop.f32.mrb[0].mxu0
      %v1394 = vpop.f32.mrb[0].mxu0
      %v1395 = vadd.f32 %v1154, %v1394
      %v1396 = vpop.f32.mrb[0].mxu0
      %1397 = vmatprep.mubr.bf16.mxu0 %v732
      %1398 = vmatmul.mubr.bf16.gmra.mrb[0].mxu0 %v702
      %v1399 = vpop.f32.mrb[0].mxu0
      %v1400 = vadd.f32 %v1159, %v1399
      %v1401 = vpop.f32.mrb[0].mxu0
      %v1402 = vpop.f32.mrb[0].mxu0
      %v1403 = vadd.f32 %v1162, %v1402
      %v1404 = vpop.f32.mrb[0].mxu0
      %1405 = vmatprep.mubr.bf16.mxu0 %v733
      %1406 = vmatmul.mubr.bf16.gmra.mrb[0].mxu0 %v703
      %v1407 = vpop.f32.mrb[0].mxu0
      %v1408 = vadd.f32 %v1167, %v1407
      %v1409 = vpop.f32.mrb[0].mxu0
      %v1410 = vpop.f32.mrb[0].mxu0
      %v1411 = vadd.f32 %v1170, %v1410
      %v1412 = vpop.f32.mrb[0].mxu0
      %1413 = vmatprep.mubr.bf16.mxu0 %v734
      %1414 = vmatmul.mubr.bf16.gmra.mrb[0].mxu0 %v704
      %v1415 = vpop.f32.mrb[0].mxu0
      %v1416 = vadd.f32 %v1175, %v1415
      %v1417 = vpop.f32.mrb[0].mxu0
      %v1418 = vpop.f32.mrb[0].mxu0
      %v1419 = vadd.f32 %v1178, %v1418
      %v1420 = vpop.f32.mrb[0].mxu0
      %1421 = vmatprep.mubr.bf16.mxu0 %v735
      %1422 = vmatmul.mubr.bf16.gmra.mrb[0].mxu0 %v705
      %v1423 = vpop.f32.mrb[0].mxu0
      %v1424 = vadd.f32 %v1183, %v1423
      %v1425 = vpop.f32.mrb[0].mxu0
      %v1426 = vpop.f32.mrb[0].mxu0
      %v1427 = vadd.f32 %v1186, %v1426
      %v1428 = vpop.f32.mrb[0].mxu0
      %1429 = vmatprep.mubr.bf16.mxu0 %v736
      %1430 = vmatmul.mubr.bf16.gmra.mrb[0].mxu0 %v706
      %v1431 = vpop.f32.mrb[0].mxu0
      %v1432 = vadd.f32 %v1191, %v1431
      %v1433 = vpop.f32.mrb[0].mxu0
      %v1434 = vpop.f32.mrb[0].mxu0
      %v1435 = vadd.f32 %v1194, %v1434
      %v1436 = vpop.f32.mrb[0].mxu0
      %1437 = vmatprep.mubr.bf16.mxu0 %v737
      %1438 = vmatmul.mubr.bf16.gmra.mrb[0].mxu0 %v707
      %v1439 = vpop.f32.mrb[0].mxu0
      %v1440 = vadd.f32 %v1199, %v1439
      %v1441 = vpop.f32.mrb[0].mxu0
      %v1442 = vpop.f32.mrb[0].mxu0
      %v1443 = vadd.f32 %v1202, %v1442
      %v1444 = vpop.f32.mrb[0].mxu0
      %1445 = vdwg.mxu0
      %1446 = vmatprep.subr.bf16.mxu0 0
      %1447 = vmatpush1.bf16.msra.mxu0 %v1317
      %1448 = vmatprep.subr.bf16.mxu0 0
      %1449 = vmatpush1.bf16.msra.mxu0 %v1318
      %1450 = vmatprep.subr.bf16.mxu0 0
      %1451 = vmatpush1.bf16.msra.mxu0 %v1319
      %1452 = vmatprep.subr.bf16.mxu0 0
      %1453 = vmatpush1.bf16.msra.mxu0 %v1320
      %1454 = vmatprep.subr.bf16.mxu0 0
      %1455 = vmatpush1.bf16.msra.mxu0 %v1321
      %1456 = vmatprep.subr.bf16.mxu0 0
      %1457 = vmatpush1.bf16.msra.mxu0 %v1322
      %1458 = vmatprep.subr.bf16.mxu0 0
      %1459 = vmatpush1.bf16.msra.mxu0 %v1323
      %1460 = vmatprep.subr.bf16.mxu0 0
      %1461 = vmatpush1.bf16.msra.mxu0 %v1324
      %1462 = vmatprep.subr.bf16.mxu0 0
      %1463 = vmatpush1.bf16.msra.mxu0 0
      %1464 = vmatprep.subr.bf16.mxu0 0
      %1465 = vmatpush1.bf16.msra.mxu0 0
      %1466 = vmatprep.subr.bf16.mxu0 0
      %1467 = vmatpush1.bf16.msra.mxu0 0
      %1468 = vmatprep.subr.bf16.mxu0 0
      %1469 = vmatpush1.bf16.msra.mxu0 0
      %1470 = vmatprep.subr.bf16.mxu0 0
      %1471 = vmatpush1.bf16.msra.mxu0 0
      %1472 = vmatprep.subr.bf16.mxu0 0
      %1473 = vmatpush1.bf16.msra.mxu0 0
      %1474 = vmatprep.subr.bf16.mxu0 0
      %1475 = vmatpush1.bf16.msra.mxu0 0
      %1476 = vmatprep.subr.bf16.mxu0 0
      %1477 = vmatpush1.bf16.msra.mxu0 0
      %1478 = vmatprep.mubr.bf16.mxu0 0
      %1479 = vmatmul.mubr.bf16.gmra.mrb[0].mxu0 %v760
      %v1480 = vpop.f32.mrb[0].mxu0
      %v1481 = vadd.f32 %v1384, %v1480
      %v1482 = vpop.f32.mrb[0].mxu0
      %v1483 = vpop.f32.mrb[0].mxu0
      %v1484 = vadd.f32 %v1387, %v1483
      %v1485 = vpop.f32.mrb[0].mxu0
      %1486 = vmatprep.mubr.bf16.mxu0 0
      %1487 = vmatmul.mubr.bf16.gmra.mrb[0].mxu0 %v761
      %v1488 = vpop.f32.mrb[0].mxu0
      %v1489 = vadd.f32 %v1392, %v1488
      %v1490 = vpop.f32.mrb[0].mxu0
      %v1491 = vpop.f32.mrb[0].mxu0
      %v1492 = vadd.f32 %v1395, %v1491
      %v1493 = vpop.f32.mrb[0].mxu0
      %1494 = vmatprep.mubr.bf16.mxu0 0
      %1495 = vmatmul.mubr.bf16.gmra.mrb[0].mxu0 %v762
      %v1496 = vpop.f32.mrb[0].mxu0
      %v1497 = vadd.f32 %v1400, %v1496
      %v1498 = vpop.f32.mrb[0].mxu0
      %v1499 = vpop.f32.mrb[0].mxu0
      %v1500 = vadd.f32 %v1403, %v1499
      %v1501 = vpop.f32.mrb[0].mxu0
      %1502 = vmatprep.mubr.bf16.mxu0 0
      %1503 = vmatmul.mubr.bf16.gmra.mrb[0].mxu0 %v763
      %v1504 = vpop.f32.mrb[0].mxu0
      %v1505 = vadd.f32 %v1408, %v1504
      %v1506 = vpop.f32.mrb[0].mxu0
      %v1507 = vpop.f32.mrb[0].mxu0
      %v1508 = vadd.f32 %v1411, %v1507
      %v1509 = vpop.f32.mrb[0].mxu0
      %1510 = vmatprep.mubr.bf16.mxu0 0
      %1511 = vmatmul.mubr.bf16.gmra.mrb[0].mxu0 %v764
      %v1512 = vpop.f32.mrb[0].mxu0
      %v1513 = vadd.f32 %v1416, %v1512
      %v1514 = vpop.f32.mrb[0].mxu0
      %v1515 = vpop.f32.mrb[0].mxu0
      %v1516 = vadd.f32 %v1419, %v1515
      %v1517 = vpop.f32.mrb[0].mxu0
      %1518 = vmatprep.mubr.bf16.mxu0 0
      %1519 = vmatmul.mubr.bf16.gmra.mrb[0].mxu0 %v765
      %v1520 = vpop.f32.mrb[0].mxu0
      %v1521 = vadd.f32 %v1424, %v1520
      %v1522 = vpop.f32.mrb[0].mxu0
      %v1523 = vpop.f32.mrb[0].mxu0
      %v1524 = vadd.f32 %v1427, %v1523
      %v1525 = vpop.f32.mrb[0].mxu0
      %1526 = vmatprep.mubr.bf16.mxu0 0
      %1527 = vmatmul.mubr.bf16.gmra.mrb[0].mxu0 %v766
      %v1528 = vpop.f32.mrb[0].mxu0
      %v1529 = vadd.f32 %v1432, %v1528
      %v1530 = vpop.f32.mrb[0].mxu0
      %v1531 = vpop.f32.mrb[0].mxu0
      %v1532 = vadd.f32 %v1435, %v1531
      %v1533 = vpop.f32.mrb[0].mxu0
      %1534 = vmatprep.mubr.bf16.mxu0 0
      %1535 = vmatmul.mubr.bf16.gmra.mrb[0].mxu0 %v767
      %v1536 = vpop.f32.mrb[0].mxu0
      %v1537 = vadd.f32 %v1440, %v1536
      %v1538 = vpop.f32.mrb[0].mxu0
      %v1539 = vpop.f32.mrb[0].mxu0
      %v1540 = vadd.f32 %v1443, %v1539
      %v1541 = vpop.f32.mrb[0].mxu0
      %1542 = vdwg.mxu0
      %s1543 = scalar_lea.vmem %s5, 384
      %v1544 = vld [vmem:[%s1543] sm:$0xf]
      %v1545 = vld [vmem:[%s1543 + $0x4] sm:$0xf]
      %v1546 = vld [vmem:[%s1543 + $0x8] sm:$0xf]
      %v1547 = vld [vmem:[%s1543 + $0xc] sm:$0xf]
      %v1548 = vld [vmem:[%s1543 + $0x10] sm:$0xf]
      %v1549 = vld [vmem:[%s1543 + $0x14] sm:$0xf]
      %v1550 = vld [vmem:[%s1543 + $0x18] sm:$0xf]
      %v1551 = vld [vmem:[%s1543 + $0x1c] sm:$0xf]
      %v1552 = vld [vmem:[%s1543 + $0x20] sm:$0xf]
      %v1553 = vld [vmem:[%s1543 + $0x24] sm:$0xf]
      %v1554 = vld [vmem:[%s1543 + $0x28] sm:$0xf]
      %v1555 = vld [vmem:[%s1543 + $0x2c] sm:$0xf]
      %v1556 = vld [vmem:[%s1543 + $0x30] sm:$0xf]
      %v1557 = vld [vmem:[%s1543 + $0x34] sm:$0xf]
      %v1558 = vld [vmem:[%s1543 + $0x38] sm:$0xf]
      %v1559 = vld [vmem:[%s1543 + $0x3c] sm:$0xf]
      %v1560 = vld [vmem:[%s1543 + $0x40] sm:$0xf]
      %v1561 = vld [vmem:[%s1543 + $0x44] sm:$0xf]
      %v1562 = vld [vmem:[%s1543 + $0x48] sm:$0xf]
      %v1563 = vld [vmem:[%s1543 + $0x4c] sm:$0xf]
      %v1564 = vld [vmem:[%s1543 + $0x50] sm:$0xf]
      %v1565 = vld [vmem:[%s1543 + $0x54] sm:$0xf]
      %v1566 = vld [vmem:[%s1543 + $0x58] sm:$0xf]
      %v1567 = vld [vmem:[%s1543 + $0x5c] sm:$0xf]
      %v1568 = vld [vmem:[%s1543 + $0x60] sm:$0xf]
      %v1569 = vld [vmem:[%s1543 + $0x64] sm:$0xf]
      %v1570 = vld [vmem:[%s1543 + $0x68] sm:$0xf]
      %v1571 = vld [vmem:[%s1543 + $0x6c] sm:$0xf]
      %v1572 = vld [vmem:[%s1543 + $0x70] sm:$0xf]
      %v1573 = vld [vmem:[%s1543 + $0x74] sm:$0xf]
      %v1574 = vld [vmem:[%s1543 + $0x78] sm:$0xf]
      %v1575 = vld [vmem:[%s1543 + $0x7c] sm:$0xf]
      %v1576 = vld [vmem:[%s1543 + $0x80] sm:$0xf]
      %v1577 = vld [vmem:[%s1543 + $0x84] sm:$0xf]
      %v1578 = vld [vmem:[%s1543 + $0x88] sm:$0xf]
      %v1579 = vld [vmem:[%s1543 + $0x8c] sm:$0xf]
      %v1580 = vld [vmem:[%s1543 + $0x90] sm:$0xf]
      %v1581 = vld [vmem:[%s1543 + $0x94] sm:$0xf]
      %v1582 = vld [vmem:[%s1543 + $0x98] sm:$0xf]
      %v1583 = vld [vmem:[%s1543 + $0x9c] sm:$0xf]
      %v1584 = vld [vmem:[%s1543 + $0xa0] sm:$0xf]
      %v1585 = vld [vmem:[%s1543 + $0xa4] sm:$0xf]
      %v1586 = vld [vmem:[%s1543 + $0xa8] sm:$0xf]
      %v1587 = vld [vmem:[%s1543 + $0xac] sm:$0xf]
      %v1588 = vld [vmem:[%s1543 + $0xb0] sm:$0xf]
      %v1589 = vld [vmem:[%s1543 + $0xb4] sm:$0xf]
      %v1590 = vld [vmem:[%s1543 + $0xb8] sm:$0xf]
      %v1591 = vld [vmem:[%s1543 + $0xbc] sm:$0xf]
      %v1640 = vunpack.c.l.b16 %v1544
      %v1641 = vunpack.c.l.b16 %v1545
      %v1642 = vunpack.c.l.b16 %v1546
      %v1643 = vunpack.c.l.b16 %v1547
      %v1644 = vunpack.c.l.b16 %v1548
      %v1645 = vunpack.c.l.b16 %v1549
      %v1646 = vunpack.c.l.b16 %v1550
      %v1647 = vunpack.c.l.b16 %v1551
      %v1648 = vunpack.c.l.b16 %v1552
      %v1649 = vunpack.c.l.b16 %v1553
      %v1650 = vunpack.c.l.b16 %v1554
      %v1651 = vunpack.c.l.b16 %v1555
      %v1652 = vunpack.c.l.b16 %v1556
      %v1653 = vunpack.c.l.b16 %v1557
      %v1654 = vunpack.c.l.b16 %v1558
      %v1655 = vunpack.c.l.b16 %v1559
      %v1656 = vunpack.c.l.b16 %v1560
      %v1657 = vunpack.c.l.b16 %v1561
      %v1658 = vunpack.c.l.b16 %v1562
      %v1659 = vunpack.c.l.b16 %v1563
      %v1660 = vunpack.c.l.b16 %v1564
      %v1661 = vunpack.c.l.b16 %v1565
      %v1662 = vunpack.c.l.b16 %v1566
      %v1663 = vunpack.c.l.b16 %v1567
      %v1664 = vunpack.c.l.b16 %v1568
      %v1665 = vunpack.c.l.b16 %v1569
      %v1666 = vunpack.c.l.b16 %v1570
      %v1667 = vunpack.c.l.b16 %v1571
      %v1668 = vunpack.c.l.b16 %v1572
      %v1669 = vunpack.c.l.b16 %v1573
      %v1670 = vunpack.c.l.b16 %v1574
      %v1671 = vunpack.c.l.b16 %v1575
      %v1672 = vunpack.c.l.b16 %v1576
      %v1673 = vunpack.c.l.b16 %v1577
      %v1674 = vunpack.c.l.b16 %v1578
      %v1675 = vunpack.c.l.b16 %v1579
      %v1676 = vunpack.c.l.b16 %v1580
      %v1677 = vunpack.c.l.b16 %v1581
      %v1678 = vunpack.c.l.b16 %v1582
      %v1679 = vunpack.c.l.b16 %v1583
      %v1680 = vunpack.c.l.b16 %v1584
      %v1681 = vunpack.c.l.b16 %v1585
      %v1682 = vunpack.c.l.b16 %v1586
      %v1683 = vunpack.c.l.b16 %v1587
      %v1684 = vunpack.c.l.b16 %v1588
      %v1685 = vunpack.c.l.b16 %v1589
      %v1686 = vunpack.c.l.b16 %v1590
      %v1687 = vunpack.c.l.b16 %v1591
      %v1688 = vpack.c.b16 %v1641, %v1640
      %v1689 = vpack.c.b16 %v1643, %v1642
      %v1690 = vpack.c.b16 %v1645, %v1644
      %v1691 = vpack.c.b16 %v1647, %v1646
      %v1692 = vpack.c.b16 %v1649, %v1648
      %v1693 = vpack.c.b16 %v1651, %v1650
      %v1694 = vpack.c.b16 %v1653, %v1652
      %v1695 = vpack.c.b16 %v1655, %v1654
      %v1696 = vpack.c.b16 %v1657, %v1656
      %v1697 = vpack.c.b16 %v1659, %v1658
      %v1698 = vpack.c.b16 %v1661, %v1660
      %v1699 = vpack.c.b16 %v1663, %v1662
      %v1700 = vpack.c.b16 %v1665, %v1664
      %v1701 = vpack.c.b16 %v1667, %v1666
      %v1702 = vpack.c.b16 %v1669, %v1668
      %v1703 = vpack.c.b16 %v1671, %v1670
      %v1704 = vpack.c.b16 %v1673, %v1672
      %v1705 = vpack.c.b16 %v1675, %v1674
      %v1706 = vpack.c.b16 %v1677, %v1676
      %v1707 = vpack.c.b16 %v1679, %v1678
      %v1708 = vpack.c.b16 %v1681, %v1680
      %v1709 = vpack.c.b16 %v1683, %v1682
      %v1710 = vpack.c.b16 %v1685, %v1684
      %v1711 = vpack.c.b16 %v1687, %v1686
      %1736 = vmatprep.subr.bf16.mxu0 0
      %1737 = vmatpush1.bf16.msra.mxu0 %v1688
      %1738 = vmatprep.subr.bf16.mxu0 0
      %1739 = vmatpush1.bf16.msra.mxu0 %v1689
      %1740 = vmatprep.subr.bf16.mxu0 0
      %1741 = vmatpush1.bf16.msra.mxu0 %v1690
      %1742 = vmatprep.subr.bf16.mxu0 0
      %1743 = vmatpush1.bf16.msra.mxu0 %v1691
      %1744 = vmatprep.subr.bf16.mxu0 0
      %1745 = vmatpush1.bf16.msra.mxu0 %v1692
      %1746 = vmatprep.subr.bf16.mxu0 0
      %1747 = vmatpush1.bf16.msra.mxu0 %v1693
      %1748 = vmatprep.subr.bf16.mxu0 0
      %1749 = vmatpush1.bf16.msra.mxu0 %v1694
      %1750 = vmatprep.subr.bf16.mxu0 0
      %1751 = vmatpush1.bf16.msra.mxu0 %v1695
      %1752 = vmatprep.subr.bf16.mxu0 0
      %1753 = vmatpush1.bf16.msra.mxu0 %v1696
      %1754 = vmatprep.subr.bf16.mxu0 0
      %1755 = vmatpush1.bf16.msra.mxu0 %v1697
      %1756 = vmatprep.subr.bf16.mxu0 0
      %1757 = vmatpush1.bf16.msra.mxu0 %v1698
      %1758 = vmatprep.subr.bf16.mxu0 0
      %1759 = vmatpush1.bf16.msra.mxu0 %v1699
      %1760 = vmatprep.subr.bf16.mxu0 0
      %1761 = vmatpush1.bf16.msra.mxu0 %v1700
      %1762 = vmatprep.subr.bf16.mxu0 0
      %1763 = vmatpush1.bf16.msra.mxu0 %v1701
      %1764 = vmatprep.subr.bf16.mxu0 0
      %1765 = vmatpush1.bf16.msra.mxu0 %v1702
      %1766 = vmatprep.subr.bf16.mxu0 0
      %1767 = vmatpush1.bf16.msra.mxu0 %v1703
      %1768 = vmatprep.mubr.bf16.mxu0 %v732
      %1769 = vmatmul.mubr.bf16.gmra.mrb[0].mxu0 %v702
      %v1770 = vpop.f32.mrb[0].mxu0
      %v1771 = vadd.f32 0.0, %v1770
      %v1772 = vpop.f32.mrb[0].mxu0
      %v1773 = vpop.f32.mrb[0].mxu0
      %v1774 = vadd.f32 0.0, %v1773
      %v1775 = vpop.f32.mrb[0].mxu0
      %1776 = vmatprep.mubr.bf16.mxu0 %v733
      %1777 = vmatmul.mubr.bf16.gmra.mrb[0].mxu0 %v703
      %v1778 = vpop.f32.mrb[0].mxu0
      %v1779 = vadd.f32 0.0, %v1778
      %v1780 = vpop.f32.mrb[0].mxu0
      %v1781 = vpop.f32.mrb[0].mxu0
      %v1782 = vadd.f32 0.0, %v1781
      %v1783 = vpop.f32.mrb[0].mxu0
      %1784 = vmatprep.mubr.bf16.mxu0 %v734
      %1785 = vmatmul.mubr.bf16.gmra.mrb[0].mxu0 %v704
      %v1786 = vpop.f32.mrb[0].mxu0
      %v1787 = vadd.f32 0.0, %v1786
      %v1788 = vpop.f32.mrb[0].mxu0
      %v1789 = vpop.f32.mrb[0].mxu0
      %v1790 = vadd.f32 0.0, %v1789
      %v1791 = vpop.f32.mrb[0].mxu0
      %1792 = vmatprep.mubr.bf16.mxu0 %v735
      %1793 = vmatmul.mubr.bf16.gmra.mrb[0].mxu0 %v705
      %v1794 = vpop.f32.mrb[0].mxu0
      %v1795 = vadd.f32 0.0, %v1794
      %v1796 = vpop.f32.mrb[0].mxu0
      %v1797 = vpop.f32.mrb[0].mxu0
      %v1798 = vadd.f32 0.0, %v1797
      %v1799 = vpop.f32.mrb[0].mxu0
      %1800 = vmatprep.mubr.bf16.mxu0 %v736
      %1801 = vmatmul.mubr.bf16.gmra.mrb[0].mxu0 %v706
      %v1802 = vpop.f32.mrb[0].mxu0
      %v1803 = vadd.f32 0.0, %v1802
      %v1804 = vpop.f32.mrb[0].mxu0
      %v1805 = vpop.f32.mrb[0].mxu0
      %v1806 = vadd.f32 0.0, %v1805
      %v1807 = vpop.f32.mrb[0].mxu0
      %1808 = vmatprep.mubr.bf16.mxu0 %v737
      %1809 = vmatmul.mubr.bf16.gmra.mrb[0].mxu0 %v707
      %v1810 = vpop.f32.mrb[0].mxu0
      %v1811 = vadd.f32 0.0, %v1810
      %v1812 = vpop.f32.mrb[0].mxu0
      %v1813 = vpop.f32.mrb[0].mxu0
      %v1814 = vadd.f32 0.0, %v1813
      %v1815 = vpop.f32.mrb[0].mxu0
      %1816 = vmatprep.mubr.bf16.mxu0 %v738
      %1817 = vmatmul.mubr.bf16.gmra.mrb[0].mxu0 %v708
      %v1818 = vpop.f32.mrb[0].mxu0
      %v1819 = vadd.f32 0.0, %v1818
      %v1820 = vpop.f32.mrb[0].mxu0
      %v1821 = vpop.f32.mrb[0].mxu0
      %v1822 = vadd.f32 0.0, %v1821
      %v1823 = vpop.f32.mrb[0].mxu0
      %1824 = vmatprep.mubr.bf16.mxu0 %v739
      %1825 = vmatmul.mubr.bf16.gmra.mrb[0].mxu0 %v709
      %v1826 = vpop.f32.mrb[0].mxu0
      %v1827 = vadd.f32 0.0, %v1826
      %v1828 = vpop.f32.mrb[0].mxu0
      %v1829 = vpop.f32.mrb[0].mxu0
      %v1830 = vadd.f32 0.0, %v1829
      %v1831 = vpop.f32.mrb[0].mxu0
      %1832 = vdwg.mxu0
      %1833 = vmatprep.subr.bf16.mxu0 0
      %1834 = vmatpush1.bf16.msra.mxu0 %v1704
      %1835 = vmatprep.subr.bf16.mxu0 0
      %1836 = vmatpush1.bf16.msra.mxu0 %v1705
      %1837 = vmatprep.subr.bf16.mxu0 0
      %1838 = vmatpush1.bf16.msra.mxu0 %v1706
      %1839 = vmatprep.subr.bf16.mxu0 0
      %1840 = vmatpush1.bf16.msra.mxu0 %v1707
      %1841 = vmatprep.subr.bf16.mxu0 0
      %1842 = vmatpush1.bf16.msra.mxu0 %v1708
      %1843 = vmatprep.subr.bf16.mxu0 0
      %1844 = vmatpush1.bf16.msra.mxu0 %v1709
      %1845 = vmatprep.subr.bf16.mxu0 0
      %1846 = vmatpush1.bf16.msra.mxu0 %v1710
      %1847 = vmatprep.subr.bf16.mxu0 0
      %1848 = vmatpush1.bf16.msra.mxu0 %v1711
      %1849 = vmatprep.subr.bf16.mxu0 0
      %1850 = vmatpush1.bf16.msra.mxu0 0
      %1851 = vmatprep.subr.bf16.mxu0 0
      %1852 = vmatpush1.bf16.msra.mxu0 0
      %1853 = vmatprep.subr.bf16.mxu0 0
      %1854 = vmatpush1.bf16.msra.mxu0 0
      %1855 = vmatprep.subr.bf16.mxu0 0
      %1856 = vmatpush1.bf16.msra.mxu0 0
      %1857 = vmatprep.subr.bf16.mxu0 0
      %1858 = vmatpush1.bf16.msra.mxu0 0
      %1859 = vmatprep.subr.bf16.mxu0 0
      %1860 = vmatpush1.bf16.msra.mxu0 0
      %1861 = vmatprep.subr.bf16.mxu0 0
      %1862 = vmatpush1.bf16.msra.mxu0 0
      %1863 = vmatprep.subr.bf16.mxu0 0
      %1864 = vmatpush1.bf16.msra.mxu0 0
      %1865 = vmatprep.mubr.bf16.mxu0 0
      %1866 = vmatmul.mubr.bf16.gmra.mrb[0].mxu0 %v762
      %v1867 = vpop.f32.mrb[0].mxu0
      %v1868 = vadd.f32 %v1771, %v1867
      %v1869 = vpop.f32.mrb[0].mxu0
      %v1870 = vpop.f32.mrb[0].mxu0
      %v1871 = vadd.f32 %v1774, %v1870
      %v1872 = vpop.f32.mrb[0].mxu0
      %1873 = vmatprep.mubr.bf16.mxu0 0
      %1874 = vmatmul.mubr.bf16.gmra.mrb[0].mxu0 %v763
      %v1875 = vpop.f32.mrb[0].mxu0
      %v1876 = vadd.f32 %v1779, %v1875
      %v1877 = vpop.f32.mrb[0].mxu0
      %v1878 = vpop.f32.mrb[0].mxu0
      %v1879 = vadd.f32 %v1782, %v1878
      %v1880 = vpop.f32.mrb[0].mxu0
      %1881 = vmatprep.mubr.bf16.mxu0 0
      %1882 = vmatmul.mubr.bf16.gmra.mrb[0].mxu0 %v764
      %v1883 = vpop.f32.mrb[0].mxu0
      %v1884 = vadd.f32 %v1787, %v1883
      %v1885 = vpop.f32.mrb[0].mxu0
      %v1886 = vpop.f32.mrb[0].mxu0
      %v1887 = vadd.f32 %v1790, %v1886
      %v1888 = vpop.f32.mrb[0].mxu0
      %1889 = vmatprep.mubr.bf16.mxu0 0
      %1890 = vmatmul.mubr.bf16.gmra.mrb[0].mxu0 %v765
      %v1891 = vpop.f32.mrb[0].mxu0
      %v1892 = vadd.f32 %v1795, %v1891
      %v1893 = vpop.f32.mrb[0].mxu0
      %v1894 = vpop.f32.mrb[0].mxu0
      %v1895 = vadd.f32 %v1798, %v1894
      %v1896 = vpop.f32.mrb[0].mxu0
      %1897 = vmatprep.mubr.bf16.mxu0 0
      %1898 = vmatmul.mubr.bf16.gmra.mrb[0].mxu0 %v766
      %v1899 = vpop.f32.mrb[0].mxu0
      %v1900 = vadd.f32 %v1803, %v1899
      %v1901 = vpop.f32.mrb[0].mxu0
      %v1902 = vpop.f32.mrb[0].mxu0
      %v1903 = vadd.f32 %v1806, %v1902
      %v1904 = vpop.f32.mrb[0].mxu0
      %1905 = vmatprep.mubr.bf16.mxu0 0
      %1906 = vmatmul.mubr.bf16.gmra.mrb[0].mxu0 %v767
      %v1907 = vpop.f32.mrb[0].mxu0
      %v1908 = vadd.f32 %v1811, %v1907
      %v1909 = vpop.f32.mrb[0].mxu0
      %v1910 = vpop.f32.mrb[0].mxu0
      %v1911 = vadd.f32 %v1814, %v1910
      %v1912 = vpop.f32.mrb[0].mxu0
      %1913 = vmatprep.mubr.bf16.mxu0 0
      %1914 = vmatmul.mubr.bf16.gmra.mrb[0].mxu0 %v768
      %v1915 = vpop.f32.mrb[0].mxu0
      %v1916 = vadd.f32 %v1819, %v1915
      %v1917 = vpop.f32.mrb[0].mxu0
      %v1918 = vpop.f32.mrb[0].mxu0
      %v1919 = vadd.f32 %v1822, %v1918
      %v1920 = vpop.f32.mrb[0].mxu0
      %1921 = vmatprep.mubr.bf16.mxu0 0
      %1922 = vmatmul.mubr.bf16.gmra.mrb[0].mxu0 %v769
      %v1923 = vpop.f32.mrb[0].mxu0
      %v1924 = vadd.f32 %v1827, %v1923
      %v1925 = vpop.f32.mrb[0].mxu0
      %v1926 = vpop.f32.mrb[0].mxu0
      %v1927 = vadd.f32 %v1830, %v1926
      %v1928 = vpop.f32.mrb[0].mxu0
      %1929 = vdwg.mxu0
      %v1930 = vadd.f32 %v1481, %v1868
      %v1931 = vadd.f32 %v1484, %v1871
      %v1932 = vadd.f32 %v1489, %v1876
      %v1933 = vadd.f32 %v1492, %v1879
      %v1934 = vadd.f32 %v1497, %v1884
      %v1935 = vadd.f32 %v1500, %v1887
      %v1936 = vadd.f32 %v1505, %v1892
      %v1937 = vadd.f32 %v1508, %v1895
      %v1938 = vadd.f32 %v1513, %v1900
      %v1939 = vadd.f32 %v1516, %v1903
      %v1940 = vadd.f32 %v1521, %v1908
      %v1941 = vadd.f32 %v1524, %v1911
      %v1942 = vadd.f32 %v1529, %v1916
      %v1943 = vadd.f32 %v1532, %v1919
      %v1944 = vadd.f32 %v1537, %v1924
      %v1945 = vadd.f32 %v1540, %v1927
      %v1946 = vadd.f32 %v1930, %v1931
      %v1947 = vadd.f32 %v1946, %v1932
      %v1948 = vadd.f32 %v1947, %v1933
      %v1949 = vadd.f32 %v1948, %v1934
      %v1950 = vadd.f32 %v1949, %v1935
      %v1951 = vadd.f32 %v1950, %v1936
      %v1952 = vadd.f32 %v1951, %v1937
      %v1953 = vadd.f32 %v1952, %v1938
      %v1954 = vadd.f32 %v1953, %v1939
      %v1955 = vadd.f32 %v1954, %v1940
      %v1956 = vadd.f32 %v1955, %v1941
      %v1957 = vadd.f32 %v1956, %v1942
      %v1958 = vadd.f32 %v1957, %v1943
      %v1959 = vadd.f32 %v1958, %v1944
      %v1960 = vadd.f32 %v1959, %v1945
      %v1961 = vrot.slane %v1960, 4
      %v1962 = vadd.f32 %v1960, %v1961
      %v1963 = vrot.slane %v1962, 2
      %v1964 = vadd.f32 %v1962, %v1963
      %v1965 = vrot.slane %v1964, 1
      %v1966 = vadd.f32 %v1964, %v1965
      %1967 = vst [vmem:[%s503] sm:$0x1] %v1966
      %v1968 = vmul.f32 %v1930, %v1930
      %v1969 = vmul.f32 %v1931, %v1931
      %v1970 = vmul.f32 %v1932, %v1932
      %v1971 = vmul.f32 %v1933, %v1933
      %v1972 = vmul.f32 %v1934, %v1934
      %v1973 = vmul.f32 %v1935, %v1935
      %v1974 = vmul.f32 %v1936, %v1936
      %v1975 = vmul.f32 %v1937, %v1937
      %v1976 = vmul.f32 %v1938, %v1938
      %v1977 = vmul.f32 %v1939, %v1939
      %v1978 = vmul.f32 %v1940, %v1940
      %v1979 = vmul.f32 %v1941, %v1941
      %v1980 = vmul.f32 %v1942, %v1942
      %v1981 = vmul.f32 %v1943, %v1943
      %v1982 = vmul.f32 %v1944, %v1944
      %v1983 = vmul.f32 %v1945, %v1945
      %v1984 = vadd.f32 %v1968, %v1969
      %v1985 = vadd.f32 %v1984, %v1970
      %v1986 = vadd.f32 %v1985, %v1971
      %v1987 = vadd.f32 %v1986, %v1972
      %v1988 = vadd.f32 %v1987, %v1973
      %v1989 = vadd.f32 %v1988, %v1974
      %v1990 = vadd.f32 %v1989, %v1975
      %v1991 = vadd.f32 %v1990, %v1976
      %v1992 = vadd.f32 %v1991, %v1977
      %v1993 = vadd.f32 %v1992, %v1978
      %v1994 = vadd.f32 %v1993, %v1979
      %v1995 = vadd.f32 %v1994, %v1980
      %v1996 = vadd.f32 %v1995, %v1981
      %v1997 = vadd.f32 %v1996, %v1982
      %v1998 = vadd.f32 %v1997, %v1983
      %v1999 = vrot.slane %v1998, 4
      %v2000 = vadd.f32 %v1998, %v1999
      %v2001 = vrot.slane %v2000, 2
      %v2002 = vadd.f32 %v2000, %v2001
      %v2003 = vrot.slane %v2002, 1
      %v2004 = vadd.f32 %v2002, %v2003
      %2005 = vst [vmem:[%s510] sm:$0x1] %v2004
      %v2006 = vpack.c.bf16 %v1931, %v1930
      %v2007 = vpack.c.bf16 %v1933, %v1932
      %v2008 = vpack.c.bf16 %v1935, %v1934
      %v2009 = vpack.c.bf16 %v1937, %v1936
      %v2010 = vpack.c.bf16 %v1939, %v1938
      %v2011 = vpack.c.bf16 %v1941, %v1940
      %v2012 = vpack.c.bf16 %v1943, %v1942
      %v2013 = vpack.c.bf16 %v1945, %v1944
      %v2022 = vunpack.c.l.b16 %v2006
      %v2023 = vunpack.c.h.b16 %v2006
      %v2024 = vunpack.c.l.b16 %v2007
      %v2025 = vunpack.c.h.b16 %v2007
      %v2026 = vunpack.c.l.b16 %v2008
      %v2027 = vunpack.c.h.b16 %v2008
      %v2028 = vunpack.c.l.b16 %v2009
      %v2029 = vunpack.c.h.b16 %v2009
      %v2030 = vunpack.c.l.b16 %v2010
      %v2031 = vunpack.c.h.b16 %v2010
      %v2032 = vunpack.c.l.b16 %v2011
      %v2033 = vunpack.c.h.b16 %v2011
      %v2034 = vunpack.c.l.b16 %v2012
      %v2035 = vunpack.c.h.b16 %v2012
      %v2036 = vunpack.c.l.b16 %v2013
      %v2037 = vunpack.c.h.b16 %v2013
      %v2038 = vpack.c.b16 %v2022, %v2022
      %v2039 = vpack.c.b16 %v2023, %v2023
      %v2040 = vpack.c.b16 %v2024, %v2024
      %v2041 = vpack.c.b16 %v2025, %v2025
      %v2042 = vpack.c.b16 %v2026, %v2026
      %v2043 = vpack.c.b16 %v2027, %v2027
      %v2044 = vpack.c.b16 %v2028, %v2028
      %v2045 = vpack.c.b16 %v2029, %v2029
      %v2046 = vpack.c.b16 %v2030, %v2030
      %v2047 = vpack.c.b16 %v2031, %v2031
      %v2048 = vpack.c.b16 %v2032, %v2032
      %v2049 = vpack.c.b16 %v2033, %v2033
      %v2050 = vpack.c.b16 %v2034, %v2034
      %v2051 = vpack.c.b16 %v2035, %v2035
      %v2052 = vpack.c.b16 %v2036, %v2036
      %v2053 = vpack.c.b16 %v2037, %v2037
      %2070 = vst [vmem:[%s495] sm:$0xf] %v2038
      %2071 = vst [vmem:[%s495 + $0x4] sm:$0xf] %v2039
      %2072 = vst [vmem:[%s495 + $0x8] sm:$0xf] %v2040
      %2073 = vst [vmem:[%s495 + $0xc] sm:$0xf] %v2041
      %2074 = vst [vmem:[%s495 + $0x10] sm:$0xf] %v2042
      %2075 = vst [vmem:[%s495 + $0x14] sm:$0xf] %v2043
      %2076 = vst [vmem:[%s495 + $0x18] sm:$0xf] %v2044
      %2077 = vst [vmem:[%s495 + $0x1c] sm:$0xf] %v2045
      %2078 = vst [vmem:[%s495 + $0x20] sm:$0xf] %v2046
      %2079 = vst [vmem:[%s495 + $0x24] sm:$0xf] %v2047
      %2080 = vst [vmem:[%s495 + $0x28] sm:$0xf] %v2048
      %2081 = vst [vmem:[%s495 + $0x2c] sm:$0xf] %v2049
      %2082 = vst [vmem:[%s495 + $0x30] sm:$0xf] %v2050
      %2083 = vst [vmem:[%s495 + $0x34] sm:$0xf] %v2051
      %2084 = vst [vmem:[%s495 + $0x38] sm:$0xf] %v2052
      %2085 = vst [vmem:[%s495 + $0x3c] sm:$0xf] %v2053
      %s2086 = smul.u32 8, %s25
      %p2087 = scmp.lt.s32.totalorder %s24, 1
      %s2088 = scalar_select %p2087, %s24, 1
      %p2089 = scmp.lt.s32.totalorder %s2086, 15
      %s2090 = scalar_select %p2089, %s2086, 15
      %s2091 = smul.addr %s2090, 2
      %s2092 = smul.addr %s2088, 32
      %s2093 = sadd.s32 %s2091, %s2092
      %s2094 = smul.addr %s2093, 4
      %s2095 = scalar_lea.vmem %s6, %s2094
      %p2096 = scmp.lt.s32.totalorder %s24, 1
      %s2097 = scalar_select %p2096, %s24, 1
      %p2098 = scmp.lt.s32.totalorder %s25, 1
      %s2099 = scalar_select %p2098, %s25, 1
      %s2100 = smul.addr %s2097, 2
      %s2101 = sadd.s32 %s2099, %s2100
      %s2102 = scalar_lea.vmem %s7, %s2101
      %p2103 = scmp.lt.s32.totalorder %s24, 1
      %s2104 = scalar_select %p2103, %s24, 1
      %p2105 = scmp.lt.s32.totalorder %s25, 1
      %s2106 = scalar_select %p2105, %s25, 1
      %s2107 = smul.addr %s2104, 2
      %s2108 = sadd.s32 %s2106, %s2107
      %s2109 = scalar_lea.vmem %s8, %s2108
      // Predicated region
      $region45: #{trans_bottleneck.5} parent=43 // pred_check
        %p2110 = pneg %p215
      $region46: #{trans_bottleneck.5} parent=43 // pred_check_branch
        %2112 = sbr.rel (%p2110) target = $region48
      $region47: #{trans_bottleneck.5} parent=43 // pred_region
        %s2113 = smul.u32 8, %s25
      $region48: #{trans_bottleneck.5} parent=43 // pred_fallthru
        _
      // Predicated region
      $region49: #{trans_bottleneck.5} parent=43 // pred_check
        %p2114 = pneg %p243
      $region50: #{trans_bottleneck.5} parent=43 // pred_check_branch
        %2116 = sbr.rel (%p2114) target = $region52
      $region51: #{trans_bottleneck.5} parent=43 // pred_region
        _
      $region52: #{trans_bottleneck.5} parent=43 // pred_fallthru
        _
      // Predicated region
      $region53: #{trans_bottleneck.5} parent=43 // pred_check
        %p2117 = pneg %p271
      $region54: #{trans_bottleneck.5} parent=43 // pred_check_branch
        %2119 = sbr.rel (%p2117) target = $region56
      $region55: #{trans_bottleneck.5} parent=43 // pred_region
        _
      $region56: #{trans_bottleneck.5} parent=43 // pred_fallthru
        _
    $region44: #{trans_bottleneck.5} parent=5 // pred_fallthru
      _
    %p2120 = scmp.le.s32.totalorder 2, %s15
    // Predicated region
    $region57: #{trans_bottleneck.5} parent=5 // pred_check
      %p2121 = pneg %p2120
    $region58: #{trans_bottleneck.5} parent=5 // pred_check_branch
      %2123 = sbr.rel (%p2121) target = $region60
    $region59: #{trans_bottleneck.5} parent=5 // pred_region
      %s2124 = ssub.s32 %s15, 2
      // Predicated region
      $region61: #{trans_bottleneck.5} parent=59 // pred_check
        %p2125 = pneg %p221
      $region62: #{trans_bottleneck.5} parent=59 // pred_check_branch
        %2127 = sbr.rel (%p2125) target = $region64
      $region63: #{trans_bottleneck.5} parent=59 // pred_region
        %s2128 = smul.u32 8, %s27
        %p2129 = scmp.lt.s32.totalorder %s26, 1
        %s2130 = scalar_select %p2129, %s26, 1
        %p2131 = scmp.lt.s32.totalorder %s2128, 15
        %s2132 = scalar_select %p2131, %s2128, 15
        %s2133 = smul.addr %s2132, 2
        %s2134 = smul.addr %s2130, 32
        %s2135 = sadd.s32 %s2133, %s2134
        %s2136 = smul.addr %s2135, 4
        %s2137 = scalar_lea.vmem %s6, %s2136
      $region64: #{trans_bottleneck.5} parent=59 // pred_fallthru
        _
      // Predicated region
      $region65: #{trans_bottleneck.5} parent=59 // pred_check
        %p2138 = pneg %p249
      $region66: #{trans_bottleneck.5} parent=59 // pred_check_branch
        %2140 = sbr.rel (%p2138) target = $region68
      $region67: #{trans_bottleneck.5} parent=59 // pred_region
        %p2141 = scmp.lt.s32.totalorder %s26, 1
        %s2142 = scalar_select %p2141, %s26, 1
        %p2143 = scmp.lt.s32.totalorder %s27, 1
        %s2144 = scalar_select %p2143, %s27, 1
        %s2145 = smul.addr %s2142, 2
        %s2146 = sadd.s32 %s2144, %s2145
        %s2147 = scalar_lea.vmem %s7, %s2146
      $region68: #{trans_bottleneck.5} parent=59 // pred_fallthru
        _
      // Predicated region
      $region69: #{trans_bottleneck.5} parent=59 // pred_check
        %p2148 = pneg %p277
      $region70: #{trans_bottleneck.5} parent=59 // pred_check_branch
        %2150 = sbr.rel (%p2148) target = $region72
      $region71: #{trans_bottleneck.5} parent=59 // pred_region
        %p2151 = scmp.lt.s32.totalorder %s26, 1
        %s2152 = scalar_select %p2151, %s26, 1
        %p2153 = scmp.lt.s32.totalorder %s27, 1
        %s2154 = scalar_select %p2153, %s27, 1
        %s2155 = smul.addr %s2152, 2
        %s2156 = sadd.s32 %s2154, %s2155
        %s2157 = scalar_lea.vmem %s8, %s2156
      $region72: #{trans_bottleneck.5} parent=59 // pred_fallthru
        _
    $region60: #{trans_bottleneck.5} parent=5 // pred_fallthru
      _
  $region6: #{trans_bottleneck.5} parent=0 // loop_footer
    %s19 = sadd.s32 1, %s15
  $region7: #{trans_bottleneck.5} parent=0 // loop_footer_branch
    %14 = sbr.rel target = $region3
  $region8: #{trans_bottleneck.5} parent=0 // loop_exit
    _

</llo_original>
